<compile_context>
chip_gen: v7x
topology: tpu7x:2x2x1
jax: 0.10.0
libtpu: 0.0.40
codegen_flags: <defaults>
</compile_context>

<pallas_src>
import jax
import jax.numpy as jnp
from jax.experimental import pallas as pl
from jax.experimental.pallas import tpu as pltpu

KSIZE = 5
PAD = KSIZE // 2  # 'same' padding for a 5x5 kernel


def convblock_kernel(x_ref, scale_ref, shift_ref, w_ref, b_ref, o_ref, xpad_ref):
    """Per-image ConvBlock body (eval mode).

    x_ref:     (1, H, W*Cin)           f32  input rows, lane-packed (w, c)
    scale_ref: (1, W*Cin)              f32  BN scale, tiled along W
    shift_ref: (1, W*Cin)              f32  BN shift, tiled along W
    w_ref:     (5, (W+4)*Cin, W*Cout)  bf16 banded (block-Toeplitz) conv weights
    b_ref:     (1, W*Cout)             f32  conv bias, tiled along W
    o_ref:     (1, H, W*Cout)          f32  output rows, lane-packed (w, co)
    xpad_ref:  (H+4, (W+4)*Cin)        bf16 VMEM scratch: zero-padded, BN'd input
    """
    _, H, WCin = x_ref.shape
    Hp, WpCin = xpad_ref.shape
    WCout = o_ref.shape[-1]
    cpad = (WpCin - WCin) // 2          # = PAD * Cin lanes of zero padding/side

    # --- BatchNorm affine (+ Dropout2d eval = identity), fused with the bf16
    #     cast while writing the interior of the padded scratch buffer. ---
    xpad_ref[PAD:PAD + H, cpad:cpad + WCin] = (
        x_ref[0] * scale_ref[...] + shift_ref[...]
    ).astype(xpad_ref.dtype)

    # Zero only the halo (2 rows top/bottom + 2*Cin lanes left/right).
    xpad_ref[0:PAD, :] = jnp.zeros((PAD, WpCin), dtype=xpad_ref.dtype)
    xpad_ref[PAD + H:Hp, :] = jnp.zeros((Hp - PAD - H, WpCin), dtype=xpad_ref.dtype)
    xpad_ref[PAD:PAD + H, 0:cpad] = jnp.zeros((H, cpad), dtype=xpad_ref.dtype)
    xpad_ref[PAD:PAD + H, cpad + WCin:WpCin] = jnp.zeros(
        (H, WpCin - cpad - WCin), dtype=xpad_ref.dtype)

    # --- Conv bias init, then 5 accumulating bf16 GEMMs (one per kernel row),
    #     f32 accumulation directly into the VMEM output block. ---
    o_ref[0] = jnp.broadcast_to(b_ref[...], (H, WCout))
    for kh in range(KSIZE):
        lhs = xpad_ref[kh:kh + H, :]                     # (H, (W+4)*Cin) bf16
        o_ref[0] += jnp.dot(lhs, w_ref[kh],
                            preferred_element_type=jnp.float32)

    # --- ELU (alpha = 1.0) ---
    y = o_ref[0]
    o_ref[0] = jnp.where(y > 0.0, y, jnp.exp(jnp.minimum(y, 0.0)) - 1.0)


def convblock_forward(x_nchw, gamma, beta, running_mean, running_var,
                      conv_w, conv_b, eps=1e-5):
    """Forward pass of ConvBlock (eval mode). x_nchw: (N, Cin, H, W)."""
    N, Cin, H, W = x_nchw.shape
    Cout = conv_w.shape[0]
    Wp = W + 2 * PAD

    # Fold BatchNorm running stats into per-channel scale/shift (JAX glue).
    scale = gamma / jnp.sqrt(running_var + eps)
    shift = beta - running_mean * scale

    # Lane-packed layouts: rows carry (w, c) interleaved on the lane axis.
    x = jnp.transpose(x_nchw, (0, 2, 3, 1)).reshape(N, H, W * Cin).astype(jnp.float32)
    scale_t = jnp.tile(scale, W).reshape(1, W * Cin).astype(jnp.float32)
    shift_t = jnp.tile(shift, W).reshape(1, W * Cin).astype(jnp.float32)
    bias_t = jnp.tile(conv_b, W).reshape(1, W * Cout).astype(jnp.float32)

    # Block-Toeplitz ("banded") weights:
    #   wband[kh, r*Cin + c, x*Cout + co] = w[co, c, kh, r-x] if 0 <= r-x < 5 else 0
    # with r the padded W position. This merges all kw taps and all Cin into
    # one contraction of size (W+4)*Cin per kernel row kh.
    w_hwio = jnp.transpose(conv_w, (2, 3, 1, 0)).astype(jnp.float32)   # (5,5,Cin,Cout)
    r = jnp.arange(Wp)[:, None]                    # padded W position
    xc = jnp.arange(W)[None, :]                    # output W position
    kw = r - xc                                    # (Wp, W)
    valid = ((kw >= 0) & (kw < KSIZE)).astype(jnp.float32)
    kw_c = jnp.clip(kw, 0, KSIZE - 1)
    blocks = w_hwio[:, kw_c]                       # (5, Wp, W, Cin, Cout)
    blocks = blocks * valid[None, :, :, None, None]
    wband = jnp.transpose(blocks, (0, 1, 3, 2, 4)).reshape(
        KSIZE, Wp * Cin, W * Cout).astype(jnp.bfloat16)

    # TODO(synk): for large H/W, add a second grid axis over H bands (2-row
    #             halo) and tile W so the banded weight stays O((Wt+4)*Cin*Wt*Cout).
    out2d = pl.pallas_call(
        convblock_kernel,
        out_shape=jax.ShapeDtypeStruct((N, H, W * Cout), jnp.float32),
        grid=(N,),
        in_specs=[
            pl.BlockSpec((1, H, W * Cin), lambda n: (n, 0, 0)),
            pl.BlockSpec((1, W * Cin), lambda n: (0, 0)),
            pl.BlockSpec((1, W * Cin), lambda n: (0, 0)),
            pl.BlockSpec((KSIZE, Wp * Cin, W * Cout), lambda n: (0, 0, 0)),
            pl.BlockSpec((1, W * Cout), lambda n: (0, 0)),
        ],
        out_specs=pl.BlockSpec((1, H, W * Cout), lambda n: (n, 0, 0)),
        scratch_shapes=[pltpu.VMEM((H + 2 * PAD, Wp * Cin), jnp.bfloat16)],
        compiler_params=pltpu.CompilerParams(
            dimension_semantics=("parallel",),
            vmem_limit_bytes=32 * 1024 * 1024,
        ),
    )(x, scale_t, shift_t, wband, bias_t)

    out = out2d.reshape(N, H, W, Cout)
    return jnp.transpose(out, (0, 3, 1, 2))        # back to NCHW


def _reference(x_nchw, gamma, beta, running_mean, running_var, conv_w, conv_b,
               eps=1e-5):
    """Pure-JAX reference (eval-mode ConvBlock) for correctness checking."""
    scale = gamma / jnp.sqrt(running_var + eps)
    shift = beta - running_mean * scale
    xb = x_nchw * scale[None, :, None, None] + shift[None, :, None, None]
    x_nhwc = jnp.transpose(xb, (0, 2, 3, 1))
    w_hwio = jnp.transpose(conv_w, (2, 3, 1, 0))
    y = jax.lax.conv_general_dilated(
        x_nhwc, w_hwio, window_strides=(1, 1), padding="SAME",
        dimension_numbers=("NHWC", "HWIO", "NHWC"),
    ) + conv_b[None, None, None, :]
    y = jnp.where(y > 0.0, y, jnp.exp(jnp.minimum(y, 0.0)) - 1.0)
    return jnp.transpose(y, (0, 3, 1, 2))


if __name__ == "__main__":
    # Shapes consistent with the module: ConvBlock(32, 32) from SegmentModel,
    # at a small spatial size. W*Cin = W*Cout = 512 -> lane-dense (128-aligned).
    N, Cin, H, W = 2, 32, 16, 16
    Cout = 32

    key = jax.random.PRNGKey(0)
    kx, kg, kb, km, kv, kwt, kbias = jax.random.split(key, 7)

    x = jax.random.normal(kx, (N, Cin, H, W), dtype=jnp.float32)

    # Deterministic parameter init (shapes per nn.BatchNorm2d / nn.Conv2d).
    gamma = 1.0 + 0.1 * jax.random.normal(kg, (Cin,), dtype=jnp.float32)
    beta = 0.1 * jax.random.normal(kb, (Cin,), dtype=jnp.float32)
    running_mean = 0.1 * jax.random.normal(km, (Cin,), dtype=jnp.float32)
    running_var = jax.random.uniform(kv, (Cin,), minval=0.5, maxval=1.5,
                                     dtype=jnp.float32)
    conv_w = 0.1 * jax.random.normal(kwt, (Cout, Cin, KSIZE, KSIZE),
                                     dtype=jnp.float32)
    conv_b = 0.1 * jax.random.normal(kbias, (Cout,), dtype=jnp.float32)

    out = convblock_forward(x, gamma, beta, running_mean, running_var,
                            conv_w, conv_b)
    out = jax.block_until_ready(out)

    ref = _reference(x, gamma, beta, running_mean, running_var, conv_w, conv_b)
    assert out.shape == (N, Cout, H, W), out.shape
    max_err = float(jnp.max(jnp.abs(out - ref)))
    # bf16 MXU operands (f32 accumulation over 25*Cin=800 taps) vs f32 ref.
    assert jnp.allclose(out, ref, atol=1e-1, rtol=1e-1), max_err

    print("KERNEL_OK")
</pallas_src>

<mosaic_0001>
module attributes {stable_mosaic.version = 11 : i64} {
  func.func @convblock_kernel(%arg0: i32, %arg1: memref<1x16x512xf32, #tpu.memory_space<vmem>>, %arg2: memref<1x512xf32, #tpu.memory_space<vmem>>, %arg3: memref<1x512xf32, #tpu.memory_space<vmem>>, %arg4: memref<5x640x512xbf16, #tpu.memory_space<vmem>>, %arg5: memref<1x512xf32, #tpu.memory_space<vmem>>, %arg6: memref<1x16x512xf32, #tpu.memory_space<vmem>>, %arg7: memref<20x640xbf16, #tpu.memory_space<vmem>>) attributes {dimension_semantics = [#tpu.dimension_semantics<parallel>], iteration_bounds = array<i64: 2>, scalar_prefetch = 0 : i64, scratch_operands = 1 : i64, tpu.core_type = #tpu.core_type<tc>, window_params = [{transform_indices = @transform_0, window_bounds = array<i64: 1, 16, 512>}, {pipeline_mode = #tpu.pipeline_mode<synchronous>, transform_indices = @transform_1, window_bounds = array<i64: 1, 512>}, {pipeline_mode = #tpu.pipeline_mode<synchronous>, transform_indices = @transform_2, window_bounds = array<i64: 1, 512>}, {pipeline_mode = #tpu.pipeline_mode<synchronous>, transform_indices = @transform_3, window_bounds = array<i64: 5, 640, 512>}, {pipeline_mode = #tpu.pipeline_mode<synchronous>, transform_indices = @transform_4, window_bounds = array<i64: 1, 512>}, {transform_indices = @transform_5, window_bounds = array<i64: 1, 16, 512>}]} {
    %c0 = arith.constant 0 : index
    %c0_0 = arith.constant 0 : index
    %c0_1 = arith.constant 0 : index
    %0 = vector.load %arg1[%c0, %c0_0, %c0_1] : memref<1x16x512xf32, #tpu.memory_space<vmem>>, vector<1x16x512xf32>
    %1 = vector.shape_cast %0 : vector<1x16x512xf32> to vector<16x512xf32>
    %c0_2 = arith.constant 0 : index
    %c0_3 = arith.constant 0 : index
    %2 = vector.load %arg2[%c0_2, %c0_3] : memref<1x512xf32, #tpu.memory_space<vmem>>, vector<1x512xf32>
    %3 = vector.broadcast %2 : vector<1x512xf32> to vector<16x512xf32>
    %4 = arith.mulf %1, %3 : vector<16x512xf32>
    %c0_4 = arith.constant 0 : index
    %c0_5 = arith.constant 0 : index
    %5 = vector.load %arg3[%c0_4, %c0_5] : memref<1x512xf32, #tpu.memory_space<vmem>>, vector<1x512xf32>
    %6 = vector.broadcast %5 : vector<1x512xf32> to vector<16x512xf32>
    %7 = arith.addf %4, %6 : vector<16x512xf32>
    %8 = arith.truncf %7 : vector<16x512xf32> to vector<16x512xbf16>
    %c2 = arith.constant 2 : index
    %c64 = arith.constant 64 : index
    %9 = vector.load %arg7[%c2, %c64] : memref<20x640xbf16, #tpu.memory_space<vmem>>, vector<16x512xbf16>
    tpu.vector_store %arg7[%c2, %c64], %8 {strides = array<i32>} : memref<20x640xbf16, #tpu.memory_space<vmem>>, vector<16x512xbf16>,
    %cst = arith.constant 0.000000e+00 : bf16
    %10 = vector.broadcast %cst : bf16 to vector<2x640xbf16>
    %c0_6 = arith.constant 0 : index
    %c0_7 = arith.constant 0 : index
    %11 = vector.load %arg7[%c0_6, %c0_7] : memref<20x640xbf16, #tpu.memory_space<vmem>>, vector<2x640xbf16>
    tpu.vector_store %arg7[%c0_6, %c0_7], %10 {strides = array<i32>} : memref<20x640xbf16, #tpu.memory_space<vmem>>, vector<2x640xbf16>,
    %cst_8 = arith.constant 0.000000e+00 : bf16
    %12 = vector.broadcast %cst_8 : bf16 to vector<2x640xbf16>
    %c18 = arith.constant 18 : index
    %c0_9 = arith.constant 0 : index
    %13 = vector.load %arg7[%c18, %c0_9] : memref<20x640xbf16, #tpu.memory_space<vmem>>, vector<2x640xbf16>
    tpu.vector_store %arg7[%c18, %c0_9], %12 {strides = array<i32>} : memref<20x640xbf16, #tpu.memory_space<vmem>>, vector<2x640xbf16>,
    %cst_10 = arith.constant 0.000000e+00 : bf16
    %14 = vector.broadcast %cst_10 : bf16 to vector<16x64xbf16>
    %c2_11 = arith.constant 2 : index
    %c0_12 = arith.constant 0 : index
    %15 = vector.load %arg7[%c2_11, %c0_12] : memref<20x640xbf16, #tpu.memory_space<vmem>>, vector<16x64xbf16>
    tpu.vector_store %arg7[%c2_11, %c0_12], %14 {strides = array<i32>} : memref<20x640xbf16, #tpu.memory_space<vmem>>, vector<16x64xbf16>,
    %cst_13 = arith.constant 0.000000e+00 : bf16
    %16 = vector.broadcast %cst_13 : bf16 to vector<16x64xbf16>
    %c2_14 = arith.constant 2 : index
    %c576 = arith.constant 576 : index
    %17 = vector.load %arg7[%c2_14, %c576] : memref<20x640xbf16, #tpu.memory_space<vmem>>, vector<16x64xbf16>
    tpu.vector_store %arg7[%c2_14, %c576], %16 {strides = array<i32>} : memref<20x640xbf16, #tpu.memory_space<vmem>>, vector<16x64xbf16>,
    %c0_15 = arith.constant 0 : index
    %c0_16 = arith.constant 0 : index
    %18 = vector.load %arg5[%c0_15, %c0_16] : memref<1x512xf32, #tpu.memory_space<vmem>>, vector<1x512xf32>
    %19 = vector.shape_cast %18 : vector<1x512xf32> to vector<1x512xf32>
    %20 = vector.broadcast %19 : vector<1x512xf32> to vector<16x512xf32>
    %c0_17 = arith.constant 0 : index
    %c0_18 = arith.constant 0 : index
    %c0_19 = arith.constant 0 : index
    %21 = vector.load %arg6[%c0_17, %c0_18, %c0_19] : memref<1x16x512xf32, #tpu.memory_space<vmem>>, vector<1x16x512xf32>
    %22 = vector.shape_cast %21 : vector<1x16x512xf32> to vector<16x512xf32>
    %23 = vector.shape_cast %20 : vector<16x512xf32> to vector<1x16x512xf32>
    tpu.vector_store %arg6[%c0_17, %c0_18, %c0_19], %23 {strides = array<i32>} : memref<1x16x512xf32, #tpu.memory_space<vmem>>, vector<1x16x512xf32>,
    %c0_20 = arith.constant 0 : index
    %c0_21 = arith.constant 0 : index
    %24 = vector.load %arg7[%c0_20, %c0_21] : memref<20x640xbf16, #tpu.memory_space<vmem>>, vector<16x640xbf16>
    %c0_22 = arith.constant 0 : index
    %c0_23 = arith.constant 0 : index
    %c0_24 = arith.constant 0 : index
    %25 = vector.load %arg6[%c0_22, %c0_23, %c0_24] : memref<1x16x512xf32, #tpu.memory_space<vmem>>, vector<1x16x512xf32>
    %26 = vector.shape_cast %25 : vector<1x16x512xf32> to vector<16x512xf32>
    %c0_25 = arith.constant 0 : index
    %c0_26 = arith.constant 0 : index
    %c0_27 = arith.constant 0 : index
    %27 = vector.load %arg4[%c0_25, %c0_26, %c0_27] : memref<5x640x512xbf16, #tpu.memory_space<vmem>>, vector<1x640x512xbf16>
    %28 = vector.shape_cast %27 : vector<1x640x512xbf16> to vector<640x512xbf16>
    %cst_28 = arith.constant dense<0.000000e+00> : vector<16x512xf32>
    %29 = tpu.matmul %24, %28, %cst_28 {dimension_numbers = #tpu.dot_dimension_numbers<[1], [0], [0], [1], [0, 0, 1, 1], [], []>} : vector<16x640xbf16>, vector<640x512xbf16>, vector<16x512xf32> -> vector<16x512xf32>
    %30 = arith.addf %26, %29 : vector<16x512xf32>
    %c0_29 = arith.constant 0 : index
    %c0_30 = arith.constant 0 : index
    %c0_31 = arith.constant 0 : index
    %31 = vector.load %arg6[%c0_29, %c0_30, %c0_31] : memref<1x16x512xf32, #tpu.memory_space<vmem>>, vector<1x16x512xf32>
    %32 = vector.shape_cast %31 : vector<1x16x512xf32> to vector<16x512xf32>
    %33 = vector.shape_cast %30 : vector<16x512xf32> to vector<1x16x512xf32>
    tpu.vector_store %arg6[%c0_29, %c0_30, %c0_31], %33 {strides = array<i32>} : memref<1x16x512xf32, #tpu.memory_space<vmem>>, vector<1x16x512xf32>,
    %c1 = arith.constant 1 : index
    %c0_32 = arith.constant 0 : index
    %34 = vector.load %arg7[%c1, %c0_32] : memref<20x640xbf16, #tpu.memory_space<vmem>>, vector<16x640xbf16>
    %c0_33 = arith.constant 0 : index
    %c0_34 = arith.constant 0 : index
    %c0_35 = arith.constant 0 : index
    %35 = vector.load %arg6[%c0_33, %c0_34, %c0_35] : memref<1x16x512xf32, #tpu.memory_space<vmem>>, vector<1x16x512xf32>
    %36 = vector.shape_cast %35 : vector<1x16x512xf32> to vector<16x512xf32>
    %c1_36 = arith.constant 1 : index
    %c0_37 = arith.constant 0 : index
    %c0_38 = arith.constant 0 : index
    %37 = vector.load %arg4[%c1_36, %c0_37, %c0_38] : memref<5x640x512xbf16, #tpu.memory_space<vmem>>, vector<1x640x512xbf16>
    %38 = vector.shape_cast %37 : vector<1x640x512xbf16> to vector<640x512xbf16>
    %cst_39 = arith.constant dense<0.000000e+00> : vector<16x512xf32>
    %39 = tpu.matmul %34, %38, %cst_39 {dimension_numbers = #tpu.dot_dimension_numbers<[1], [0], [0], [1], [0, 0, 1, 1], [], []>} : vector<16x640xbf16>, vector<640x512xbf16>, vector<16x512xf32> -> vector<16x512xf32>
    %40 = arith.addf %36, %39 : vector<16x512xf32>
    %c0_40 = arith.constant 0 : index
    %c0_41 = arith.constant 0 : index
    %c0_42 = arith.constant 0 : index
    %41 = vector.load %arg6[%c0_40, %c0_41, %c0_42] : memref<1x16x512xf32, #tpu.memory_space<vmem>>, vector<1x16x512xf32>
    %42 = vector.shape_cast %41 : vector<1x16x512xf32> to vector<16x512xf32>
    %43 = vector.shape_cast %40 : vector<16x512xf32> to vector<1x16x512xf32>
    tpu.vector_store %arg6[%c0_40, %c0_41, %c0_42], %43 {strides = array<i32>} : memref<1x16x512xf32, #tpu.memory_space<vmem>>, vector<1x16x512xf32>,
    %c2_43 = arith.constant 2 : index
    %c0_44 = arith.constant 0 : index
    %44 = vector.load %arg7[%c2_43, %c0_44] : memref<20x640xbf16, #tpu.memory_space<vmem>>, vector<16x640xbf16>
    %c0_45 = arith.constant 0 : index
    %c0_46 = arith.constant 0 : index
    %c0_47 = arith.constant 0 : index
    %45 = vector.load %arg6[%c0_45, %c0_46, %c0_47] : memref<1x16x512xf32, #tpu.memory_space<vmem>>, vector<1x16x512xf32>
    %46 = vector.shape_cast %45 : vector<1x16x512xf32> to vector<16x512xf32>
    %c2_48 = arith.constant 2 : index
    %c0_49 = arith.constant 0 : index
    %c0_50 = arith.constant 0 : index
    %47 = vector.load %arg4[%c2_48, %c0_49, %c0_50] : memref<5x640x512xbf16, #tpu.memory_space<vmem>>, vector<1x640x512xbf16>
    %48 = vector.shape_cast %47 : vector<1x640x512xbf16> to vector<640x512xbf16>
    %cst_51 = arith.constant dense<0.000000e+00> : vector<16x512xf32>
    %49 = tpu.matmul %44, %48, %cst_51 {dimension_numbers = #tpu.dot_dimension_numbers<[1], [0], [0], [1], [0, 0, 1, 1], [], []>} : vector<16x640xbf16>, vector<640x512xbf16>, vector<16x512xf32> -> vector<16x512xf32>
    %50 = arith.addf %46, %49 : vector<16x512xf32>
    %c0_52 = arith.constant 0 : index
    %c0_53 = arith.constant 0 : index
    %c0_54 = arith.constant 0 : index
    %51 = vector.load %arg6[%c0_52, %c0_53, %c0_54] : memref<1x16x512xf32, #tpu.memory_space<vmem>>, vector<1x16x512xf32>
    %52 = vector.shape_cast %51 : vector<1x16x512xf32> to vector<16x512xf32>
    %53 = vector.shape_cast %50 : vector<16x512xf32> to vector<1x16x512xf32>
    tpu.vector_store %arg6[%c0_52, %c0_53, %c0_54], %53 {strides = array<i32>} : memref<1x16x512xf32, #tpu.memory_space<vmem>>, vector<1x16x512xf32>,
    %c3 = arith.constant 3 : index
    %c0_55 = arith.constant 0 : index
    %54 = vector.load %arg7[%c3, %c0_55] : memref<20x640xbf16, #tpu.memory_space<vmem>>, vector<16x640xbf16>
    %c0_56 = arith.constant 0 : index
    %c0_57 = arith.constant 0 : index
    %c0_58 = arith.constant 0 : index
    %55 = vector.load %arg6[%c0_56, %c0_57, %c0_58] : memref<1x16x512xf32, #tpu.memory_space<vmem>>, vector<1x16x512xf32>
    %56 = vector.shape_cast %55 : vector<1x16x512xf32> to vector<16x512xf32>
    %c3_59 = arith.constant 3 : index
    %c0_60 = arith.constant 0 : index
    %c0_61 = arith.constant 0 : index
    %57 = vector.load %arg4[%c3_59, %c0_60, %c0_61] : memref<5x640x512xbf16, #tpu.memory_space<vmem>>, vector<1x640x512xbf16>
    %58 = vector.shape_cast %57 : vector<1x640x512xbf16> to vector<640x512xbf16>
    %cst_62 = arith.constant dense<0.000000e+00> : vector<16x512xf32>
    %59 = tpu.matmul %54, %58, %cst_62 {dimension_numbers = #tpu.dot_dimension_numbers<[1], [0], [0], [1], [0, 0, 1, 1], [], []>} : vector<16x640xbf16>, vector<640x512xbf16>, vector<16x512xf32> -> vector<16x512xf32>
    %60 = arith.addf %56, %59 : vector<16x512xf32>
    %c0_63 = arith.constant 0 : index
    %c0_64 = arith.constant 0 : index
    %c0_65 = arith.constant 0 : index
    %61 = vector.load %arg6[%c0_63, %c0_64, %c0_65] : memref<1x16x512xf32, #tpu.memory_space<vmem>>, vector<1x16x512xf32>
    %62 = vector.shape_cast %61 : vector<1x16x512xf32> to vector<16x512xf32>
    %63 = vector.shape_cast %60 : vector<16x512xf32> to vector<1x16x512xf32>
    tpu.vector_store %arg6[%c0_63, %c0_64, %c0_65], %63 {strides = array<i32>} : memref<1x16x512xf32, #tpu.memory_space<vmem>>, vector<1x16x512xf32>,
    %c4 = arith.constant 4 : index
    %c0_66 = arith.constant 0 : index
    %64 = vector.load %arg7[%c4, %c0_66] : memref<20x640xbf16, #tpu.memory_space<vmem>>, vector<16x640xbf16>
    %c0_67 = arith.constant 0 : index
    %c0_68 = arith.constant 0 : index
    %c0_69 = arith.constant 0 : index
    %65 = vector.load %arg6[%c0_67, %c0_68, %c0_69] : memref<1x16x512xf32, #tpu.memory_space<vmem>>, vector<1x16x512xf32>
    %66 = vector.shape_cast %65 : vector<1x16x512xf32> to vector<16x512xf32>
    %c4_70 = arith.constant 4 : index
    %c0_71 = arith.constant 0 : index
    %c0_72 = arith.constant 0 : index
    %67 = vector.load %arg4[%c4_70, %c0_71, %c0_72] : memref<5x640x512xbf16, #tpu.memory_space<vmem>>, vector<1x640x512xbf16>
    %68 = vector.shape_cast %67 : vector<1x640x512xbf16> to vector<640x512xbf16>
    %cst_73 = arith.constant dense<0.000000e+00> : vector<16x512xf32>
    %69 = tpu.matmul %64, %68, %cst_73 {dimension_numbers = #tpu.dot_dimension_numbers<[1], [0], [0], [1], [0, 0, 1, 1], [], []>} : vector<16x640xbf16>, vector<640x512xbf16>, vector<16x512xf32> -> vector<16x512xf32>
    %70 = arith.addf %66, %69 : vector<16x512xf32>
    %c0_74 = arith.constant 0 : index
    %c0_75 = arith.constant 0 : index
    %c0_76 = arith.constant 0 : index
    %71 = vector.load %arg6[%c0_74, %c0_75, %c0_76] : memref<1x16x512xf32, #tpu.memory_space<vmem>>, vector<1x16x512xf32>
    %72 = vector.shape_cast %71 : vector<1x16x512xf32> to vector<16x512xf32>
    %73 = vector.shape_cast %70 : vector<16x512xf32> to vector<1x16x512xf32>
    tpu.vector_store %arg6[%c0_74, %c0_75, %c0_76], %73 {strides = array<i32>} : memref<1x16x512xf32, #tpu.memory_space<vmem>>, vector<1x16x512xf32>,
    %c0_77 = arith.constant 0 : index
    %c0_78 = arith.constant 0 : index
    %c0_79 = arith.constant 0 : index
    %74 = vector.load %arg6[%c0_77, %c0_78, %c0_79] : memref<1x16x512xf32, #tpu.memory_space<vmem>>, vector<1x16x512xf32>
    %75 = vector.shape_cast %74 : vector<1x16x512xf32> to vector<16x512xf32>
    %cst_80 = arith.constant 0.000000e+00 : f32
    %76 = vector.broadcast %cst_80 : f32 to vector<16x512xf32>
    %77 = arith.cmpf ogt, %75, %76 : vector<16x512xf32>
    %cst_81 = arith.constant 0.000000e+00 : f32
    %78 = vector.broadcast %cst_81 : f32 to vector<16x512xf32>
    %79 = arith.minimumf %75, %78 : vector<16x512xf32>
    %80 = math.exp %79 : vector<16x512xf32>
    %cst_82 = arith.constant 1.000000e+00 : f32
    %81 = vector.broadcast %cst_82 : f32 to vector<16x512xf32>
    %82 = arith.subf %80, %81 : vector<16x512xf32>
    %83 = arith.select %77, %75, %82 : vector<16x512xi1>, vector<16x512xf32>
    %c0_83 = arith.constant 0 : index
    %c0_84 = arith.constant 0 : index
    %c0_85 = arith.constant 0 : index
    %84 = vector.load %arg6[%c0_83, %c0_84, %c0_85] : memref<1x16x512xf32, #tpu.memory_space<vmem>>, vector<1x16x512xf32>
    %85 = vector.shape_cast %84 : vector<1x16x512xf32> to vector<16x512xf32>
    %86 = vector.shape_cast %83 : vector<16x512xf32> to vector<1x16x512xf32>
    tpu.vector_store %arg6[%c0_83, %c0_84, %c0_85], %86 {strides = array<i32>} : memref<1x16x512xf32, #tpu.memory_space<vmem>>, vector<1x16x512xf32>,
    return
  }
  func.func @transform_0(%arg0: i32) -> (i32, i32, i32) {
    %c0_i32 = arith.constant 0 : i32
    %c0_i32_0 = arith.constant 0 : i32
    %c0_i32_1 = arith.constant 0 : i32
    return %arg0, %c0_i32, %c0_i32_0 : i32, i32, i32
  }
  func.func @transform_1(%arg0: i32) -> (i32, i32) {
    %c0_i32 = arith.constant 0 : i32
    %c0_i32_0 = arith.constant 0 : i32
    %c0_i32_1 = arith.constant 0 : i32
    return %c0_i32, %c0_i32_0 : i32, i32
  }
  func.func @transform_2(%arg0: i32) -> (i32, i32) {
    %c0_i32 = arith.constant 0 : i32
    %c0_i32_0 = arith.constant 0 : i32
    %c0_i32_1 = arith.constant 0 : i32
    return %c0_i32, %c0_i32_0 : i32, i32
  }
  func.func @transform_3(%arg0: i32) -> (i32, i32, i32) {
    %c0_i32 = arith.constant 0 : i32
    %c0_i32_0 = arith.constant 0 : i32
    %c0_i32_1 = arith.constant 0 : i32
    %c0_i32_2 = arith.constant 0 : i32
    return %c0_i32, %c0_i32_0, %c0_i32_1 : i32, i32, i32
  }
  func.func @transform_4(%arg0: i32) -> (i32, i32) {
    %c0_i32 = arith.constant 0 : i32
    %c0_i32_0 = arith.constant 0 : i32
    %c0_i32_1 = arith.constant 0 : i32
    return %c0_i32, %c0_i32_0 : i32, i32
  }
  func.func @transform_5(%arg0: i32) -> (i32, i32, i32) {
    %c0_i32 = arith.constant 0 : i32
    %c0_i32_0 = arith.constant 0 : i32
    %c0_i32_1 = arith.constant 0 : i32
    return %arg0, %c0_i32, %c0_i32_0 : i32, i32, i32
  }
}

</mosaic_0001>

<llo_original>
// kernel: tpu_custom_call.1
$region0: #{tpu_custom_call.1}
  #allocation0 [shape = 'u32[]', space=smem, size = 0x4, offset = 0x4, fixed_abs, tag = 'smem constant byte address 0x4 - core index']
  #allocation1 [shape = 'u32[144,128]{1,0:T(1,128)}', space=vmem, size = 0x12000, scoped, tag = 'internal scratch']
  #allocation2 [shape = 'bf16[20,640]{1,0:T(8,128)(2,1)}', space=vmem, size = 0x7800, scoped, tag = 'scratch operand']
  %s0 = inlined_call_operand.hbm [shape: f32[2,16,512], index: 0, kind: input, shape index: {}]
  %s1 = inlined_call_operand.hbm [shape: f32[1,512], index: 1, kind: input, shape index: {}]
  %s2 = inlined_call_operand.hbm [shape: f32[1,512], index: 2, kind: input, shape index: {}]
  %s3 = inlined_call_operand.hbm [shape: bf16[5,640,512], index: 3, kind: input, shape index: {}]
  %s4 = inlined_call_operand.hbm [shape: f32[1,512], index: 4, kind: input, shape index: {}]
  %s5 = inlined_call_operand.hbm [shape: f32[2,16,512], index: 5, kind: output, shape index: {}]
  %s6 = sld [smem:[#allocation0]]
  $region73: #{tpu_custom_call.1} parent=0
    _
  %s8 = ssub.s32 1, %s6
  %s9 = scalar_select 0, %s8, %s6
  $region1: #{tpu_custom_call.1} parent=0
    #allocation3 [shape = 'u8[65536]{0}', space=vmem, size = 0x10000, scoped, tag = 'input window, operand 0']
    #allocation4 [shape = 's32[2]{0}', space=sflag, size = 0x8, scoped, tag = 'scoped memory for tpu_custom_call.1']
    #allocation5 [shape = 's32[2]{0}', space=sflag, size = 0x8, scoped, tag = 'scoped memory for tpu_custom_call.1']
    #allocation6 [shape = 'u8[2048]{0}', space=vmem, size = 0x800, scoped, tag = 'input window, operand 1, single buffered']
    #allocation7 [shape = 's32[1]{0}', space=sflag, size = 0x4, scoped, tag = 'scoped memory for tpu_custom_call.1']
    #allocation8 [shape = 'u8[2048]{0}', space=vmem, size = 0x800, scoped, tag = 'input window, operand 2, single buffered']
    #allocation9 [shape = 'u8[3276800]{0}', space=vmem, size = 0x320000, scoped, tag = 'input window, operand 3, single buffered']
    #allocation10 [shape = 's32[1]{0}', space=sflag, size = 0x4, scoped, tag = 'scoped memory for tpu_custom_call.1']
    #allocation11 [shape = 'u8[2048]{0}', space=vmem, size = 0x800, scoped, tag = 'input window, operand 4, single buffered']
    #allocation12 [shape = 'u8[65536]{0}', space=vmem, size = 0x10000, scoped, tag = 'output window, operand 0']
    %10 = vsyncpa [#allocation4], 0
    %s11 = scalar_lea.sflag [#allocation4], 1
    %12 = vsyncpa %s11, 0
    %13 = vsyncpa [#allocation7], 0
    %14 = vsyncpa [#allocation10], 0
    %15 = vsyncpa [#allocation5], 0
    %s16 = scalar_lea.sflag [#allocation5], 1
    %17 = vsyncpa %s16, 0
    loop: start=0, step=1, limit=4
    $region2: #{tpu_custom_call.1} parent=1 // loop_pre_header
      _
    $region3: #{tpu_custom_call.1} parent=1 // loop_header
      %s19 = sphi 0, %s23
      %p20 = scmp.ge.s32.totalorder %s19, 4
      %s29 = sphi 0, %s31
      %s32 = sphi 0, %s29
      %s33 = sphi 0, %s32
      %s49 = sphi 0, %s33
      %s53 = sphi 0, %s53
      %s55 = sphi 0, %s53
      %s56 = sphi 0, %s55
      %s70 = sphi 0, %s56
      %s74 = sphi 0, %s74
      %s76 = sphi 0, %s74
      %s77 = sphi 0, %s76
      %s91 = sphi 0, %s77
      %s95 = sphi 0, %s95
      %s97 = sphi 0, %s95
      %s98 = sphi 0, %s97
      %s112 = sphi 0, %s98
      %s116 = sphi 0, %s116
      %s118 = sphi 0, %s116
      %s119 = sphi 0, %s118
      %s133 = sphi 0, %s119
      %s139 = sphi 0, %s141
      %s142 = sphi 0, %s139
      %s143 = sphi 0, %s142
      %s159 = sphi 0, %s143
    $region4: #{tpu_custom_call.1} parent=1 // loop_header_branch
      %22 = sbr.rel (%p20) target = $region8
    $region5: #{tpu_custom_call.1} parent=1 // loop_body
      %s24 = ssub.s32 %s19, 1
      %s25 = ssub.s32 %s19, 2
      %s26 = sadd.s32 %s19, 1
      %s27 = ssub.s32 %s19, %s26
      %p28 = scmp.eq.s32.totalorder %s27, 0
      %s30 = sadd.s32 %s29, 1
      %s31 = scalar_select %p28, %s29, %s30
      %p34 = pneg %p28
      %p35 = scmp.eq.s32.totalorder %s19, 1
      %p36 = por %p34, %p35
      %p37 = scmp.ne.s32.totalorder %s29, %s32
      %p38 = scmp.eq.s32.totalorder %s19, 0
      %p39 = por %p37, %p38
      %p40 = scmp.ne.s32.totalorder %s29, %s32
      %p41 = scmp.eq.s32.totalorder %s24, 1
      %p42 = por %p40, %p41
      %p43 = scmp.ne.s32.totalorder %s32, %s33
      %p44 = scmp.eq.s32.totalorder %s24, 0
      %p45 = por %p43, %p44
      %p46 = scmp.ne.s32.totalorder %s32, %s33
      %p47 = scmp.eq.s32.totalorder %s25, 1
      %p48 = por %p46, %p47
      %p50 = scmp.ne.s32.totalorder %s33, %s49
      %p51 = scmp.eq.s32.totalorder %s25, 0
      %p52 = por %p50, %p51
      %s54 = sadd.s32 %s53, 1
      %p57 = scmp.eq.s32.totalorder %s19, 1
      %p58 = scmp.ne.s32.totalorder %s53, %s55
      %p59 = scmp.eq.s32.totalorder %s19, 0
      %p60 = por %p58, %p59
      %p61 = scmp.ne.s32.totalorder %s53, %s55
      %p62 = scmp.eq.s32.totalorder %s24, 1
      %p63 = por %p61, %p62
      %p64 = scmp.ne.s32.totalorder %s55, %s56
      %p65 = scmp.eq.s32.totalorder %s24, 0
      %p66 = por %p64, %p65
      %p67 = scmp.ne.s32.totalorder %s55, %s56
      %p68 = scmp.eq.s32.totalorder %s25, 1
      %p69 = por %p67, %p68
      %p71 = scmp.ne.s32.totalorder %s56, %s70
      %p72 = scmp.eq.s32.totalorder %s25, 0
      %p73 = por %p71, %p72
      %s75 = sadd.s32 %s74, 1
      %p78 = scmp.eq.s32.totalorder %s19, 1
      %p79 = scmp.ne.s32.totalorder %s74, %s76
      %p80 = scmp.eq.s32.totalorder %s19, 0
      %p81 = por %p79, %p80
      %p82 = scmp.ne.s32.totalorder %s74, %s76
      %p83 = scmp.eq.s32.totalorder %s24, 1
      %p84 = por %p82, %p83
      %p85 = scmp.ne.s32.totalorder %s76, %s77
      %p86 = scmp.eq.s32.totalorder %s24, 0
      %p87 = por %p85, %p86
      %p88 = scmp.ne.s32.totalorder %s76, %s77
      %p89 = scmp.eq.s32.totalorder %s25, 1
      %p90 = por %p88, %p89
      %p92 = scmp.ne.s32.totalorder %s77, %s91
      %p93 = scmp.eq.s32.totalorder %s25, 0
      %p94 = por %p92, %p93
      %s96 = sadd.s32 %s95, 1
      %p99 = scmp.eq.s32.totalorder %s19, 1
      %p100 = scmp.ne.s32.totalorder %s95, %s97
      %p101 = scmp.eq.s32.totalorder %s19, 0
      %p102 = por %p100, %p101
      %p103 = scmp.ne.s32.totalorder %s95, %s97
      %p104 = scmp.eq.s32.totalorder %s24, 1
      %p105 = por %p103, %p104
      %p106 = scmp.ne.s32.totalorder %s97, %s98
      %p107 = scmp.eq.s32.totalorder %s24, 0
      %p108 = por %p106, %p107
      %p109 = scmp.ne.s32.totalorder %s97, %s98
      %p110 = scmp.eq.s32.totalorder %s25, 1
      %p111 = por %p109, %p110
      %p113 = scmp.ne.s32.totalorder %s98, %s112
      %p114 = scmp.eq.s32.totalorder %s25, 0
      %p115 = por %p113, %p114
      %s117 = sadd.s32 %s116, 1
      %p120 = scmp.eq.s32.totalorder %s19, 1
      %p121 = scmp.ne.s32.totalorder %s116, %s118
      %p122 = scmp.eq.s32.totalorder %s19, 0
      %p123 = por %p121, %p122
      %p124 = scmp.ne.s32.totalorder %s116, %s118
      %p125 = scmp.eq.s32.totalorder %s24, 1
      %p126 = por %p124, %p125
      %p127 = scmp.ne.s32.totalorder %s118, %s119
      %p128 = scmp.eq.s32.totalorder %s24, 0
      %p129 = por %p127, %p128
      %p130 = scmp.ne.s32.totalorder %s118, %s119
      %p131 = scmp.eq.s32.totalorder %s25, 1
      %p132 = por %p130, %p131
      %p134 = scmp.ne.s32.totalorder %s119, %s133
      %p135 = scmp.eq.s32.totalorder %s25, 0
      %p136 = por %p134, %p135
      %s137 = ssub.s32 %s19, %s26
      %p138 = scmp.eq.s32.totalorder %s137, 0
      %s140 = sadd.s32 %s139, 1
      %s141 = scalar_select %p138, %s139, %s140
      %p144 = pneg %p138
      %p145 = scmp.eq.s32.totalorder %s19, 1
      %p146 = por %p144, %p145
      %p147 = scmp.ne.s32.totalorder %s139, %s142
      %p148 = scmp.eq.s32.totalorder %s19, 0
      %p149 = por %p147, %p148
      %p150 = scmp.ne.s32.totalorder %s139, %s142
      %p151 = scmp.eq.s32.totalorder %s24, 1
      %p152 = por %p150, %p151
      %p153 = scmp.ne.s32.totalorder %s142, %s143
      %p154 = scmp.eq.s32.totalorder %s24, 0
      %p155 = por %p153, %p154
      %p156 = scmp.ne.s32.totalorder %s142, %s143
      %p157 = scmp.eq.s32.totalorder %s25, 1
      %p158 = por %p156, %p157
      %p160 = scmp.ne.s32.totalorder %s143, %s159
      %p161 = scmp.eq.s32.totalorder %s25, 0
      %p162 = por %p160, %p161
      %p163 = scmp.le.s32.totalorder 1, %s19
      %p164 = scmp.lt.s32.totalorder %s19, 3
      %p165 = pnand %p163, %p164
      %p166 = pneg %p165
      // Predicated region
      $region9: #{tpu_custom_call.1} parent=5 // pred_check
        _
      $region10: #{tpu_custom_call.1} parent=5 // pred_check_branch
        %168 = sbr.rel (%p165) target = $region12
      $region11: #{tpu_custom_call.1} parent=5 // pred_region
        %s169 = ssub.s32 %s19, 1
        // Predicated region
        $region13: #{tpu_custom_call.1} parent=11 // pred_check
          %p170 = pneg %p66
        $region14: #{tpu_custom_call.1} parent=11 // pred_check_branch
          %172 = sbr.rel (%p170) target = $region16
        $region15: #{tpu_custom_call.1} parent=11 // pred_region
          %s174 = ssub.s32 64, 64
          %175 = vsyncadd [#allocation7], %s174
          %s177 = sshll.u32 [#allocation6], 4
          %s178 = int_to_ptr.vmem [resolvable:$true] %s177
          %180 = dma.hbm_to_vmem [thread:$0]  %s1, 64, %s178, [#allocation7]
        $region16: #{tpu_custom_call.1} parent=11 // pred_fallthru
          _
        // Predicated region
        $region17: #{tpu_custom_call.1} parent=11 // pred_check
          %p181 = pneg %p87
        $region18: #{tpu_custom_call.1} parent=11 // pred_check_branch
          %183 = sbr.rel (%p181) target = $region20
        $region19: #{tpu_custom_call.1} parent=11 // pred_region
          %s185 = ssub.s32 64, 64
          %186 = vsyncadd [#allocation7], %s185
          %s188 = sshll.u32 [#allocation8], 4
          %s189 = int_to_ptr.vmem [resolvable:$true] %s188
          %191 = dma.hbm_to_vmem [thread:$0]  %s2, 64, %s189, [#allocation7]
        $region20: #{tpu_custom_call.1} parent=11 // pred_fallthru
          _
        // Predicated region
        $region21: #{tpu_custom_call.1} parent=11 // pred_check
          %p192 = pneg %p108
        $region22: #{tpu_custom_call.1} parent=11 // pred_check_branch
          %194 = sbr.rel (%p192) target = $region24
        $region23: #{tpu_custom_call.1} parent=11 // pred_region
          %s196 = ssub.s32 102400, 102400
          %197 = vsyncadd [#allocation10], %s196
          %s198 = sshll.u32 [#allocation9], 4
          %s199 = int_to_ptr.vmem [resolvable:$true] %s198
          %204 = dma.hbm_to_vmem [thread:$0]  %s3, 102400, %s199, [#allocation10], 256, 256, 16
        $region24: #{tpu_custom_call.1} parent=11 // pred_fallthru
          _
        // Predicated region
        $region25: #{tpu_custom_call.1} parent=11 // pred_check
          %p205 = pneg %p129
        $region26: #{tpu_custom_call.1} parent=11 // pred_check_branch
          %207 = sbr.rel (%p205) target = $region28
        $region27: #{tpu_custom_call.1} parent=11 // pred_region
          %s209 = ssub.s32 64, 64
          %210 = vsyncadd [#allocation10], %s209
          %s212 = sshll.u32 [#allocation11], 4
          %s213 = int_to_ptr.vmem [resolvable:$true] %s212
          %215 = dma.hbm_to_vmem [thread:$0]  %s4, 64, %s213, [#allocation10]
        $region28: #{tpu_custom_call.1} parent=11 // pred_fallthru
          _
      $region12: #{tpu_custom_call.1} parent=5 // pred_fallthru
        _
      %p216 = scmp.lt.s32.totalorder %s19, 2
      // Predicated region
      $region29: #{tpu_custom_call.1} parent=5 // pred_check
        %p217 = pneg %p216
      $region30: #{tpu_custom_call.1} parent=5 // pred_check_branch
        %219 = sbr.rel (%p217) target = $region32
      $region31: #{tpu_custom_call.1} parent=5 // pred_region
        // Predicated region
        $region33: #{tpu_custom_call.1} parent=31 // pred_check
          %p220 = pneg %p39
        $region34: #{tpu_custom_call.1} parent=31 // pred_check_branch
          %222 = sbr.rel (%p220) target = $region36
        $region35: #{tpu_custom_call.1} parent=31 // pred_region
          %s223 = sand.u32 %s29, 1
          %s224 = scalar_lea.sflag [#allocation4], %s223
          %s225 = sand.u32 %s29, 1
          %s226 = smul.addr %s225, 64
          %s227 = scalar_lea.vmem [#allocation3], %s226
          %s229 = ssub.s32 1024, 1024
          %230 = vsyncadd %s224, %s229
          %s231 = smul.addr %s19, 8
          %s232 = smul.addr %s231, 128
          %s233 = scalar_lea.hbm %s0, %s232
          %s234 = sshll.u32 %s227, 4
          %s235 = int_to_ptr.vmem [resolvable:$true] %s234
          %240 = dma.hbm_to_vmem [thread:$0]  %s233, 1024, %s235, %s224, 512, 512, 32
        $region36: #{tpu_custom_call.1} parent=31 // pred_fallthru
          _
      $region32: #{tpu_custom_call.1} parent=5 // pred_fallthru
        _
      %p241 = scmp.le.s32.totalorder 1, %s19
      %p242 = scmp.lt.s32.totalorder %s19, 3
      %p243 = pnand %p241, %p242
      %p244 = pneg %p243
      // Predicated region
      $region37: #{tpu_custom_call.1} parent=5 // pred_check
        _
      $region38: #{tpu_custom_call.1} parent=5 // pred_check_branch
        %246 = sbr.rel (%p243) target = $region40
      $region39: #{tpu_custom_call.1} parent=5 // pred_region
        %s247 = ssub.s32 %s19, 1
        %s248 = sand.u32 %s32, 1
        %s249 = scalar_lea.sflag [#allocation4], %s248
        %s250 = sand.u32 %s32, 1
        %s251 = smul.addr %s250, 64
        %s252 = scalar_lea.vmem [#allocation3], %s251
        // Predicated region
        $region41: #{tpu_custom_call.1} parent=39 // pred_check
          %p253 = pneg %p45
        $region42: #{tpu_custom_call.1} parent=39 // pred_check_branch
          %255 = sbr.rel (%p253) target = $region44
        $region43: #{tpu_custom_call.1} parent=39 // pred_region
          %256 = dma.done %s249, 1024
        $region44: #{tpu_custom_call.1} parent=39 // pred_fallthru
          _
        // Predicated region
        $region45: #{tpu_custom_call.1} parent=39 // pred_check
          %p257 = pneg %p66
        $region46: #{tpu_custom_call.1} parent=39 // pred_check_branch
          %259 = sbr.rel (%p257) target = $region48
        $region47: #{tpu_custom_call.1} parent=39 // pred_region
          %260 = dma.done [#allocation7], 64
        $region48: #{tpu_custom_call.1} parent=39 // pred_fallthru
          _
        // Predicated region
        $region49: #{tpu_custom_call.1} parent=39 // pred_check
          %p261 = pneg %p87
        $region50: #{tpu_custom_call.1} parent=39 // pred_check_branch
          %263 = sbr.rel (%p261) target = $region52
        $region51: #{tpu_custom_call.1} parent=39 // pred_region
          %264 = dma.done [#allocation7], 64
        $region52: #{tpu_custom_call.1} parent=39 // pred_fallthru
          _
        // Predicated region
        $region53: #{tpu_custom_call.1} parent=39 // pred_check
          %p265 = pneg %p108
        $region54: #{tpu_custom_call.1} parent=39 // pred_check_branch
          %267 = sbr.rel (%p265) target = $region56
        $region55: #{tpu_custom_call.1} parent=39 // pred_region
          %268 = dma.done [#allocation10], 102400
        $region56: #{tpu_custom_call.1} parent=39 // pred_fallthru
          _
        // Predicated region
        $region57: #{tpu_custom_call.1} parent=39 // pred_check
          %p269 = pneg %p129
        $region58: #{tpu_custom_call.1} parent=39 // pred_check_branch
          %271 = sbr.rel (%p269) target = $region60
        $region59: #{tpu_custom_call.1} parent=39 // pred_region
          %272 = dma.done [#allocation10], 64
        $region60: #{tpu_custom_call.1} parent=39 // pred_fallthru
          _
        %s273 = sand.u32 %s32, 1
        %s274 = scalar_lea.sflag [#allocation4], %s273
        %s275 = sand.u32 %s32, 1
        %s276 = smul.addr %s275, 64
        %s277 = scalar_lea.vmem [#allocation3], %s276
        %p278 = pneg %p45
        %p279 = pneg %p42
        %p280 = pneg %p66
        %p281 = pneg %p63
        %p282 = pneg %p87
        %p283 = pneg %p84
        %p284 = pneg %p108
        %p285 = pneg %p105
        %p286 = pneg %p129
        %p287 = pneg %p126
        %p288 = pneg %p155
        %p289 = pneg %p152
        %s290 = sand.u32 %s142, 1
        %s291 = scalar_lea.sflag [#allocation5], %s290
        %s292 = sand.u32 %s142, 1
        %s293 = smul.addr %s292, 64
        %s294 = scalar_lea.vmem [#allocation12], %s293
        %v296 = vld [vmem:[%s252] sm:$0xff]
        %v297 = vld [vmem:[%s252 + $0x8] sm:$0xff]
        %v298 = vld [vmem:[%s252 + $0x10] sm:$0xff]
        %v299 = vld [vmem:[%s252 + $0x18] sm:$0xff]
        %v300 = vld [vmem:[%s252 + $0x20] sm:$0xff]
        %v301 = vld [vmem:[%s252 + $0x28] sm:$0xff]
        %v302 = vld [vmem:[%s252 + $0x30] sm:$0xff]
        %v303 = vld [vmem:[%s252 + $0x38] sm:$0xff]
        %v304 = vld [vmem:[#allocation6] sm:$0xf]
        %v306 = vlaneseq
        %v307 = vshrl.u32 %v306, 7
        %v308 = vsub.s32 0, %v307
        %v309 = vrot.slane %v304, %v308
        %v310 = vlaneseq
        %v311 = vshrl.u32 %v310, 7
        %v312 = vsub.s32 1, %v311
        %v313 = vrot.slane %v304, %v312
        %v314 = vlaneseq
        %v315 = vshrl.u32 %v314, 7
        %v316 = vsub.s32 2, %v315
        %v317 = vrot.slane %v304, %v316
        %v318 = vlaneseq
        %v319 = vshrl.u32 %v318, 7
        %v320 = vsub.s32 3, %v319
        %v321 = vrot.slane %v304, %v320
        %v326 = vmul.f32 %v296, %v309
        %v327 = vmul.f32 %v297, %v313
        %v328 = vmul.f32 %v298, %v317
        %v329 = vmul.f32 %v299, %v321
        %v330 = vmul.f32 %v300, %v309
        %v331 = vmul.f32 %v301, %v313
        %v332 = vmul.f32 %v302, %v317
        %v333 = vmul.f32 %v303, %v321
        %v334 = vld [vmem:[#allocation8] sm:$0xf]
        %v336 = vlaneseq
        %v337 = vshrl.u32 %v336, 7
        %v338 = vsub.s32 0, %v337
        %v339 = vrot.slane %v334, %v338
        %v340 = vlaneseq
        %v341 = vshrl.u32 %v340, 7
        %v342 = vsub.s32 1, %v341
        %v343 = vrot.slane %v334, %v342
        %v344 = vlaneseq
        %v345 = vshrl.u32 %v344, 7
        %v346 = vsub.s32 2, %v345
        %v347 = vrot.slane %v334, %v346
        %v348 = vlaneseq
        %v349 = vshrl.u32 %v348, 7
        %v350 = vsub.s32 3, %v349
        %v351 = vrot.slane %v334, %v350
        %v356 = vadd.f32 %v326, %v339
        %v357 = vadd.f32 %v327, %v343
        %v358 = vadd.f32 %v328, %v347
        %v359 = vadd.f32 %v329, %v351
        %v360 = vadd.f32 %v330, %v339
        %v361 = vadd.f32 %v331, %v343
        %v362 = vadd.f32 %v332, %v347
        %v363 = vadd.f32 %v333, %v351
        %v364 = vpack.c.bf16 %v360, %v356
        %v365 = vpack.c.bf16 %v361, %v357
        %v366 = vpack.c.bf16 %v362, %v358
        %v367 = vpack.c.bf16 %v363, %v359
        %v372 = vunpack.c.l.b16 %v364
        %v373 = vunpack.c.l.b16 %v365
        %v374 = vunpack.c.l.b16 %v366
        %v375 = vunpack.c.l.b16 %v367
        %v376 = vunpack.c.h.b16 %v364
        %v377 = vunpack.c.h.b16 %v365
        %v378 = vunpack.c.h.b16 %v366
        %v379 = vunpack.c.h.b16 %v367
        %v380 = vpack.c.b16 %v373, %v372
        %v381 = vpack.c.b16 %v375, %v374
        %v382 = vpack.c.b16 %v377, %v376
        %v383 = vpack.c.b16 %v379, %v378
        %vm384 = vcmask 1040384
        %vm385 = vcmask 1044484
        %vm386 = vmor %vm384, %vm385
        %v387 = vrot.slane %v380, 7
        %v388 = vrot.slane %v381, 7
        %v389 = vrot.slane %v387, 4
        %v390 = vrot.slane %v382, 7
        %v391 = vsel %vm386, %v389, %v390
        %v392 = vrot.slane %v388, 4
        %v393 = vrot.slane %v383, 7
        %v394 = vsel %vm386, %v392, %v393
        %v395 = vrot.slane %v390, 4
        %v396 = vrot.slane %v393, 4
        %397 = vrot.lane.b32.xlu0 %v387, 64
        %v398 = vpop.permute.xlu0 %397
        %399 = vrot.lane.b32.xlu0 %v388, 64
        %v400 = vpop.permute.xlu0 %399
        %401 = vrot.lane.b32.xlu0 %v391, 64
        %v402 = vpop.permute.xlu0 %401
        %403 = vrot.lane.b32.xlu0 %v394, 64
        %v404 = vpop.permute.xlu0 %403
        %405 = vrot.lane.b32.xlu0 %v395, 64
        %v406 = vpop.permute.xlu0 %405
        %407 = vrot.lane.b32.xlu0 %v396, 64
        %v408 = vpop.permute.xlu0 %407
        %v409 = vrot.slane %v398, 4
        %v410 = vrot.slane %v400, 4
        %v411 = vrot.slane %v402, 4
        %v412 = vrot.slane %v404, 4
        %v413 = vrot.slane %v406, 4
        %v414 = vrot.slane %v408, 4
        %vm415 = vcmask 523264
        %v416 = vsel %vm415, %v409, %v398
        %vm417 = vcmask 1043456
        %v418 = vsel %vm417, %v409, %v410
        %v419 = vsel %vm415, %v418, %v400
        %v420 = vsel %vm415, %v411, %v402
        %v421 = vsel %vm417, %v411, %v412
        %v422 = vsel %vm415, %v421, %v404
        %v423 = vsel %vm415, %v413, %v406
        %v424 = vsel %vm417, %v413, %v414
        %v425 = vsel %vm415, %v424, %v408
        %vm435 = vcmask 1043969
        %vm436 = vcmask 1047557
        %vm437 = vmor %vm436, %vm435
        %438 = vst.msk [vmem:[#allocation2] sm:$0xee] %vm437, %v416
        %439 = vst [vmem:[#allocation2 + $0x8] sm:$0xee] %v419
        %vm440 = vcmask 519169
        %441 = vst.msk [vmem:[#allocation2 + $0x10] sm:$0xe] %vm440, %v410
        %vm442 = vcmask 1043968
        %vm443 = vcmask 1047556
        %vm444 = vmor %vm443, %vm442
        %445 = vst.msk [vmem:[#allocation2 + $0x14] sm:$0xff] %vm444, %v420
        %446 = vst [vmem:[#allocation2 + $0x1c] sm:$0xff] %v422
        %vm447 = vcmask 519168
        %448 = vst.msk [vmem:[#allocation2 + $0x24] sm:$0xf] %vm447, %v412
        %vm449 = vcmask 1040896
        %vm450 = vcmask 1044484
        %vm451 = vmor %vm450, %vm449
        %452 = vst.msk [vmem:[#allocation2 + $0x28] sm:$0x11] %vm451, %v423
        %453 = vst [vmem:[#allocation2 + $0x30] sm:$0x11] %v425
        %vm454 = vcmask 516096
        %455 = vst.msk [vmem:[#allocation2 + $0x38] sm:$0x1] %vm454, %v414
        %456 = vst [vmem:[#allocation2] sm:$0x11] 0
        %457 = vst [vmem:[#allocation2 + $0x8] sm:$0x11] 0
        %458 = vst [vmem:[#allocation2 + $0x10] sm:$0x1] 0
        %459 = vst [vmem:[#allocation2 + $0x28] sm:$0x22] 0
        %460 = vst [vmem:[#allocation2 + $0x30] sm:$0x22] 0
        %461 = vst [vmem:[#allocation2 + $0x38] sm:$0x2] 0
        %462 = vst.msk [vmem:[#allocation2] sm:$0xe] %vm440, 0
        %463 = vst.msk [vmem:[#allocation2 + $0x14] sm:$0xf] %vm447, 0
        %464 = vst.msk [vmem:[#allocation2 + $0x28] sm:$0x1] %vm454, 0
        %465 = vst.msk [vmem:[#allocation2 + $0x10] sm:$0xe] %vm435, 0
        %466 = vst.msk [vmem:[#allocation2 + $0x24] sm:$0xf] %vm442, 0
        %467 = vst.msk [vmem:[#allocation2 + $0x38] sm:$0x1] %vm449, 0
        %v468 = vld [vmem:[#allocation11] sm:$0xf]
        %v470 = vlaneseq
        %v471 = vshrl.u32 %v470, 7
        %v472 = vsub.s32 0, %v471
        %v473 = vrot.slane %v468, %v472
        %v474 = vlaneseq
        %v475 = vshrl.u32 %v474, 7
        %v476 = vsub.s32 1, %v475
        %v477 = vrot.slane %v468, %v476
        %v478 = vlaneseq
        %v479 = vshrl.u32 %v478, 7
        %v480 = vsub.s32 2, %v479
        %v481 = vrot.slane %v468, %v480
        %v482 = vlaneseq
        %v483 = vshrl.u32 %v482, 7
        %v484 = vsub.s32 3, %v483
        %v485 = vrot.slane %v468, %v484
        %490 = vst [vmem:[%s294] sm:$0xff] %v473
        %491 = vst [vmem:[%s294 + $0x8] sm:$0xff] %v477
        %492 = vst [vmem:[%s294 + $0x10] sm:$0xff] %v481
        %493 = vst [vmem:[%s294 + $0x18] sm:$0xff] %v485
        %494 = vst [vmem:[%s294 + $0x20] sm:$0xff] %v473
        %495 = vst [vmem:[%s294 + $0x28] sm:$0xff] %v477
        %496 = vst [vmem:[%s294 + $0x30] sm:$0xff] %v481
        %497 = vst [vmem:[%s294 + $0x38] sm:$0xff] %v485
        %v498 = vld [vmem:[#allocation2] sm:$0xff]
        %v499 = vld [vmem:[#allocation2 + $0x8] sm:$0xff]
        %v500 = vld [vmem:[#allocation2 + $0x10] sm:$0xf]
        %v501 = vld [vmem:[#allocation2 + $0x14] sm:$0xff]
        %v502 = vld [vmem:[#allocation2 + $0x1c] sm:$0xff]
        %v503 = vld [vmem:[#allocation2 + $0x24] sm:$0xf]
        %v504 = vld [vmem:[%s294] sm:$0xff]
        %v505 = vld [vmem:[%s294 + $0x8] sm:$0xff]
        %v506 = vld [vmem:[%s294 + $0x10] sm:$0xff]
        %v507 = vld [vmem:[%s294 + $0x18] sm:$0xff]
        %v508 = vld [vmem:[%s294 + $0x20] sm:$0xff]
        %v509 = vld [vmem:[%s294 + $0x28] sm:$0xff]
        %v510 = vld [vmem:[%s294 + $0x30] sm:$0xff]
        %v511 = vld [vmem:[%s294 + $0x38] sm:$0xff]
        %v512 = vld [vmem:[#allocation9] sm:$0xff]
        %v513 = vld [vmem:[#allocation9 + $0x8] sm:$0xff]
        %v514 = vld [vmem:[#allocation9 + $0x10] sm:$0xff]
        %v515 = vld [vmem:[#allocation9 + $0x18] sm:$0xff]
        %v516 = vld [vmem:[#allocation9 + $0x20] sm:$0xff]
        %v517 = vld [vmem:[#allocation9 + $0x28] sm:$0xff]
        %v518 = vld [vmem:[#allocation9 + $0x30] sm:$0xff]
        %v519 = vld [vmem:[#allocation9 + $0x38] sm:$0xff]
        %v520 = vld [vmem:[#allocation9 + $0x40] sm:$0xff]
        %v521 = vld [vmem:[#allocation9 + $0x48] sm:$0xff]
        %v522 = vld [vmem:[#allocation9 + $0x50] sm:$0xff]
        %v523 = vld [vmem:[#allocation9 + $0x58] sm:$0xff]
        %v524 = vld [vmem:[#allocation9 + $0x60] sm:$0xff]
        %v525 = vld [vmem:[#allocation9 + $0x68] sm:$0xff]
        %v526 = vld [vmem:[#allocation9 + $0x70] sm:$0xff]
        %v527 = vld [vmem:[#allocation9 + $0x78] sm:$0xff]
        %v528 = vld [vmem:[#allocation9 + $0x80] sm:$0xff]
        %v529 = vld [vmem:[#allocation9 + $0x88] sm:$0xff]
        %v530 = vld [vmem:[#allocation9 + $0x90] sm:$0xff]
        %v531 = vld [vmem:[#allocation9 + $0x98] sm:$0xff]
        %v532 = vld [vmem:[#allocation9 + $0xa0] sm:$0xff]
        %v533 = vld [vmem:[#allocation9 + $0xa8] sm:$0xff]
        %v534 = vld [vmem:[#allocation9 + $0xb0] sm:$0xff]
        %v535 = vld [vmem:[#allocation9 + $0xb8] sm:$0xff]
        %v536 = vld [vmem:[#allocation9 + $0xc0] sm:$0xff]
        %v537 = vld [vmem:[#allocation9 + $0xc8] sm:$0xff]
        %v538 = vld [vmem:[#allocation9 + $0xd0] sm:$0xff]
        %v539 = vld [vmem:[#allocation9 + $0xd8] sm:$0xff]
        %v540 = vld [vmem:[#allocation9 + $0xe0] sm:$0xff]
        %v541 = vld [vmem:[#allocation9 + $0xe8] sm:$0xff]
        %v542 = vld [vmem:[#allocation9 + $0xf0] sm:$0xff]
        %v543 = vld [vmem:[#allocation9 + $0xf8] sm:$0xff]
        %v544 = vld [vmem:[#allocation9 + $0x100] sm:$0xff]
        %v545 = vld [vmem:[#allocation9 + $0x108] sm:$0xff]
        %v546 = vld [vmem:[#allocation9 + $0x110] sm:$0xff]
        %v547 = vld [vmem:[#allocation9 + $0x118] sm:$0xff]
        %v548 = vld [vmem:[#allocation9 + $0x120] sm:$0xff]
        %v549 = vld [vmem:[#allocation9 + $0x128] sm:$0xff]
        %v550 = vld [vmem:[#allocation9 + $0x130] sm:$0xff]
        %v551 = vld [vmem:[#allocation9 + $0x138] sm:$0xff]
        %v552 = vld [vmem:[#allocation9 + $0x140] sm:$0xff]
        %v553 = vld [vmem:[#allocation9 + $0x148] sm:$0xff]
        %v554 = vld [vmem:[#allocation9 + $0x150] sm:$0xff]
        %v555 = vld [vmem:[#allocation9 + $0x158] sm:$0xff]
        %v556 = vld [vmem:[#allocation9 + $0x160] sm:$0xff]
        %v557 = vld [vmem:[#allocation9 + $0x168] sm:$0xff]
        %v558 = vld [vmem:[#allocation9 + $0x170] sm:$0xff]
        %v559 = vld [vmem:[#allocation9 + $0x178] sm:$0xff]
        %v560 = vld [vmem:[#allocation9 + $0x180] sm:$0xff]
        %v561 = vld [vmem:[#allocation9 + $0x188] sm:$0xff]
        %v562 = vld [vmem:[#allocation9 + $0x190] sm:$0xff]
        %v563 = vld [vmem:[#allocation9 + $0x198] sm:$0xff]
        %v564 = vld [vmem:[#allocation9 + $0x1a0] sm:$0xff]
        %v565 = vld [vmem:[#allocation9 + $0x1a8] sm:$0xff]
        %v566 = vld [vmem:[#allocation9 + $0x1b0] sm:$0xff]
        %v567 = vld [vmem:[#allocation9 + $0x1b8] sm:$0xff]
        %v568 = vld [vmem:[#allocation9 + $0x1c0] sm:$0xff]
        %v569 = vld [vmem:[#allocation9 + $0x1c8] sm:$0xff]
        %v570 = vld [vmem:[#allocation9 + $0x1d0] sm:$0xff]
        %v571 = vld [vmem:[#allocation9 + $0x1d8] sm:$0xff]
        %v572 = vld [vmem:[#allocation9 + $0x1e0] sm:$0xff]
        %v573 = vld [vmem:[#allocation9 + $0x1e8] sm:$0xff]
        %v574 = vld [vmem:[#allocation9 + $0x1f0] sm:$0xff]
        %v575 = vld [vmem:[#allocation9 + $0x1f8] sm:$0xff]
        %v576 = vld [vmem:[#allocation9 + $0x200] sm:$0xff]
        %v577 = vld [vmem:[#allocation9 + $0x208] sm:$0xff]
        %v578 = vld [vmem:[#allocation9 + $0x210] sm:$0xff]
        %v579 = vld [vmem:[#allocation9 + $0x218] sm:$0xff]
        %v580 = vld [vmem:[#allocation9 + $0x220] sm:$0xff]
        %v581 = vld [vmem:[#allocation9 + $0x228] sm:$0xff]
        %v582 = vld [vmem:[#allocation9 + $0x230] sm:$0xff]
        %v583 = vld [vmem:[#allocation9 + $0x238] sm:$0xff]
        %v584 = vld [vmem:[#allocation9 + $0x240] sm:$0xff]
        %v585 = vld [vmem:[#allocation9 + $0x248] sm:$0xff]
        %v586 = vld [vmem:[#allocation9 + $0x250] sm:$0xff]
        %v587 = vld [vmem:[#allocation9 + $0x258] sm:$0xff]
        %v588 = vld [vmem:[#allocation9 + $0x260] sm:$0xff]
        %v589 = vld [vmem:[#allocation9 + $0x268] sm:$0xff]
        %v590 = vld [vmem:[#allocation9 + $0x270] sm:$0xff]
        %v591 = vld [vmem:[#allocation9 + $0x278] sm:$0xff]
        %v592 = vld [vmem:[#allocation9 + $0x280] sm:$0xff]
        %v593 = vld [vmem:[#allocation9 + $0x288] sm:$0xff]
        %v594 = vld [vmem:[#allocation9 + $0x290] sm:$0xff]
        %v595 = vld [vmem:[#allocation9 + $0x298] sm:$0xff]
        %v596 = vld [vmem:[#allocation9 + $0x2a0] sm:$0xff]
        %v597 = vld [vmem:[#allocation9 + $0x2a8] sm:$0xff]
        %v598 = vld [vmem:[#allocation9 + $0x2b0] sm:$0xff]
        %v599 = vld [vmem:[#allocation9 + $0x2b8] sm:$0xff]
        %v600 = vld [vmem:[#allocation9 + $0x2c0] sm:$0xff]
        %v601 = vld [vmem:[#allocation9 + $0x2c8] sm:$0xff]
        %v602 = vld [vmem:[#allocation9 + $0x2d0] sm:$0xff]
        %v603 = vld [vmem:[#allocation9 + $0x2d8] sm:$0xff]
        %v604 = vld [vmem:[#allocation9 + $0x2e0] sm:$0xff]
        %v605 = vld [vmem:[#allocation9 + $0x2e8] sm:$0xff]
        %v606 = vld [vmem:[#allocation9 + $0x2f0] sm:$0xff]
        %v607 = vld [vmem:[#allocation9 + $0x2f8] sm:$0xff]
        %v608 = vld [vmem:[#allocation9 + $0x300] sm:$0xff]
        %v609 = vld [vmem:[#allocation9 + $0x308] sm:$0xff]
        %v610 = vld [vmem:[#allocation9 + $0x310] sm:$0xff]
        %v611 = vld [vmem:[#allocation9 + $0x318] sm:$0xff]
        %v612 = vld [vmem:[#allocation9 + $0x320] sm:$0xff]
        %v613 = vld [vmem:[#allocation9 + $0x328] sm:$0xff]
        %v614 = vld [vmem:[#allocation9 + $0x330] sm:$0xff]
        %v615 = vld [vmem:[#allocation9 + $0x338] sm:$0xff]
        %v616 = vld [vmem:[#allocation9 + $0x340] sm:$0xff]
        %v617 = vld [vmem:[#allocation9 + $0x348] sm:$0xff]
        %v618 = vld [vmem:[#allocation9 + $0x350] sm:$0xff]
        %v619 = vld [vmem:[#allocation9 + $0x358] sm:$0xff]
        %v620 = vld [vmem:[#allocation9 + $0x360] sm:$0xff]
        %v621 = vld [vmem:[#allocation9 + $0x368] sm:$0xff]
        %v622 = vld [vmem:[#allocation9 + $0x370] sm:$0xff]
        %v623 = vld [vmem:[#allocation9 + $0x378] sm:$0xff]
        %v624 = vld [vmem:[#allocation9 + $0x380] sm:$0xff]
        %v625 = vld [vmem:[#allocation9 + $0x388] sm:$0xff]
        %v626 = vld [vmem:[#allocation9 + $0x390] sm:$0xff]
        %v627 = vld [vmem:[#allocation9 + $0x398] sm:$0xff]
        %v628 = vld [vmem:[#allocation9 + $0x3a0] sm:$0xff]
        %v629 = vld [vmem:[#allocation9 + $0x3a8] sm:$0xff]
        %v630 = vld [vmem:[#allocation9 + $0x3b0] sm:$0xff]
        %v631 = vld [vmem:[#allocation9 + $0x3b8] sm:$0xff]
        %v632 = vld [vmem:[#allocation9 + $0x3c0] sm:$0xff]
        %v633 = vld [vmem:[#allocation9 + $0x3c8] sm:$0xff]
        %v634 = vld [vmem:[#allocation9 + $0x3d0] sm:$0xff]
        %v635 = vld [vmem:[#allocation9 + $0x3d8] sm:$0xff]
        %v636 = vld [vmem:[#allocation9 + $0x3e0] sm:$0xff]
        %v637 = vld [vmem:[#allocation9 + $0x3e8] sm:$0xff]
        %v638 = vld [vmem:[#allocation9 + $0x3f0] sm:$0xff]
        %v639 = vld [vmem:[#allocation9 + $0x3f8] sm:$0xff]
        %v640 = vld [vmem:[#allocation9 + $0x400] sm:$0xff]
        %v641 = vld [vmem:[#allocation9 + $0x408] sm:$0xff]
        %v642 = vld [vmem:[#allocation9 + $0x410] sm:$0xff]
        %v643 = vld [vmem:[#allocation9 + $0x418] sm:$0xff]
        %v644 = vld [vmem:[#allocation9 + $0x420] sm:$0xff]
        %v645 = vld [vmem:[#allocation9 + $0x428] sm:$0xff]
        %v646 = vld [vmem:[#allocation9 + $0x430] sm:$0xff]
        %v647 = vld [vmem:[#allocation9 + $0x438] sm:$0xff]
        %v648 = vld [vmem:[#allocation9 + $0x440] sm:$0xff]
        %v649 = vld [vmem:[#allocation9 + $0x448] sm:$0xff]
        %v650 = vld [vmem:[#allocation9 + $0x450] sm:$0xff]
        %v651 = vld [vmem:[#allocation9 + $0x458] sm:$0xff]
        %v652 = vld [vmem:[#allocation9 + $0x460] sm:$0xff]
        %v653 = vld [vmem:[#allocation9 + $0x468] sm:$0xff]
        %v654 = vld [vmem:[#allocation9 + $0x470] sm:$0xff]
        %v655 = vld [vmem:[#allocation9 + $0x478] sm:$0xff]
        %v656 = vld [vmem:[#allocation9 + $0x480] sm:$0xff]
        %v657 = vld [vmem:[#allocation9 + $0x488] sm:$0xff]
        %v658 = vld [vmem:[#allocation9 + $0x490] sm:$0xff]
        %v659 = vld [vmem:[#allocation9 + $0x498] sm:$0xff]
        %v660 = vld [vmem:[#allocation9 + $0x4a0] sm:$0xff]
        %v661 = vld [vmem:[#allocation9 + $0x4a8] sm:$0xff]
        %v662 = vld [vmem:[#allocation9 + $0x4b0] sm:$0xff]
        %v663 = vld [vmem:[#allocation9 + $0x4b8] sm:$0xff]
        %v664 = vld [vmem:[#allocation9 + $0x4c0] sm:$0xff]
        %v665 = vld [vmem:[#allocation9 + $0x4c8] sm:$0xff]
        %v666 = vld [vmem:[#allocation9 + $0x4d0] sm:$0xff]
        %v667 = vld [vmem:[#allocation9 + $0x4d8] sm:$0xff]
        %v668 = vld [vmem:[#allocation9 + $0x4e0] sm:$0xff]
        %v669 = vld [vmem:[#allocation9 + $0x4e8] sm:$0xff]
        %v670 = vld [vmem:[#allocation9 + $0x4f0] sm:$0xff]
        %v671 = vld [vmem:[#allocation9 + $0x4f8] sm:$0xff]
        %v678 = vunpack.c.l.b16 %v498
        %v679 = vunpack.c.h.b16 %v498
        %v680 = vunpack.c.l.b16 %v499
        %v681 = vunpack.c.h.b16 %v499
        %v682 = vunpack.c.l.b16 %v500
        %v683 = vunpack.c.l.b16 %v501
        %v684 = vunpack.c.h.b16 %v501
        %v685 = vunpack.c.l.b16 %v502
        %v686 = vunpack.c.h.b16 %v502
        %v687 = vunpack.c.l.b16 %v503
        %v688 = vpack.c.b16 %v683, %v678
        %v689 = vpack.c.b16 %v684, %v679
        %v690 = vpack.c.b16 %v685, %v680
        %v691 = vpack.c.b16 %v686, %v681
        %v692 = vpack.c.b16 %v687, %v682
        %v858 = vunpack.c.l.b16 %v512
        %v859 = vunpack.c.h.b16 %v512
        %v860 = vunpack.c.l.b16 %v513
        %v861 = vunpack.c.h.b16 %v513
        %v862 = vunpack.c.l.b16 %v514
        %v863 = vunpack.c.h.b16 %v514
        %v864 = vunpack.c.l.b16 %v515
        %v865 = vunpack.c.h.b16 %v515
        %v866 = vunpack.c.l.b16 %v516
        %v867 = vunpack.c.h.b16 %v516
        %v868 = vunpack.c.l.b16 %v517
        %v869 = vunpack.c.h.b16 %v517
        %v870 = vunpack.c.l.b16 %v518
        %v871 = vunpack.c.h.b16 %v518
        %v872 = vunpack.c.l.b16 %v519
        %v873 = vunpack.c.h.b16 %v519
        %v874 = vunpack.c.l.b16 %v520
        %v875 = vunpack.c.h.b16 %v520
        %v876 = vunpack.c.l.b16 %v521
        %v877 = vunpack.c.h.b16 %v521
        %v878 = vunpack.c.l.b16 %v522
        %v879 = vunpack.c.h.b16 %v522
        %v880 = vunpack.c.l.b16 %v523
        %v881 = vunpack.c.h.b16 %v523
        %v882 = vunpack.c.l.b16 %v524
        %v883 = vunpack.c.h.b16 %v524
        %v884 = vunpack.c.l.b16 %v525
        %v885 = vunpack.c.h.b16 %v525
        %v886 = vunpack.c.l.b16 %v526
        %v887 = vunpack.c.h.b16 %v526
        %v888 = vunpack.c.l.b16 %v527
        %v889 = vunpack.c.h.b16 %v527
        %v890 = vunpack.c.l.b16 %v528
        %v891 = vunpack.c.h.b16 %v528
        %v892 = vunpack.c.l.b16 %v529
        %v893 = vunpack.c.h.b16 %v529
        %v894 = vunpack.c.l.b16 %v530
        %v895 = vunpack.c.h.b16 %v530
        %v896 = vunpack.c.l.b16 %v531
        %v897 = vunpack.c.h.b16 %v531
        %v898 = vunpack.c.l.b16 %v532
        %v899 = vunpack.c.h.b16 %v532
        %v900 = vunpack.c.l.b16 %v533
        %v901 = vunpack.c.h.b16 %v533
        %v902 = vunpack.c.l.b16 %v534
        %v903 = vunpack.c.h.b16 %v534
        %v904 = vunpack.c.l.b16 %v535
        %v905 = vunpack.c.h.b16 %v535
        %v906 = vunpack.c.l.b16 %v536
        %v907 = vunpack.c.h.b16 %v536
        %v908 = vunpack.c.l.b16 %v537
        %v909 = vunpack.c.h.b16 %v537
        %v910 = vunpack.c.l.b16 %v538
        %v911 = vunpack.c.h.b16 %v538
        %v912 = vunpack.c.l.b16 %v539
        %v913 = vunpack.c.h.b16 %v539
        %v914 = vunpack.c.l.b16 %v540
        %v915 = vunpack.c.h.b16 %v540
        %v916 = vunpack.c.l.b16 %v541
        %v917 = vunpack.c.h.b16 %v541
        %v918 = vunpack.c.l.b16 %v542
        %v919 = vunpack.c.h.b16 %v542
        %v920 = vunpack.c.l.b16 %v543
        %v921 = vunpack.c.h.b16 %v543
        %v922 = vunpack.c.l.b16 %v544
        %v923 = vunpack.c.h.b16 %v544
        %v924 = vunpack.c.l.b16 %v545
        %v925 = vunpack.c.h.b16 %v545
        %v926 = vunpack.c.l.b16 %v546
        %v927 = vunpack.c.h.b16 %v546
        %v928 = vunpack.c.l.b16 %v547
        %v929 = vunpack.c.h.b16 %v547
        %v930 = vunpack.c.l.b16 %v548
        %v931 = vunpack.c.h.b16 %v548
        %v932 = vunpack.c.l.b16 %v549
        %v933 = vunpack.c.h.b16 %v549
        %v934 = vunpack.c.l.b16 %v550
        %v935 = vunpack.c.h.b16 %v550
        %v936 = vunpack.c.l.b16 %v551
        %v937 = vunpack.c.h.b16 %v551
        %v938 = vunpack.c.l.b16 %v552
        %v939 = vunpack.c.h.b16 %v552
        %v940 = vunpack.c.l.b16 %v553
        %v941 = vunpack.c.h.b16 %v553
        %v942 = vunpack.c.l.b16 %v554
        %v943 = vunpack.c.h.b16 %v554
        %v944 = vunpack.c.l.b16 %v555
        %v945 = vunpack.c.h.b16 %v555
        %v946 = vunpack.c.l.b16 %v556
        %v947 = vunpack.c.h.b16 %v556
        %v948 = vunpack.c.l.b16 %v557
        %v949 = vunpack.c.h.b16 %v557
        %v950 = vunpack.c.l.b16 %v558
        %v951 = vunpack.c.h.b16 %v558
        %v952 = vunpack.c.l.b16 %v559
        %v953 = vunpack.c.h.b16 %v559
        %v954 = vunpack.c.l.b16 %v560
        %v955 = vunpack.c.h.b16 %v560
        %v956 = vunpack.c.l.b16 %v561
        %v957 = vunpack.c.h.b16 %v561
        %v958 = vunpack.c.l.b16 %v562
        %v959 = vunpack.c.h.b16 %v562
        %v960 = vunpack.c.l.b16 %v563
        %v961 = vunpack.c.h.b16 %v563
        %v962 = vunpack.c.l.b16 %v564
        %v963 = vunpack.c.h.b16 %v564
        %v964 = vunpack.c.l.b16 %v565
        %v965 = vunpack.c.h.b16 %v565
        %v966 = vunpack.c.l.b16 %v566
        %v967 = vunpack.c.h.b16 %v566
        %v968 = vunpack.c.l.b16 %v567
        %v969 = vunpack.c.h.b16 %v567
        %v970 = vunpack.c.l.b16 %v568
        %v971 = vunpack.c.h.b16 %v568
        %v972 = vunpack.c.l.b16 %v569
        %v973 = vunpack.c.h.b16 %v569
        %v974 = vunpack.c.l.b16 %v570
        %v975 = vunpack.c.h.b16 %v570
        %v976 = vunpack.c.l.b16 %v571
        %v977 = vunpack.c.h.b16 %v571
        %v978 = vunpack.c.l.b16 %v572
        %v979 = vunpack.c.h.b16 %v572
        %v980 = vunpack.c.l.b16 %v573
        %v981 = vunpack.c.h.b16 %v573
        %v982 = vunpack.c.l.b16 %v574
        %v983 = vunpack.c.h.b16 %v574
        %v984 = vunpack.c.l.b16 %v575
        %v985 = vunpack.c.h.b16 %v575
        %v986 = vunpack.c.l.b16 %v576
        %v987 = vunpack.c.h.b16 %v576
        %v988 = vunpack.c.l.b16 %v577
        %v989 = vunpack.c.h.b16 %v577
        %v990 = vunpack.c.l.b16 %v578
        %v991 = vunpack.c.h.b16 %v578
        %v992 = vunpack.c.l.b16 %v579
        %v993 = vunpack.c.h.b16 %v579
        %v994 = vunpack.c.l.b16 %v580
        %v995 = vunpack.c.h.b16 %v580
        %v996 = vunpack.c.l.b16 %v581
        %v997 = vunpack.c.h.b16 %v581
        %v998 = vunpack.c.l.b16 %v582
        %v999 = vunpack.c.h.b16 %v582
        %v1000 = vunpack.c.l.b16 %v583
        %v1001 = vunpack.c.h.b16 %v583
        %v1002 = vunpack.c.l.b16 %v584
        %v1003 = vunpack.c.h.b16 %v584
        %v1004 = vunpack.c.l.b16 %v585
        %v1005 = vunpack.c.h.b16 %v585
        %v1006 = vunpack.c.l.b16 %v586
        %v1007 = vunpack.c.h.b16 %v586
        %v1008 = vunpack.c.l.b16 %v587
        %v1009 = vunpack.c.h.b16 %v587
        %v1010 = vunpack.c.l.b16 %v588
        %v1011 = vunpack.c.h.b16 %v588
        %v1012 = vunpack.c.l.b16 %v589
        %v1013 = vunpack.c.h.b16 %v589
        %v1014 = vunpack.c.l.b16 %v590
        %v1015 = vunpack.c.h.b16 %v590
        %v1016 = vunpack.c.l.b16 %v591
        %v1017 = vunpack.c.h.b16 %v591
        %v1018 = vunpack.c.l.b16 %v592
        %v1019 = vunpack.c.h.b16 %v592
        %v1020 = vunpack.c.l.b16 %v593
        %v1021 = vunpack.c.h.b16 %v593
        %v1022 = vunpack.c.l.b16 %v594
        %v1023 = vunpack.c.h.b16 %v594
        %v1024 = vunpack.c.l.b16 %v595
        %v1025 = vunpack.c.h.b16 %v595
        %v1026 = vunpack.c.l.b16 %v596
        %v1027 = vunpack.c.h.b16 %v596
        %v1028 = vunpack.c.l.b16 %v597
        %v1029 = vunpack.c.h.b16 %v597
        %v1030 = vunpack.c.l.b16 %v598
        %v1031 = vunpack.c.h.b16 %v598
        %v1032 = vunpack.c.l.b16 %v599
        %v1033 = vunpack.c.h.b16 %v599
        %v1034 = vunpack.c.l.b16 %v600
        %v1035 = vunpack.c.h.b16 %v600
        %v1036 = vunpack.c.l.b16 %v601
        %v1037 = vunpack.c.h.b16 %v601
        %v1038 = vunpack.c.l.b16 %v602
        %v1039 = vunpack.c.h.b16 %v602
        %v1040 = vunpack.c.l.b16 %v603
        %v1041 = vunpack.c.h.b16 %v603
        %v1042 = vunpack.c.l.b16 %v604
        %v1043 = vunpack.c.h.b16 %v604
        %v1044 = vunpack.c.l.b16 %v605
        %v1045 = vunpack.c.h.b16 %v605
        %v1046 = vunpack.c.l.b16 %v606
        %v1047 = vunpack.c.h.b16 %v606
        %v1048 = vunpack.c.l.b16 %v607
        %v1049 = vunpack.c.h.b16 %v607
        %v1050 = vunpack.c.l.b16 %v608
        %v1051 = vunpack.c.h.b16 %v608
        %v1052 = vunpack.c.l.b16 %v609
        %v1053 = vunpack.c.h.b16 %v609
        %v1054 = vunpack.c.l.b16 %v610
        %v1055 = vunpack.c.h.b16 %v610
        %v1056 = vunpack.c.l.b16 %v611
        %v1057 = vunpack.c.h.b16 %v611
        %v1058 = vunpack.c.l.b16 %v612
        %v1059 = vunpack.c.h.b16 %v612
        %v1060 = vunpack.c.l.b16 %v613
        %v1061 = vunpack.c.h.b16 %v613
        %v1062 = vunpack.c.l.b16 %v614
        %v1063 = vunpack.c.h.b16 %v614
        %v1064 = vunpack.c.l.b16 %v615
        %v1065 = vunpack.c.h.b16 %v615
        %v1066 = vunpack.c.l.b16 %v616
        %v1067 = vunpack.c.h.b16 %v616
        %v1068 = vunpack.c.l.b16 %v617
        %v1069 = vunpack.c.h.b16 %v617
        %v1070 = vunpack.c.l.b16 %v618
        %v1071 = vunpack.c.h.b16 %v618
        %v1072 = vunpack.c.l.b16 %v619
        %v1073 = vunpack.c.h.b16 %v619
        %v1074 = vunpack.c.l.b16 %v620
        %v1075 = vunpack.c.h.b16 %v620
        %v1076 = vunpack.c.l.b16 %v621
        %v1077 = vunpack.c.h.b16 %v621
        %v1078 = vunpack.c.l.b16 %v622
        %v1079 = vunpack.c.h.b16 %v622
        %v1080 = vunpack.c.l.b16 %v623
        %v1081 = vunpack.c.h.b16 %v623
        %v1082 = vunpack.c.l.b16 %v624
        %v1083 = vunpack.c.h.b16 %v624
        %v1084 = vunpack.c.l.b16 %v625
        %v1085 = vunpack.c.h.b16 %v625
        %v1086 = vunpack.c.l.b16 %v626
        %v1087 = vunpack.c.h.b16 %v626
        %v1088 = vunpack.c.l.b16 %v627
        %v1089 = vunpack.c.h.b16 %v627
        %v1090 = vunpack.c.l.b16 %v628
        %v1091 = vunpack.c.h.b16 %v628
        %v1092 = vunpack.c.l.b16 %v629
        %v1093 = vunpack.c.h.b16 %v629
        %v1094 = vunpack.c.l.b16 %v630
        %v1095 = vunpack.c.h.b16 %v630
        %v1096 = vunpack.c.l.b16 %v631
        %v1097 = vunpack.c.h.b16 %v631
        %v1098 = vunpack.c.l.b16 %v632
        %v1099 = vunpack.c.h.b16 %v632
        %v1100 = vunpack.c.l.b16 %v633
        %v1101 = vunpack.c.h.b16 %v633
        %v1102 = vunpack.c.l.b16 %v634
        %v1103 = vunpack.c.h.b16 %v634
        %v1104 = vunpack.c.l.b16 %v635
        %v1105 = vunpack.c.h.b16 %v635
        %v1106 = vunpack.c.l.b16 %v636
        %v1107 = vunpack.c.h.b16 %v636
        %v1108 = vunpack.c.l.b16 %v637
        %v1109 = vunpack.c.h.b16 %v637
        %v1110 = vunpack.c.l.b16 %v638
        %v1111 = vunpack.c.h.b16 %v638
        %v1112 = vunpack.c.l.b16 %v639
        %v1113 = vunpack.c.h.b16 %v639
        %v1114 = vunpack.c.l.b16 %v640
        %v1115 = vunpack.c.h.b16 %v640
        %v1116 = vunpack.c.l.b16 %v641
        %v1117 = vunpack.c.h.b16 %v641
        %v1118 = vunpack.c.l.b16 %v642
        %v1119 = vunpack.c.h.b16 %v642
        %v1120 = vunpack.c.l.b16 %v643
        %v1121 = vunpack.c.h.b16 %v643
        %v1122 = vunpack.c.l.b16 %v644
        %v1123 = vunpack.c.h.b16 %v644
        %v1124 = vunpack.c.l.b16 %v645
        %v1125 = vunpack.c.h.b16 %v645
        %v1126 = vunpack.c.l.b16 %v646
        %v1127 = vunpack.c.h.b16 %v646
        %v1128 = vunpack.c.l.b16 %v647
        %v1129 = vunpack.c.h.b16 %v647
        %v1130 = vunpack.c.l.b16 %v648
        %v1131 = vunpack.c.h.b16 %v648
        %v1132 = vunpack.c.l.b16 %v649
        %v1133 = vunpack.c.h.b16 %v649
        %v1134 = vunpack.c.l.b16 %v650
        %v1135 = vunpack.c.h.b16 %v650
        %v1136 = vunpack.c.l.b16 %v651
        %v1137 = vunpack.c.h.b16 %v651
        %v1138 = vunpack.c.l.b16 %v652
        %v1139 = vunpack.c.h.b16 %v652
        %v1140 = vunpack.c.l.b16 %v653
        %v1141 = vunpack.c.h.b16 %v653
        %v1142 = vunpack.c.l.b16 %v654
        %v1143 = vunpack.c.h.b16 %v654
        %v1144 = vunpack.c.l.b16 %v655
        %v1145 = vunpack.c.h.b16 %v655
        %v1146 = vunpack.c.l.b16 %v656
        %v1147 = vunpack.c.h.b16 %v656
        %v1148 = vunpack.c.l.b16 %v657
        %v1149 = vunpack.c.h.b16 %v657
        %v1150 = vunpack.c.l.b16 %v658
        %v1151 = vunpack.c.h.b16 %v658
        %v1152 = vunpack.c.l.b16 %v659
        %v1153 = vunpack.c.h.b16 %v659
        %v1154 = vunpack.c.l.b16 %v660
        %v1155 = vunpack.c.h.b16 %v660
        %v1156 = vunpack.c.l.b16 %v661
        %v1157 = vunpack.c.h.b16 %v661
        %v1158 = vunpack.c.l.b16 %v662
        %v1159 = vunpack.c.h.b16 %v662
        %v1160 = vunpack.c.l.b16 %v663
        %v1161 = vunpack.c.h.b16 %v663
        %v1162 = vunpack.c.l.b16 %v664
        %v1163 = vunpack.c.h.b16 %v664
        %v1164 = vunpack.c.l.b16 %v665
        %v1165 = vunpack.c.h.b16 %v665
        %v1166 = vunpack.c.l.b16 %v666
        %v1167 = vunpack.c.h.b16 %v666
        %v1168 = vunpack.c.l.b16 %v667
        %v1169 = vunpack.c.h.b16 %v667
        %v1170 = vunpack.c.l.b16 %v668
        %v1171 = vunpack.c.h.b16 %v668
        %v1172 = vunpack.c.l.b16 %v669
        %v1173 = vunpack.c.h.b16 %v669
        %v1174 = vunpack.c.l.b16 %v670
        %v1175 = vunpack.c.h.b16 %v670
        %v1176 = vunpack.c.l.b16 %v671
        %v1177 = vunpack.c.h.b16 %v671
        %v1178 = vpack.c.b16 %v862, %v858
        %v1179 = vpack.c.b16 %v863, %v859
        %v1180 = vpack.c.b16 %v864, %v860
        %v1181 = vpack.c.b16 %v865, %v861
        %v1182 = vpack.c.b16 %v870, %v866
        %v1183 = vpack.c.b16 %v871, %v867
        %v1184 = vpack.c.b16 %v872, %v868
        %v1185 = vpack.c.b16 %v873, %v869
        %v1186 = vpack.c.b16 %v878, %v874
        %v1187 = vpack.c.b16 %v879, %v875
        %v1188 = vpack.c.b16 %v880, %v876
        %v1189 = vpack.c.b16 %v881, %v877
        %v1190 = vpack.c.b16 %v886, %v882
        %v1191 = vpack.c.b16 %v887, %v883
        %v1192 = vpack.c.b16 %v888, %v884
        %v1193 = vpack.c.b16 %v889, %v885
        %v1194 = vpack.c.b16 %v894, %v890
        %v1195 = vpack.c.b16 %v895, %v891
        %v1196 = vpack.c.b16 %v896, %v892
        %v1197 = vpack.c.b16 %v897, %v893
        %v1198 = vpack.c.b16 %v902, %v898
        %v1199 = vpack.c.b16 %v903, %v899
        %v1200 = vpack.c.b16 %v904, %v900
        %v1201 = vpack.c.b16 %v905, %v901
        %v1202 = vpack.c.b16 %v910, %v906
        %v1203 = vpack.c.b16 %v911, %v907
        %v1204 = vpack.c.b16 %v912, %v908
        %v1205 = vpack.c.b16 %v913, %v909
        %v1206 = vpack.c.b16 %v918, %v914
        %v1207 = vpack.c.b16 %v919, %v915
        %v1208 = vpack.c.b16 %v920, %v916
        %v1209 = vpack.c.b16 %v921, %v917
        %v1210 = vpack.c.b16 %v926, %v922
        %v1211 = vpack.c.b16 %v927, %v923
        %v1212 = vpack.c.b16 %v928, %v924
        %v1213 = vpack.c.b16 %v929, %v925
        %v1214 = vpack.c.b16 %v934, %v930
        %v1215 = vpack.c.b16 %v935, %v931
        %v1216 = vpack.c.b16 %v936, %v932
        %v1217 = vpack.c.b16 %v937, %v933
        %v1218 = vpack.c.b16 %v942, %v938
        %v1219 = vpack.c.b16 %v943, %v939
        %v1220 = vpack.c.b16 %v944, %v940
        %v1221 = vpack.c.b16 %v945, %v941
        %v1222 = vpack.c.b16 %v950, %v946
        %v1223 = vpack.c.b16 %v951, %v947
        %v1224 = vpack.c.b16 %v952, %v948
        %v1225 = vpack.c.b16 %v953, %v949
        %v1226 = vpack.c.b16 %v958, %v954
        %v1227 = vpack.c.b16 %v959, %v955
        %v1228 = vpack.c.b16 %v960, %v956
        %v1229 = vpack.c.b16 %v961, %v957
        %v1230 = vpack.c.b16 %v966, %v962
        %v1231 = vpack.c.b16 %v967, %v963
        %v1232 = vpack.c.b16 %v968, %v964
        %v1233 = vpack.c.b16 %v969, %v965
        %v1234 = vpack.c.b16 %v974, %v970
        %v1235 = vpack.c.b16 %v975, %v971
        %v1236 = vpack.c.b16 %v976, %v972
        %v1237 = vpack.c.b16 %v977, %v973
        %v1238 = vpack.c.b16 %v982, %v978
        %v1239 = vpack.c.b16 %v983, %v979
        %v1240 = vpack.c.b16 %v984, %v980
        %v1241 = vpack.c.b16 %v985, %v981
        %v1242 = vpack.c.b16 %v990, %v986
        %v1243 = vpack.c.b16 %v991, %v987
        %v1244 = vpack.c.b16 %v992, %v988
        %v1245 = vpack.c.b16 %v993, %v989
        %v1246 = vpack.c.b16 %v998, %v994
        %v1247 = vpack.c.b16 %v999, %v995
        %v1248 = vpack.c.b16 %v1000, %v996
        %v1249 = vpack.c.b16 %v1001, %v997
        %v1250 = vpack.c.b16 %v1006, %v1002
        %v1251 = vpack.c.b16 %v1007, %v1003
        %v1252 = vpack.c.b16 %v1008, %v1004
        %v1253 = vpack.c.b16 %v1009, %v1005
        %v1254 = vpack.c.b16 %v1014, %v1010
        %v1255 = vpack.c.b16 %v1015, %v1011
        %v1256 = vpack.c.b16 %v1016, %v1012
        %v1257 = vpack.c.b16 %v1017, %v1013
        %v1258 = vpack.c.b16 %v1022, %v1018
        %v1259 = vpack.c.b16 %v1023, %v1019
        %v1260 = vpack.c.b16 %v1024, %v1020
        %v1261 = vpack.c.b16 %v1025, %v1021
        %v1262 = vpack.c.b16 %v1030, %v1026
        %v1263 = vpack.c.b16 %v1031, %v1027
        %v1264 = vpack.c.b16 %v1032, %v1028
        %v1265 = vpack.c.b16 %v1033, %v1029
        %v1266 = vpack.c.b16 %v1038, %v1034
        %v1267 = vpack.c.b16 %v1039, %v1035
        %v1268 = vpack.c.b16 %v1040, %v1036
        %v1269 = vpack.c.b16 %v1041, %v1037
        %v1270 = vpack.c.b16 %v1046, %v1042
        %v1271 = vpack.c.b16 %v1047, %v1043
        %v1272 = vpack.c.b16 %v1048, %v1044
        %v1273 = vpack.c.b16 %v1049, %v1045
        %v1274 = vpack.c.b16 %v1054, %v1050
        %v1275 = vpack.c.b16 %v1055, %v1051
        %v1276 = vpack.c.b16 %v1056, %v1052
        %v1277 = vpack.c.b16 %v1057, %v1053
        %v1278 = vpack.c.b16 %v1062, %v1058
        %v1279 = vpack.c.b16 %v1063, %v1059
        %v1280 = vpack.c.b16 %v1064, %v1060
        %v1281 = vpack.c.b16 %v1065, %v1061
        %v1282 = vpack.c.b16 %v1070, %v1066
        %v1283 = vpack.c.b16 %v1071, %v1067
        %v1284 = vpack.c.b16 %v1072, %v1068
        %v1285 = vpack.c.b16 %v1073, %v1069
        %v1286 = vpack.c.b16 %v1078, %v1074
        %v1287 = vpack.c.b16 %v1079, %v1075
        %v1288 = vpack.c.b16 %v1080, %v1076
        %v1289 = vpack.c.b16 %v1081, %v1077
        %v1290 = vpack.c.b16 %v1086, %v1082
        %v1291 = vpack.c.b16 %v1087, %v1083
        %v1292 = vpack.c.b16 %v1088, %v1084
        %v1293 = vpack.c.b16 %v1089, %v1085
        %v1294 = vpack.c.b16 %v1094, %v1090
        %v1295 = vpack.c.b16 %v1095, %v1091
        %v1296 = vpack.c.b16 %v1096, %v1092
        %v1297 = vpack.c.b16 %v1097, %v1093
        %v1298 = vpack.c.b16 %v1102, %v1098
        %v1299 = vpack.c.b16 %v1103, %v1099
        %v1300 = vpack.c.b16 %v1104, %v1100
        %v1301 = vpack.c.b16 %v1105, %v1101
        %v1302 = vpack.c.b16 %v1110, %v1106
        %v1303 = vpack.c.b16 %v1111, %v1107
        %v1304 = vpack.c.b16 %v1112, %v1108
        %v1305 = vpack.c.b16 %v1113, %v1109
        %v1306 = vpack.c.b16 %v1118, %v1114
        %v1307 = vpack.c.b16 %v1119, %v1115
        %v1308 = vpack.c.b16 %v1120, %v1116
        %v1309 = vpack.c.b16 %v1121, %v1117
        %v1310 = vpack.c.b16 %v1126, %v1122
        %v1311 = vpack.c.b16 %v1127, %v1123
        %v1312 = vpack.c.b16 %v1128, %v1124
        %v1313 = vpack.c.b16 %v1129, %v1125
        %v1314 = vpack.c.b16 %v1134, %v1130
        %v1315 = vpack.c.b16 %v1135, %v1131
        %v1316 = vpack.c.b16 %v1136, %v1132
        %v1317 = vpack.c.b16 %v1137, %v1133
        %v1318 = vpack.c.b16 %v1142, %v1138
        %v1319 = vpack.c.b16 %v1143, %v1139
        %v1320 = vpack.c.b16 %v1144, %v1140
        %v1321 = vpack.c.b16 %v1145, %v1141
        %v1322 = vpack.c.b16 %v1150, %v1146
        %v1323 = vpack.c.b16 %v1151, %v1147
        %v1324 = vpack.c.b16 %v1152, %v1148
        %v1325 = vpack.c.b16 %v1153, %v1149
        %v1326 = vpack.c.b16 %v1158, %v1154
        %v1327 = vpack.c.b16 %v1159, %v1155
        %v1328 = vpack.c.b16 %v1160, %v1156
        %v1329 = vpack.c.b16 %v1161, %v1157
        %v1330 = vpack.c.b16 %v1166, %v1162
        %v1331 = vpack.c.b16 %v1167, %v1163
        %v1332 = vpack.c.b16 %v1168, %v1164
        %v1333 = vpack.c.b16 %v1169, %v1165
        %v1334 = vpack.c.b16 %v1174, %v1170
        %v1335 = vpack.c.b16 %v1175, %v1171
        %v1336 = vpack.c.b16 %v1176, %v1172
        %v1337 = vpack.c.b16 %v1177, %v1173
        %1498 = vmatprep.subr.bf16.mxu0 %v1179
        %1499 = vmatpush1.bf16.msra.mxu0 %v1178
        %1500 = vmatprep.subr.bf16.mxu0 %v1183
        %1501 = vmatpush1.bf16.msra.mxu0 %v1182
        %1502 = vmatprep.subr.bf16.mxu0 %v1187
        %1503 = vmatpush1.bf16.msra.mxu0 %v1186
        %1504 = vmatprep.subr.bf16.mxu0 %v1191
        %1505 = vmatpush1.bf16.msra.mxu0 %v1190
        %1506 = vmatprep.subr.bf16.mxu0 %v1195
        %1507 = vmatpush1.bf16.msra.mxu0 %v1194
        %1508 = vmatprep.subr.bf16.mxu0 %v1199
        %1509 = vmatpush1.bf16.msra.mxu0 %v1198
        %1510 = vmatprep.subr.bf16.mxu0 %v1203
        %1511 = vmatpush1.bf16.msra.mxu0 %v1202
        %1512 = vmatprep.subr.bf16.mxu0 %v1207
        %1513 = vmatpush1.bf16.msra.mxu0 %v1206
        %1514 = vmatprep.subr.bf16.mxu0 %v1211
        %1515 = vmatpush1.bf16.msra.mxu0 %v1210
        %1516 = vmatprep.subr.bf16.mxu0 %v1215
        %1517 = vmatpush1.bf16.msra.mxu0 %v1214
        %1518 = vmatprep.subr.bf16.mxu0 %v1219
        %1519 = vmatpush1.bf16.msra.mxu0 %v1218
        %1520 = vmatprep.subr.bf16.mxu0 %v1223
        %1521 = vmatpush1.bf16.msra.mxu0 %v1222
        %1522 = vmatprep.subr.bf16.mxu0 %v1227
        %1523 = vmatpush1.bf16.msra.mxu0 %v1226
        %1524 = vmatprep.subr.bf16.mxu0 %v1231
        %1525 = vmatpush1.bf16.msra.mxu0 %v1230
        %1526 = vmatprep.subr.bf16.mxu0 %v1235
        %1527 = vmatpush1.bf16.msra.mxu0 %v1234
        %1528 = vmatprep.subr.bf16.mxu0 %v1239
        %1529 = vmatpush1.bf16.msra.mxu0 %v1238
        %1530 = vmatprep.mubr.bf16.mxu0 %v689
        %1531 = vmatmul.mubr.bf16.gmra.mrb[0].mxu0 %v688
        %v1532 = vpop.f32.mrb[0].mxu0
        %v1533 = vadd.f32 0.0, %v1532
        %v1534 = vpop.f32.mrb[0].mxu0
        %v1535 = vadd.f32 0.0, %v1534
        %v1536 = vpop.f32.mrb[0].mxu0
        %v1537 = vadd.f32 0.0, %v1536
        %v1538 = vpop.f32.mrb[0].mxu0
        %v1539 = vadd.f32 0.0, %v1538
        %1540 = vdwg.mxu0
        %1541 = vmatprep.subr.bf16.mxu0 %v1243
        %1542 = vmatpush1.bf16.msra.mxu0 %v1242
        %1543 = vmatprep.subr.bf16.mxu0 %v1247
        %1544 = vmatpush1.bf16.msra.mxu0 %v1246
        %1545 = vmatprep.subr.bf16.mxu0 %v1251
        %1546 = vmatpush1.bf16.msra.mxu0 %v1250
        %1547 = vmatprep.subr.bf16.mxu0 %v1255
        %1548 = vmatpush1.bf16.msra.mxu0 %v1254
        %1549 = vmatprep.subr.bf16.mxu0 %v1259
        %1550 = vmatpush1.bf16.msra.mxu0 %v1258
        %1551 = vmatprep.subr.bf16.mxu0 %v1263
        %1552 = vmatpush1.bf16.msra.mxu0 %v1262
        %1553 = vmatprep.subr.bf16.mxu0 %v1267
        %1554 = vmatpush1.bf16.msra.mxu0 %v1266
        %1555 = vmatprep.subr.bf16.mxu0 %v1271
        %1556 = vmatpush1.bf16.msra.mxu0 %v1270
        %1557 = vmatprep.subr.bf16.mxu0 %v1275
        %1558 = vmatpush1.bf16.msra.mxu0 %v1274
        %1559 = vmatprep.subr.bf16.mxu0 %v1279
        %1560 = vmatpush1.bf16.msra.mxu0 %v1278
        %1561 = vmatprep.subr.bf16.mxu0 %v1283
        %1562 = vmatpush1.bf16.msra.mxu0 %v1282
        %1563 = vmatprep.subr.bf16.mxu0 %v1287
        %1564 = vmatpush1.bf16.msra.mxu0 %v1286
        %1565 = vmatprep.subr.bf16.mxu0 %v1291
        %1566 = vmatpush1.bf16.msra.mxu0 %v1290
        %1567 = vmatprep.subr.bf16.mxu0 %v1295
        %1568 = vmatpush1.bf16.msra.mxu0 %v1294
        %1569 = vmatprep.subr.bf16.mxu0 %v1299
        %1570 = vmatpush1.bf16.msra.mxu0 %v1298
        %1571 = vmatprep.subr.bf16.mxu0 %v1303
        %1572 = vmatpush1.bf16.msra.mxu0 %v1302
        %1573 = vmatprep.mubr.bf16.mxu0 %v691
        %1574 = vmatmul.mubr.bf16.gmra.mrb[0].mxu0 %v690
        %v1575 = vpop.f32.mrb[0].mxu0
        %v1576 = vadd.f32 %v1533, %v1575
        %v1577 = vpop.f32.mrb[0].mxu0
        %v1578 = vadd.f32 %v1535, %v1577
        %v1579 = vpop.f32.mrb[0].mxu0
        %v1580 = vadd.f32 %v1537, %v1579
        %v1581 = vpop.f32.mrb[0].mxu0
        %v1582 = vadd.f32 %v1539, %v1581
        %1583 = vdwg.mxu0
        %1584 = vmatprep.subr.bf16.mxu0 %v1307
        %1585 = vmatpush1.bf16.msra.mxu0 %v1306
        %1586 = vmatprep.subr.bf16.mxu0 %v1311
        %1587 = vmatpush1.bf16.msra.mxu0 %v1310
        %1588 = vmatprep.subr.bf16.mxu0 %v1315
        %1589 = vmatpush1.bf16.msra.mxu0 %v1314
        %1590 = vmatprep.subr.bf16.mxu0 %v1319
        %1591 = vmatpush1.bf16.msra.mxu0 %v1318
        %1592 = vmatprep.subr.bf16.mxu0 %v1323
        %1593 = vmatpush1.bf16.msra.mxu0 %v1322
        %1594 = vmatprep.subr.bf16.mxu0 %v1327
        %1595 = vmatpush1.bf16.msra.mxu0 %v1326
        %1596 = vmatprep.subr.bf16.mxu0 %v1331
        %1597 = vmatpush1.bf16.msra.mxu0 %v1330
        %1598 = vmatprep.subr.bf16.mxu0 %v1335
        %1599 = vmatpush1.bf16.msra.mxu0 %v1334
        %1600 = vmatprep.subr.bf16.mxu0 0
        %1601 = vmatpush1.bf16.msra.mxu0 0
        %1602 = vmatprep.subr.bf16.mxu0 0
        %1603 = vmatpush1.bf16.msra.mxu0 0
        %1604 = vmatprep.subr.bf16.mxu0 0
        %1605 = vmatpush1.bf16.msra.mxu0 0
        %1606 = vmatprep.subr.bf16.mxu0 0
        %1607 = vmatpush1.bf16.msra.mxu0 0
        %1608 = vmatprep.subr.bf16.mxu0 0
        %1609 = vmatpush1.bf16.msra.mxu0 0
        %1610 = vmatprep.subr.bf16.mxu0 0
        %1611 = vmatpush1.bf16.msra.mxu0 0
        %1612 = vmatprep.subr.bf16.mxu0 0
        %1613 = vmatpush1.bf16.msra.mxu0 0
        %1614 = vmatprep.subr.bf16.mxu0 0
        %1615 = vmatpush1.bf16.msra.mxu0 0
        %1616 = vmatprep.mubr.bf16.mxu0 0
        %1617 = vmatmul.mubr.bf16.gmra.mrb[0].mxu0 %v692
        %v1618 = vpop.f32.mrb[0].mxu0
        %v1619 = vadd.f32 %v1576, %v1618
        %v1620 = vpop.f32.mrb[0].mxu0
        %v1621 = vadd.f32 %v1578, %v1620
        %v1622 = vpop.f32.mrb[0].mxu0
        %v1623 = vadd.f32 %v1580, %v1622
        %v1624 = vpop.f32.mrb[0].mxu0
        %v1625 = vadd.f32 %v1582, %v1624
        %1626 = vdwg.mxu0
        %1627 = vmatprep.subr.bf16.mxu0 %v1181
        %1628 = vmatpush1.bf16.msra.mxu0 %v1180
        %1629 = vmatprep.subr.bf16.mxu0 %v1185
        %1630 = vmatpush1.bf16.msra.mxu0 %v1184
        %1631 = vmatprep.subr.bf16.mxu0 %v1189
        %1632 = vmatpush1.bf16.msra.mxu0 %v1188
        %1633 = vmatprep.subr.bf16.mxu0 %v1193
        %1634 = vmatpush1.bf16.msra.mxu0 %v1192
        %1635 = vmatprep.subr.bf16.mxu0 %v1197
        %1636 = vmatpush1.bf16.msra.mxu0 %v1196
        %1637 = vmatprep.subr.bf16.mxu0 %v1201
        %1638 = vmatpush1.bf16.msra.mxu0 %v1200
        %1639 = vmatprep.subr.bf16.mxu0 %v1205
        %1640 = vmatpush1.bf16.msra.mxu0 %v1204
        %1641 = vmatprep.subr.bf16.mxu0 %v1209
        %1642 = vmatpush1.bf16.msra.mxu0 %v1208
        %1643 = vmatprep.subr.bf16.mxu0 %v1213
        %1644 = vmatpush1.bf16.msra.mxu0 %v1212
        %1645 = vmatprep.subr.bf16.mxu0 %v1217
        %1646 = vmatpush1.bf16.msra.mxu0 %v1216
        %1647 = vmatprep.subr.bf16.mxu0 %v1221
        %1648 = vmatpush1.bf16.msra.mxu0 %v1220
        %1649 = vmatprep.subr.bf16.mxu0 %v1225
        %1650 = vmatpush1.bf16.msra.mxu0 %v1224
        %1651 = vmatprep.subr.bf16.mxu0 %v1229
        %1652 = vmatpush1.bf16.msra.mxu0 %v1228
        %1653 = vmatprep.subr.bf16.mxu0 %v1233
        %1654 = vmatpush1.bf16.msra.mxu0 %v1232
        %1655 = vmatprep.subr.bf16.mxu0 %v1237
        %1656 = vmatpush1.bf16.msra.mxu0 %v1236
        %1657 = vmatprep.subr.bf16.mxu0 %v1241
        %1658 = vmatpush1.bf16.msra.mxu0 %v1240
        %1659 = vmatprep.mubr.bf16.mxu0 %v689
        %1660 = vmatmul.mubr.bf16.gmra.mrb[0].mxu0 %v688
        %v1661 = vpop.f32.mrb[0].mxu0
        %v1662 = vadd.f32 0.0, %v1661
        %v1663 = vpop.f32.mrb[0].mxu0
        %v1664 = vadd.f32 0.0, %v1663
        %v1665 = vpop.f32.mrb[0].mxu0
        %v1666 = vadd.f32 0.0, %v1665
        %v1667 = vpop.f32.mrb[0].mxu0
        %v1668 = vadd.f32 0.0, %v1667
        %1669 = vdwg.mxu0
        %1670 = vmatprep.subr.bf16.mxu0 %v1245
        %1671 = vmatpush1.bf16.msra.mxu0 %v1244
        %1672 = vmatprep.subr.bf16.mxu0 %v1249
        %1673 = vmatpush1.bf16.msra.mxu0 %v1248
        %1674 = vmatprep.subr.bf16.mxu0 %v1253
        %1675 = vmatpush1.bf16.msra.mxu0 %v1252
        %1676 = vmatprep.subr.bf16.mxu0 %v1257
        %1677 = vmatpush1.bf16.msra.mxu0 %v1256
        %1678 = vmatprep.subr.bf16.mxu0 %v1261
        %1679 = vmatpush1.bf16.msra.mxu0 %v1260
        %1680 = vmatprep.subr.bf16.mxu0 %v1265
        %1681 = vmatpush1.bf16.msra.mxu0 %v1264
        %1682 = vmatprep.subr.bf16.mxu0 %v1269
        %1683 = vmatpush1.bf16.msra.mxu0 %v1268
        %1684 = vmatprep.subr.bf16.mxu0 %v1273
        %1685 = vmatpush1.bf16.msra.mxu0 %v1272
        %1686 = vmatprep.subr.bf16.mxu0 %v1277
        %1687 = vmatpush1.bf16.msra.mxu0 %v1276
        %1688 = vmatprep.subr.bf16.mxu0 %v1281
        %1689 = vmatpush1.bf16.msra.mxu0 %v1280
        %1690 = vmatprep.subr.bf16.mxu0 %v1285
        %1691 = vmatpush1.bf16.msra.mxu0 %v1284
        %1692 = vmatprep.subr.bf16.mxu0 %v1289
        %1693 = vmatpush1.bf16.msra.mxu0 %v1288
        %1694 = vmatprep.subr.bf16.mxu0 %v1293
        %1695 = vmatpush1.bf16.msra.mxu0 %v1292
        %1696 = vmatprep.subr.bf16.mxu0 %v1297
        %1697 = vmatpush1.bf16.msra.mxu0 %v1296
        %1698 = vmatprep.subr.bf16.mxu0 %v1301
        %1699 = vmatpush1.bf16.msra.mxu0 %v1300
        %1700 = vmatprep.subr.bf16.mxu0 %v1305
        %1701 = vmatpush1.bf16.msra.mxu0 %v1304
        %1702 = vmatprep.mubr.bf16.mxu0 %v691
        %1703 = vmatmul.mubr.bf16.gmra.mrb[0].mxu0 %v690
        %v1704 = vpop.f32.mrb[0].mxu0
        %v1705 = vadd.f32 %v1662, %v1704
        %v1706 = vpop.f32.mrb[0].mxu0
        %v1707 = vadd.f32 %v1664, %v1706
        %v1708 = vpop.f32.mrb[0].mxu0
        %v1709 = vadd.f32 %v1666, %v1708
        %v1710 = vpop.f32.mrb[0].mxu0
        %v1711 = vadd.f32 %v1668, %v1710
        %1712 = vdwg.mxu0
        %1713 = vmatprep.subr.bf16.mxu0 %v1309
        %1714 = vmatpush1.bf16.msra.mxu0 %v1308
        %1715 = vmatprep.subr.bf16.mxu0 %v1313
        %1716 = vmatpush1.bf16.msra.mxu0 %v1312
        %1717 = vmatprep.subr.bf16.mxu0 %v1317
        %1718 = vmatpush1.bf16.msra.mxu0 %v1316
        %1719 = vmatprep.subr.bf16.mxu0 %v1321
        %1720 = vmatpush1.bf16.msra.mxu0 %v1320
        %1721 = vmatprep.subr.bf16.mxu0 %v1325
        %1722 = vmatpush1.bf16.msra.mxu0 %v1324
        %1723 = vmatprep.subr.bf16.mxu0 %v1329
        %1724 = vmatpush1.bf16.msra.mxu0 %v1328
        %1725 = vmatprep.subr.bf16.mxu0 %v1333
        %1726 = vmatpush1.bf16.msra.mxu0 %v1332
        %1727 = vmatprep.subr.bf16.mxu0 %v1337
        %1728 = vmatpush1.bf16.msra.mxu0 %v1336
        %1729 = vmatprep.subr.bf16.mxu0 0
        %1730 = vmatpush1.bf16.msra.mxu0 0
        %1731 = vmatprep.subr.bf16.mxu0 0
        %1732 = vmatpush1.bf16.msra.mxu0 0
        %1733 = vmatprep.subr.bf16.mxu0 0
        %1734 = vmatpush1.bf16.msra.mxu0 0
        %1735 = vmatprep.subr.bf16.mxu0 0
        %1736 = vmatpush1.bf16.msra.mxu0 0
        %1737 = vmatprep.subr.bf16.mxu0 0
        %1738 = vmatpush1.bf16.msra.mxu0 0
        %1739 = vmatprep.subr.bf16.mxu0 0
        %1740 = vmatpush1.bf16.msra.mxu0 0
        %1741 = vmatprep.subr.bf16.mxu0 0
        %1742 = vmatpush1.bf16.msra.mxu0 0
        %1743 = vmatprep.subr.bf16.mxu0 0
        %1744 = vmatpush1.bf16.msra.mxu0 0
        %1745 = vmatprep.mubr.bf16.mxu0 0
        %1746 = vmatmul.mubr.bf16.gmra.mrb[0].mxu0 %v692
        %v1747 = vpop.f32.mrb[0].mxu0
        %v1748 = vadd.f32 %v1705, %v1747
        %v1749 = vpop.f32.mrb[0].mxu0
        %v1750 = vadd.f32 %v1707, %v1749
        %v1751 = vpop.f32.mrb[0].mxu0
        %v1752 = vadd.f32 %v1709, %v1751
        %v1753 = vpop.f32.mrb[0].mxu0
        %v1754 = vadd.f32 %v1711, %v1753
        %1755 = vdwg.mxu0
        %v1756 = vadd.f32 %v504, %v1619
        %v1757 = vadd.f32 %v505, %v1621
        %v1758 = vadd.f32 %v506, %v1748
        %v1759 = vadd.f32 %v507, %v1750
        %v1760 = vadd.f32 %v508, %v1623
        %v1761 = vadd.f32 %v509, %v1625
        %v1762 = vadd.f32 %v510, %v1752
        %v1763 = vadd.f32 %v511, %v1754
        %1764 = vst [vmem:[%s294] sm:$0xff] %v1756
        %1765 = vst [vmem:[%s294 + $0x8] sm:$0xff] %v1757
        %1766 = vst [vmem:[%s294 + $0x10] sm:$0xff] %v1758
        %1767 = vst [vmem:[%s294 + $0x18] sm:$0xff] %v1759
        %1768 = vst [vmem:[%s294 + $0x20] sm:$0xff] %v1760
        %1769 = vst [vmem:[%s294 + $0x28] sm:$0xff] %v1761
        %1770 = vst [vmem:[%s294 + $0x30] sm:$0xff] %v1762
        %1771 = vst [vmem:[%s294 + $0x38] sm:$0xff] %v1763
        %v1772 = vld [vmem:[#allocation2] sm:$0xff]
        %v1773 = vld [vmem:[#allocation2 + $0x8] sm:$0xff]
        %v1774 = vld [vmem:[#allocation2 + $0x10] sm:$0xf]
        %v1775 = vld [vmem:[#allocation2 + $0x14] sm:$0xff]
        %v1776 = vld [vmem:[#allocation2 + $0x1c] sm:$0xff]
        %v1777 = vld [vmem:[#allocation2 + $0x24] sm:$0xf]
        %v1778 = vld [vmem:[#allocation2 + $0x28] sm:$0x11]
        %v1779 = vld [vmem:[#allocation2 + $0x30] sm:$0x11]
        %v1780 = vld [vmem:[#allocation2 + $0x38] sm:$0x1]
        %v1781 = vld [vmem:[%s294] sm:$0xff]
        %v1782 = vld [vmem:[%s294 + $0x8] sm:$0xff]
        %v1783 = vld [vmem:[%s294 + $0x10] sm:$0xff]
        %v1784 = vld [vmem:[%s294 + $0x18] sm:$0xff]
        %v1785 = vld [vmem:[%s294 + $0x20] sm:$0xff]
        %v1786 = vld [vmem:[%s294 + $0x28] sm:$0xff]
        %v1787 = vld [vmem:[%s294 + $0x30] sm:$0xff]
        %v1788 = vld [vmem:[%s294 + $0x38] sm:$0xff]
        %s1789 = scalar_lea.vmem [#allocation9], 1280
        %v1790 = vld [vmem:[%s1789] sm:$0xff]
        %v1791 = vld [vmem:[%s1789 + $0x8] sm:$0xff]
        %v1792 = vld [vmem:[%s1789 + $0x10] sm:$0xff]
        %v1793 = vld [vmem:[%s1789 + $0x18] sm:$0xff]
        %v1794 = vld [vmem:[%s1789 + $0x20] sm:$0xff]
        %v1795 = vld [vmem:[%s1789 + $0x28] sm:$0xff]
        %v1796 = vld [vmem:[%s1789 + $0x30] sm:$0xff]
        %v1797 = vld [vmem:[%s1789 + $0x38] sm:$0xff]
        %v1798 = vld [vmem:[%s1789 + $0x40] sm:$0xff]
        %v1799 = vld [vmem:[%s1789 + $0x48] sm:$0xff]
        %v1800 = vld [vmem:[%s1789 + $0x50] sm:$0xff]
        %v1801 = vld [vmem:[%s1789 + $0x58] sm:$0xff]
        %v1802 = vld [vmem:[%s1789 + $0x60] sm:$0xff]
        %v1803 = vld [vmem:[%s1789 + $0x68] sm:$0xff]
        %v1804 = vld [vmem:[%s1789 + $0x70] sm:$0xff]
        %v1805 = vld [vmem:[%s1789 + $0x78] sm:$0xff]
        %v1806 = vld [vmem:[%s1789 + $0x80] sm:$0xff]
        %v1807 = vld [vmem:[%s1789 + $0x88] sm:$0xff]
        %v1808 = vld [vmem:[%s1789 + $0x90] sm:$0xff]
        %v1809 = vld [vmem:[%s1789 + $0x98] sm:$0xff]
        %v1810 = vld [vmem:[%s1789 + $0xa0] sm:$0xff]
        %v1811 = vld [vmem:[%s1789 + $0xa8] sm:$0xff]
        %v1812 = vld [vmem:[%s1789 + $0xb0] sm:$0xff]
        %v1813 = vld [vmem:[%s1789 + $0xb8] sm:$0xff]
        %v1814 = vld [vmem:[%s1789 + $0xc0] sm:$0xff]
        %v1815 = vld [vmem:[%s1789 + $0xc8] sm:$0xff]
        %v1816 = vld [vmem:[%s1789 + $0xd0] sm:$0xff]
        %v1817 = vld [vmem:[%s1789 + $0xd8] sm:$0xff]
        %v1818 = vld [vmem:[%s1789 + $0xe0] sm:$0xff]
        %v1819 = vld [vmem:[%s1789 + $0xe8] sm:$0xff]
        %v1820 = vld [vmem:[%s1789 + $0xf0] sm:$0xff]
        %v1821 = vld [vmem:[%s1789 + $0xf8] sm:$0xff]
        %v1822 = vld [vmem:[%s1789 + $0x100] sm:$0xff]
        %v1823 = vld [vmem:[%s1789 + $0x108] sm:$0xff]
        %v1824 = vld [vmem:[%s1789 + $0x110] sm:$0xff]
        %v1825 = vld [vmem:[%s1789 + $0x118] sm:$0xff]
        %v1826 = vld [vmem:[%s1789 + $0x120] sm:$0xff]
        %v1827 = vld [vmem:[%s1789 + $0x128] sm:$0xff]
        %v1828 = vld [vmem:[%s1789 + $0x130] sm:$0xff]
        %v1829 = vld [vmem:[%s1789 + $0x138] sm:$0xff]
        %v1830 = vld [vmem:[%s1789 + $0x140] sm:$0xff]
        %v1831 = vld [vmem:[%s1789 + $0x148] sm:$0xff]
        %v1832 = vld [vmem:[%s1789 + $0x150] sm:$0xff]
        %v1833 = vld [vmem:[%s1789 + $0x158] sm:$0xff]
        %v1834 = vld [vmem:[%s1789 + $0x160] sm:$0xff]
        %v1835 = vld [vmem:[%s1789 + $0x168] sm:$0xff]
        %v1836 = vld [vmem:[%s1789 + $0x170] sm:$0xff]
        %v1837 = vld [vmem:[%s1789 + $0x178] sm:$0xff]
        %v1838 = vld [vmem:[%s1789 + $0x180] sm:$0xff]
        %v1839 = vld [vmem:[%s1789 + $0x188] sm:$0xff]
        %v1840 = vld [vmem:[%s1789 + $0x190] sm:$0xff]
        %v1841 = vld [vmem:[%s1789 + $0x198] sm:$0xff]
        %v1842 = vld [vmem:[%s1789 + $0x1a0] sm:$0xff]
        %v1843 = vld [vmem:[%s1789 + $0x1a8] sm:$0xff]
        %v1844 = vld [vmem:[%s1789 + $0x1b0] sm:$0xff]
        %v1845 = vld [vmem:[%s1789 + $0x1b8] sm:$0xff]
        %v1846 = vld [vmem:[%s1789 + $0x1c0] sm:$0xff]
        %v1847 = vld [vmem:[%s1789 + $0x1c8] sm:$0xff]
        %v1848 = vld [vmem:[%s1789 + $0x1d0] sm:$0xff]
        %v1849 = vld [vmem:[%s1789 + $0x1d8] sm:$0xff]
        %v1850 = vld [vmem:[%s1789 + $0x1e0] sm:$0xff]
        %v1851 = vld [vmem:[%s1789 + $0x1e8] sm:$0xff]
        %v1852 = vld [vmem:[%s1789 + $0x1f0] sm:$0xff]
        %v1853 = vld [vmem:[%s1789 + $0x1f8] sm:$0xff]
        %v1854 = vld [vmem:[%s1789 + $0x200] sm:$0xff]
        %v1855 = vld [vmem:[%s1789 + $0x208] sm:$0xff]
        %v1856 = vld [vmem:[%s1789 + $0x210] sm:$0xff]
        %v1857 = vld [vmem:[%s1789 + $0x218] sm:$0xff]
        %v1858 = vld [vmem:[%s1789 + $0x220] sm:$0xff]
        %v1859 = vld [vmem:[%s1789 + $0x228] sm:$0xff]
        %v1860 = vld [vmem:[%s1789 + $0x230] sm:$0xff]
        %v1861 = vld [vmem:[%s1789 + $0x238] sm:$0xff]
        %v1862 = vld [vmem:[%s1789 + $0x240] sm:$0xff]
        %v1863 = vld [vmem:[%s1789 + $0x248] sm:$0xff]
        %v1864 = vld [vmem:[%s1789 + $0x250] sm:$0xff]
        %v1865 = vld [vmem:[%s1789 + $0x258] sm:$0xff]
        %v1866 = vld [vmem:[%s1789 + $0x260] sm:$0xff]
        %v1867 = vld [vmem:[%s1789 + $0x268] sm:$0xff]
        %v1868 = vld [vmem:[%s1789 + $0x270] sm:$0xff]
        %v1869 = vld [vmem:[%s1789 + $0x278] sm:$0xff]
        %v1870 = vld [vmem:[%s1789 + $0x280] sm:$0xff]
        %v1871 = vld [vmem:[%s1789 + $0x288] sm:$0xff]
        %v1872 = vld [vmem:[%s1789 + $0x290] sm:$0xff]
        %v1873 = vld [vmem:[%s1789 + $0x298] sm:$0xff]
        %v1874 = vld [vmem:[%s1789 + $0x2a0] sm:$0xff]
        %v1875 = vld [vmem:[%s1789 + $0x2a8] sm:$0xff]
        %v1876 = vld [vmem:[%s1789 + $0x2b0] sm:$0xff]
        %v1877 = vld [vmem:[%s1789 + $0x2b8] sm:$0xff]
        %v1878 = vld [vmem:[%s1789 + $0x2c0] sm:$0xff]
        %v1879 = vld [vmem:[%s1789 + $0x2c8] sm:$0xff]
        %v1880 = vld [vmem:[%s1789 + $0x2d0] sm:$0xff]
        %v1881 = vld [vmem:[%s1789 + $0x2d8] sm:$0xff]
        %v1882 = vld [vmem:[%s1789 + $0x2e0] sm:$0xff]
        %v1883 = vld [vmem:[%s1789 + $0x2e8] sm:$0xff]
        %v1884 = vld [vmem:[%s1789 + $0x2f0] sm:$0xff]
        %v1885 = vld [vmem:[%s1789 + $0x2f8] sm:$0xff]
        %v1886 = vld [vmem:[%s1789 + $0x300] sm:$0xff]
        %v1887 = vld [vmem:[%s1789 + $0x308] sm:$0xff]
        %v1888 = vld [vmem:[%s1789 + $0x310] sm:$0xff]
        %v1889 = vld [vmem:[%s1789 + $0x318] sm:$0xff]
        %v1890 = vld [vmem:[%s1789 + $0x320] sm:$0xff]
        %v1891 = vld [vmem:[%s1789 + $0x328] sm:$0xff]
        %v1892 = vld [vmem:[%s1789 + $0x330] sm:$0xff]
        %v1893 = vld [vmem:[%s1789 + $0x338] sm:$0xff]
        %v1894 = vld [vmem:[%s1789 + $0x340] sm:$0xff]
        %v1895 = vld [vmem:[%s1789 + $0x348] sm:$0xff]
        %v1896 = vld [vmem:[%s1789 + $0x350] sm:$0xff]
        %v1897 = vld [vmem:[%s1789 + $0x358] sm:$0xff]
        %v1898 = vld [vmem:[%s1789 + $0x360] sm:$0xff]
        %v1899 = vld [vmem:[%s1789 + $0x368] sm:$0xff]
        %v1900 = vld [vmem:[%s1789 + $0x370] sm:$0xff]
        %v1901 = vld [vmem:[%s1789 + $0x378] sm:$0xff]
        %v1902 = vld [vmem:[%s1789 + $0x380] sm:$0xff]
        %v1903 = vld [vmem:[%s1789 + $0x388] sm:$0xff]
        %v1904 = vld [vmem:[%s1789 + $0x390] sm:$0xff]
        %v1905 = vld [vmem:[%s1789 + $0x398] sm:$0xff]
        %v1906 = vld [vmem:[%s1789 + $0x3a0] sm:$0xff]
        %v1907 = vld [vmem:[%s1789 + $0x3a8] sm:$0xff]
        %v1908 = vld [vmem:[%s1789 + $0x3b0] sm:$0xff]
        %v1909 = vld [vmem:[%s1789 + $0x3b8] sm:$0xff]
        %v1910 = vld [vmem:[%s1789 + $0x3c0] sm:$0xff]
        %v1911 = vld [vmem:[%s1789 + $0x3c8] sm:$0xff]
        %v1912 = vld [vmem:[%s1789 + $0x3d0] sm:$0xff]
        %v1913 = vld [vmem:[%s1789 + $0x3d8] sm:$0xff]
        %v1914 = vld [vmem:[%s1789 + $0x3e0] sm:$0xff]
        %v1915 = vld [vmem:[%s1789 + $0x3e8] sm:$0xff]
        %v1916 = vld [vmem:[%s1789 + $0x3f0] sm:$0xff]
        %v1917 = vld [vmem:[%s1789 + $0x3f8] sm:$0xff]
        %v1918 = vld [vmem:[%s1789 + $0x400] sm:$0xff]
        %v1919 = vld [vmem:[%s1789 + $0x408] sm:$0xff]
        %v1920 = vld [vmem:[%s1789 + $0x410] sm:$0xff]
        %v1921 = vld [vmem:[%s1789 + $0x418] sm:$0xff]
        %v1922 = vld [vmem:[%s1789 + $0x420] sm:$0xff]
        %v1923 = vld [vmem:[%s1789 + $0x428] sm:$0xff]
        %v1924 = vld [vmem:[%s1789 + $0x430] sm:$0xff]
        %v1925 = vld [vmem:[%s1789 + $0x438] sm:$0xff]
        %v1926 = vld [vmem:[%s1789 + $0x440] sm:$0xff]
        %v1927 = vld [vmem:[%s1789 + $0x448] sm:$0xff]
        %v1928 = vld [vmem:[%s1789 + $0x450] sm:$0xff]
        %v1929 = vld [vmem:[%s1789 + $0x458] sm:$0xff]
        %v1930 = vld [vmem:[%s1789 + $0x460] sm:$0xff]
        %v1931 = vld [vmem:[%s1789 + $0x468] sm:$0xff]
        %v1932 = vld [vmem:[%s1789 + $0x470] sm:$0xff]
        %v1933 = vld [vmem:[%s1789 + $0x478] sm:$0xff]
        %v1934 = vld [vmem:[%s1789 + $0x480] sm:$0xff]
        %v1935 = vld [vmem:[%s1789 + $0x488] sm:$0xff]
        %v1936 = vld [vmem:[%s1789 + $0x490] sm:$0xff]
        %v1937 = vld [vmem:[%s1789 + $0x498] sm:$0xff]
        %v1938 = vld [vmem:[%s1789 + $0x4a0] sm:$0xff]
        %v1939 = vld [vmem:[%s1789 + $0x4a8] sm:$0xff]
        %v1940 = vld [vmem:[%s1789 + $0x4b0] sm:$0xff]
        %v1941 = vld [vmem:[%s1789 + $0x4b8] sm:$0xff]
        %v1942 = vld [vmem:[%s1789 + $0x4c0] sm:$0xff]
        %v1943 = vld [vmem:[%s1789 + $0x4c8] sm:$0xff]
        %v1944 = vld [vmem:[%s1789 + $0x4d0] sm:$0xff]
        %v1945 = vld [vmem:[%s1789 + $0x4d8] sm:$0xff]
        %v1946 = vld [vmem:[%s1789 + $0x4e0] sm:$0xff]
        %v1947 = vld [vmem:[%s1789 + $0x4e8] sm:$0xff]
        %v1948 = vld [vmem:[%s1789 + $0x4f0] sm:$0xff]
        %v1949 = vld [vmem:[%s1789 + $0x4f8] sm:$0xff]
        %v1959 = vunpack.c.l.b16 %v1772
        %v1960 = vunpack.c.h.b16 %v1772
        %v1961 = vunpack.c.l.b16 %v1773
        %v1962 = vunpack.c.h.b16 %v1773
        %v1963 = vunpack.c.l.b16 %v1774
        %v1964 = vunpack.c.l.b16 %v1775
        %v1965 = vunpack.c.h.b16 %v1775
        %v1966 = vunpack.c.l.b16 %v1776
        %v1967 = vunpack.c.h.b16 %v1776
        %v1968 = vunpack.c.l.b16 %v1777
        %v1969 = vunpack.c.l.b16 %v1778
        %v1970 = vunpack.c.h.b16 %v1778
        %v1971 = vunpack.c.l.b16 %v1779
        %v1972 = vunpack.c.h.b16 %v1779
        %v1973 = vunpack.c.l.b16 %v1780
        %v1974 = vpack.c.b16 %v1964, %v1959
        %v1975 = vpack.c.b16 %v1965, %v1960
        %v1976 = vpack.c.b16 %v1966, %v1961
        %v1977 = vpack.c.b16 %v1967, %v1962
        %v1978 = vpack.c.b16 %v1968, %v1963
        %v1979 = vpack.c.b16 %v1969, %v1969
        %v1980 = vpack.c.b16 %v1970, %v1970
        %v1981 = vpack.c.b16 %v1971, %v1971
        %v1982 = vpack.c.b16 %v1972, %v1972
        %v1983 = vpack.c.b16 %v1973, %v1973
        %vm1984 = vsmask.f32 7424
        %v1986 = vshrl.u32 %v1974, 16
        %v1988 = vshll.u32 %v1974, 16
        %v1990 = vrot.slane %v1988, 1
        %v1991 = vor.u32 %v1986, %v1990
        %v1993 = vshll.u32 %v1979, 16
        %v1995 = vrot.slane %v1993, 1
        %v1996 = vsel %vm1984, %v1991, %v1995
        %v1998 = vshrl.u32 %v1975, 16
        %v2000 = vshll.u32 %v1975, 16
        %v2002 = vrot.slane %v2000, 1
        %v2003 = vor.u32 %v1998, %v2002
        %v2005 = vshll.u32 %v1980, 16
        %v2007 = vrot.slane %v2005, 1
        %v2008 = vsel %vm1984, %v2003, %v2007
        %v2010 = vshrl.u32 %v1976, 16
        %v2012 = vshll.u32 %v1976, 16
        %v2014 = vrot.slane %v2012, 1
        %v2015 = vor.u32 %v2010, %v2014
        %v2017 = vshll.u32 %v1981, 16
        %v2019 = vrot.slane %v2017, 1
        %v2020 = vsel %vm1984, %v2015, %v2019
        %v2022 = vshrl.u32 %v1977, 16
        %v2024 = vshll.u32 %v1977, 16
        %v2026 = vrot.slane %v2024, 1
        %v2027 = vor.u32 %v2022, %v2026
        %v2029 = vshll.u32 %v1982, 16
        %v2031 = vrot.slane %v2029, 1
        %v2032 = vsel %vm1984, %v2027, %v2031
        %v2034 = vshrl.u32 %v1978, 16
        %v2036 = vshll.u32 %v1978, 16
        %v2038 = vrot.slane %v2036, 1
        %v2039 = vor.u32 %v2034, %v2038
        %v2041 = vshll.u32 %v1983, 16
        %v2043 = vrot.slane %v2041, 1
        %v2044 = vsel %vm1984, %v2039, %v2043
        %v2210 = vunpack.c.l.b16 %v1790
        %v2211 = vunpack.c.h.b16 %v1790
        %v2212 = vunpack.c.l.b16 %v1791
        %v2213 = vunpack.c.h.b16 %v1791
        %v2214 = vunpack.c.l.b16 %v1792
        %v2215 = vunpack.c.h.b16 %v1792
        %v2216 = vunpack.c.l.b16 %v1793
        %v2217 = vunpack.c.h.b16 %v1793
        %v2218 = vunpack.c.l.b16 %v1794
        %v2219 = vunpack.c.h.b16 %v1794
        %v2220 = vunpack.c.l.b16 %v1795
        %v2221 = vunpack.c.h.b16 %v1795
        %v2222 = vunpack.c.l.b16 %v1796
        %v2223 = vunpack.c.h.b16 %v1796
        %v2224 = vunpack.c.l.b16 %v1797
        %v2225 = vunpack.c.h.b16 %v1797
        %v2226 = vunpack.c.l.b16 %v1798
        %v2227 = vunpack.c.h.b16 %v1798
        %v2228 = vunpack.c.l.b16 %v1799
        %v2229 = vunpack.c.h.b16 %v1799
        %v2230 = vunpack.c.l.b16 %v1800
        %v2231 = vunpack.c.h.b16 %v1800
        %v2232 = vunpack.c.l.b16 %v1801
        %v2233 = vunpack.c.h.b16 %v1801
        %v2234 = vunpack.c.l.b16 %v1802
        %v2235 = vunpack.c.h.b16 %v1802
        %v2236 = vunpack.c.l.b16 %v1803
        %v2237 = vunpack.c.h.b16 %v1803
        %v2238 = vunpack.c.l.b16 %v1804
        %v2239 = vunpack.c.h.b16 %v1804
        %v2240 = vunpack.c.l.b16 %v1805
        %v2241 = vunpack.c.h.b16 %v1805
        %v2242 = vunpack.c.l.b16 %v1806
        %v2243 = vunpack.c.h.b16 %v1806
        %v2244 = vunpack.c.l.b16 %v1807
        %v2245 = vunpack.c.h.b16 %v1807
        %v2246 = vunpack.c.l.b16 %v1808
        %v2247 = vunpack.c.h.b16 %v1808
        %v2248 = vunpack.c.l.b16 %v1809
        %v2249 = vunpack.c.h.b16 %v1809
        %v2250 = vunpack.c.l.b16 %v1810
        %v2251 = vunpack.c.h.b16 %v1810
        %v2252 = vunpack.c.l.b16 %v1811
        %v2253 = vunpack.c.h.b16 %v1811
        %v2254 = vunpack.c.l.b16 %v1812
        %v2255 = vunpack.c.h.b16 %v1812
        %v2256 = vunpack.c.l.b16 %v1813
        %v2257 = vunpack.c.h.b16 %v1813
        %v2258 = vunpack.c.l.b16 %v1814
        %v2259 = vunpack.c.h.b16 %v1814
        %v2260 = vunpack.c.l.b16 %v1815
        %v2261 = vunpack.c.h.b16 %v1815
        %v2262 = vunpack.c.l.b16 %v1816
        %v2263 = vunpack.c.h.b16 %v1816
        %v2264 = vunpack.c.l.b16 %v1817
        %v2265 = vunpack.c.h.b16 %v1817
        %v2266 = vunpack.c.l.b16 %v1818
        %v2267 = vunpack.c.h.b16 %v1818
        %v2268 = vunpack.c.l.b16 %v1819
        %v2269 = vunpack.c.h.b16 %v1819
        %v2270 = vunpack.c.l.b16 %v1820
        %v2271 = vunpack.c.h.b16 %v1820
        %v2272 = vunpack.c.l.b16 %v1821
        %v2273 = vunpack.c.h.b16 %v1821
        %v2274 = vunpack.c.l.b16 %v1822
        %v2275 = vunpack.c.h.b16 %v1822
        %v2276 = vunpack.c.l.b16 %v1823
        %v2277 = vunpack.c.h.b16 %v1823
        %v2278 = vunpack.c.l.b16 %v1824
        %v2279 = vunpack.c.h.b16 %v1824
        %v2280 = vunpack.c.l.b16 %v1825
        %v2281 = vunpack.c.h.b16 %v1825
        %v2282 = vunpack.c.l.b16 %v1826
        %v2283 = vunpack.c.h.b16 %v1826
        %v2284 = vunpack.c.l.b16 %v1827
        %v2285 = vunpack.c.h.b16 %v1827
        %v2286 = vunpack.c.l.b16 %v1828
        %v2287 = vunpack.c.h.b16 %v1828
        %v2288 = vunpack.c.l.b16 %v1829
        %v2289 = vunpack.c.h.b16 %v1829
        %v2290 = vunpack.c.l.b16 %v1830
        %v2291 = vunpack.c.h.b16 %v1830
        %v2292 = vunpack.c.l.b16 %v1831
        %v2293 = vunpack.c.h.b16 %v1831
        %v2294 = vunpack.c.l.b16 %v1832
        %v2295 = vunpack.c.h.b16 %v1832
        %v2296 = vunpack.c.l.b16 %v1833
        %v2297 = vunpack.c.h.b16 %v1833
        %v2298 = vunpack.c.l.b16 %v1834
        %v2299 = vunpack.c.h.b16 %v1834
        %v2300 = vunpack.c.l.b16 %v1835
        %v2301 = vunpack.c.h.b16 %v1835
        %v2302 = vunpack.c.l.b16 %v1836
        %v2303 = vunpack.c.h.b16 %v1836
        %v2304 = vunpack.c.l.b16 %v1837
        %v2305 = vunpack.c.h.b16 %v1837
        %v2306 = vunpack.c.l.b16 %v1838
        %v2307 = vunpack.c.h.b16 %v1838
        %v2308 = vunpack.c.l.b16 %v1839
        %v2309 = vunpack.c.h.b16 %v1839
        %v2310 = vunpack.c.l.b16 %v1840
        %v2311 = vunpack.c.h.b16 %v1840
        %v2312 = vunpack.c.l.b16 %v1841
        %v2313 = vunpack.c.h.b16 %v1841
        %v2314 = vunpack.c.l.b16 %v1842
        %v2315 = vunpack.c.h.b16 %v1842
        %v2316 = vunpack.c.l.b16 %v1843
        %v2317 = vunpack.c.h.b16 %v1843
        %v2318 = vunpack.c.l.b16 %v1844
        %v2319 = vunpack.c.h.b16 %v1844
        %v2320 = vunpack.c.l.b16 %v1845
        %v2321 = vunpack.c.h.b16 %v1845
        %v2322 = vunpack.c.l.b16 %v1846
        %v2323 = vunpack.c.h.b16 %v1846
        %v2324 = vunpack.c.l.b16 %v1847
        %v2325 = vunpack.c.h.b16 %v1847
        %v2326 = vunpack.c.l.b16 %v1848
        %v2327 = vunpack.c.h.b16 %v1848
        %v2328 = vunpack.c.l.b16 %v1849
        %v2329 = vunpack.c.h.b16 %v1849
        %v2330 = vunpack.c.l.b16 %v1850
        %v2331 = vunpack.c.h.b16 %v1850
        %v2332 = vunpack.c.l.b16 %v1851
        %v2333 = vunpack.c.h.b16 %v1851
        %v2334 = vunpack.c.l.b16 %v1852
        %v2335 = vunpack.c.h.b16 %v1852
        %v2336 = vunpack.c.l.b16 %v1853
        %v2337 = vunpack.c.h.b16 %v1853
        %v2338 = vunpack.c.l.b16 %v1854
        %v2339 = vunpack.c.h.b16 %v1854
        %v2340 = vunpack.c.l.b16 %v1855
        %v2341 = vunpack.c.h.b16 %v1855
        %v2342 = vunpack.c.l.b16 %v1856
        %v2343 = vunpack.c.h.b16 %v1856
        %v2344 = vunpack.c.l.b16 %v1857
        %v2345 = vunpack.c.h.b16 %v1857
        %v2346 = vunpack.c.l.b16 %v1858
        %v2347 = vunpack.c.h.b16 %v1858
        %v2348 = vunpack.c.l.b16 %v1859
        %v2349 = vunpack.c.h.b16 %v1859
        %v2350 = vunpack.c.l.b16 %v1860
        %v2351 = vunpack.c.h.b16 %v1860
        %v2352 = vunpack.c.l.b16 %v1861
        %v2353 = vunpack.c.h.b16 %v1861
        %v2354 = vunpack.c.l.b16 %v1862
        %v2355 = vunpack.c.h.b16 %v1862
        %v2356 = vunpack.c.l.b16 %v1863
        %v2357 = vunpack.c.h.b16 %v1863
        %v2358 = vunpack.c.l.b16 %v1864
        %v2359 = vunpack.c.h.b16 %v1864
        %v2360 = vunpack.c.l.b16 %v1865
        %v2361 = vunpack.c.h.b16 %v1865
        %v2362 = vunpack.c.l.b16 %v1866
        %v2363 = vunpack.c.h.b16 %v1866
        %v2364 = vunpack.c.l.b16 %v1867
        %v2365 = vunpack.c.h.b16 %v1867
        %v2366 = vunpack.c.l.b16 %v1868
        %v2367 = vunpack.c.h.b16 %v1868
        %v2368 = vunpack.c.l.b16 %v1869
        %v2369 = vunpack.c.h.b16 %v1869
        %v2370 = vunpack.c.l.b16 %v1870
        %v2371 = vunpack.c.h.b16 %v1870
        %v2372 = vunpack.c.l.b16 %v1871
        %v2373 = vunpack.c.h.b16 %v1871
        %v2374 = vunpack.c.l.b16 %v1872
        %v2375 = vunpack.c.h.b16 %v1872
        %v2376 = vunpack.c.l.b16 %v1873
        %v2377 = vunpack.c.h.b16 %v1873
        %v2378 = vunpack.c.l.b16 %v1874
        %v2379 = vunpack.c.h.b16 %v1874
        %v2380 = vunpack.c.l.b16 %v1875
        %v2381 = vunpack.c.h.b16 %v1875
        %v2382 = vunpack.c.l.b16 %v1876
        %v2383 = vunpack.c.h.b16 %v1876
        %v2384 = vunpack.c.l.b16 %v1877
        %v2385 = vunpack.c.h.b16 %v1877
        %v2386 = vunpack.c.l.b16 %v1878
        %v2387 = vunpack.c.h.b16 %v1878
        %v2388 = vunpack.c.l.b16 %v1879
        %v2389 = vunpack.c.h.b16 %v1879
        %v2390 = vunpack.c.l.b16 %v1880
        %v2391 = vunpack.c.h.b16 %v1880
        %v2392 = vunpack.c.l.b16 %v1881
        %v2393 = vunpack.c.h.b16 %v1881
        %v2394 = vunpack.c.l.b16 %v1882
        %v2395 = vunpack.c.h.b16 %v1882
        %v2396 = vunpack.c.l.b16 %v1883
        %v2397 = vunpack.c.h.b16 %v1883
        %v2398 = vunpack.c.l.b16 %v1884
        %v2399 = vunpack.c.h.b16 %v1884
        %v2400 = vunpack.c.l.b16 %v1885
        %v2401 = vunpack.c.h.b16 %v1885
        %v2402 = vunpack.c.l.b16 %v1886
        %v2403 = vunpack.c.h.b16 %v1886
        %v2404 = vunpack.c.l.b16 %v1887
        %v2405 = vunpack.c.h.b16 %v1887
        %v2406 = vunpack.c.l.b16 %v1888
        %v2407 = vunpack.c.h.b16 %v1888
        %v2408 = vunpack.c.l.b16 %v1889
        %v2409 = vunpack.c.h.b16 %v1889
        %v2410 = vunpack.c.l.b16 %v1890
        %v2411 = vunpack.c.h.b16 %v1890
        %v2412 = vunpack.c.l.b16 %v1891
        %v2413 = vunpack.c.h.b16 %v1891
        %v2414 = vunpack.c.l.b16 %v1892
        %v2415 = vunpack.c.h.b16 %v1892
        %v2416 = vunpack.c.l.b16 %v1893
        %v2417 = vunpack.c.h.b16 %v1893
        %v2418 = vunpack.c.l.b16 %v1894
        %v2419 = vunpack.c.h.b16 %v1894
        %v2420 = vunpack.c.l.b16 %v1895
        %v2421 = vunpack.c.h.b16 %v1895
        %v2422 = vunpack.c.l.b16 %v1896
        %v2423 = vunpack.c.h.b16 %v1896
        %v2424 = vunpack.c.l.b16 %v1897
        %v2425 = vunpack.c.h.b16 %v1897
        %v2426 = vunpack.c.l.b16 %v1898
        %v2427 = vunpack.c.h.b16 %v1898
        %v2428 = vunpack.c.l.b16 %v1899
        %v2429 = vunpack.c.h.b16 %v1899
        %v2430 = vunpack.c.l.b16 %v1900
        %v2431 = vunpack.c.h.b16 %v1900
        %v2432 = vunpack.c.l.b16 %v1901
        %v2433 = vunpack.c.h.b16 %v1901
        %v2434 = vunpack.c.l.b16 %v1902
        %v2435 = vunpack.c.h.b16 %v1902
        %v2436 = vunpack.c.l.b16 %v1903
        %v2437 = vunpack.c.h.b16 %v1903
        %v2438 = vunpack.c.l.b16 %v1904
        %v2439 = vunpack.c.h.b16 %v1904
        %v2440 = vunpack.c.l.b16 %v1905
        %v2441 = vunpack.c.h.b16 %v1905
        %v2442 = vunpack.c.l.b16 %v1906
        %v2443 = vunpack.c.h.b16 %v1906
        %v2444 = vunpack.c.l.b16 %v1907
        %v2445 = vunpack.c.h.b16 %v1907
        %v2446 = vunpack.c.l.b16 %v1908
        %v2447 = vunpack.c.h.b16 %v1908
        %v2448 = vunpack.c.l.b16 %v1909
        %v2449 = vunpack.c.h.b16 %v1909
        %v2450 = vunpack.c.l.b16 %v1910
        %v2451 = vunpack.c.h.b16 %v1910
        %v2452 = vunpack.c.l.b16 %v1911
        %v2453 = vunpack.c.h.b16 %v1911
        %v2454 = vunpack.c.l.b16 %v1912
        %v2455 = vunpack.c.h.b16 %v1912
        %v2456 = vunpack.c.l.b16 %v1913
        %v2457 = vunpack.c.h.b16 %v1913
        %v2458 = vunpack.c.l.b16 %v1914
        %v2459 = vunpack.c.h.b16 %v1914
        %v2460 = vunpack.c.l.b16 %v1915
        %v2461 = vunpack.c.h.b16 %v1915
        %v2462 = vunpack.c.l.b16 %v1916
        %v2463 = vunpack.c.h.b16 %v1916
        %v2464 = vunpack.c.l.b16 %v1917
        %v2465 = vunpack.c.h.b16 %v1917
        %v2466 = vunpack.c.l.b16 %v1918
        %v2467 = vunpack.c.h.b16 %v1918
        %v2468 = vunpack.c.l.b16 %v1919
        %v2469 = vunpack.c.h.b16 %v1919
        %v2470 = vunpack.c.l.b16 %v1920
        %v2471 = vunpack.c.h.b16 %v1920
        %v2472 = vunpack.c.l.b16 %v1921
        %v2473 = vunpack.c.h.b16 %v1921
        %v2474 = vunpack.c.l.b16 %v1922
        %v2475 = vunpack.c.h.b16 %v1922
        %v2476 = vunpack.c.l.b16 %v1923
        %v2477 = vunpack.c.h.b16 %v1923
        %v2478 = vunpack.c.l.b16 %v1924
        %v2479 = vunpack.c.h.b16 %v1924
        %v2480 = vunpack.c.l.b16 %v1925
        %v2481 = vunpack.c.h.b16 %v1925
        %v2482 = vunpack.c.l.b16 %v1926
        %v2483 = vunpack.c.h.b16 %v1926
        %v2484 = vunpack.c.l.b16 %v1927
        %v2485 = vunpack.c.h.b16 %v1927
        %v2486 = vunpack.c.l.b16 %v1928
        %v2487 = vunpack.c.h.b16 %v1928
        %v2488 = vunpack.c.l.b16 %v1929
        %v2489 = vunpack.c.h.b16 %v1929
        %v2490 = vunpack.c.l.b16 %v1930
        %v2491 = vunpack.c.h.b16 %v1930
        %v2492 = vunpack.c.l.b16 %v1931
        %v2493 = vunpack.c.h.b16 %v1931
        %v2494 = vunpack.c.l.b16 %v1932
        %v2495 = vunpack.c.h.b16 %v1932
        %v2496 = vunpack.c.l.b16 %v1933
        %v2497 = vunpack.c.h.b16 %v1933
        %v2498 = vunpack.c.l.b16 %v1934
        %v2499 = vunpack.c.h.b16 %v1934
        %v2500 = vunpack.c.l.b16 %v1935
        %v2501 = vunpack.c.h.b16 %v1935
        %v2502 = vunpack.c.l.b16 %v1936
        %v2503 = vunpack.c.h.b16 %v1936
        %v2504 = vunpack.c.l.b16 %v1937
        %v2505 = vunpack.c.h.b16 %v1937
        %v2506 = vunpack.c.l.b16 %v1938
        %v2507 = vunpack.c.h.b16 %v1938
        %v2508 = vunpack.c.l.b16 %v1939
        %v2509 = vunpack.c.h.b16 %v1939
        %v2510 = vunpack.c.l.b16 %v1940
        %v2511 = vunpack.c.h.b16 %v1940
        %v2512 = vunpack.c.l.b16 %v1941
        %v2513 = vunpack.c.h.b16 %v1941
        %v2514 = vunpack.c.l.b16 %v1942
        %v2515 = vunpack.c.h.b16 %v1942
        %v2516 = vunpack.c.l.b16 %v1943
        %v2517 = vunpack.c.h.b16 %v1943
        %v2518 = vunpack.c.l.b16 %v1944
        %v2519 = vunpack.c.h.b16 %v1944
        %v2520 = vunpack.c.l.b16 %v1945
        %v2521 = vunpack.c.h.b16 %v1945
        %v2522 = vunpack.c.l.b16 %v1946
        %v2523 = vunpack.c.h.b16 %v1946
        %v2524 = vunpack.c.l.b16 %v1947
        %v2525 = vunpack.c.h.b16 %v1947
        %v2526 = vunpack.c.l.b16 %v1948
        %v2527 = vunpack.c.h.b16 %v1948
        %v2528 = vunpack.c.l.b16 %v1949
        %v2529 = vunpack.c.h.b16 %v1949
        %v2530 = vpack.c.b16 %v2214, %v2210
        %v2531 = vpack.c.b16 %v2215, %v2211
        %v2532 = vpack.c.b16 %v2216, %v2212
        %v2533 = vpack.c.b16 %v2217, %v2213
        %v2534 = vpack.c.b16 %v2222, %v2218
        %v2535 = vpack.c.b16 %v2223, %v2219
        %v2536 = vpack.c.b16 %v2224, %v2220
        %v2537 = vpack.c.b16 %v2225, %v2221
        %v2538 = vpack.c.b16 %v2230, %v2226
        %v2539 = vpack.c.b16 %v2231, %v2227
        %v2540 = vpack.c.b16 %v2232, %v2228
        %v2541 = vpack.c.b16 %v2233, %v2229
        %v2542 = vpack.c.b16 %v2238, %v2234
        %v2543 = vpack.c.b16 %v2239, %v2235
        %v2544 = vpack.c.b16 %v2240, %v2236
        %v2545 = vpack.c.b16 %v2241, %v2237
        %v2546 = vpack.c.b16 %v2246, %v2242
        %v2547 = vpack.c.b16 %v2247, %v2243
        %v2548 = vpack.c.b16 %v2248, %v2244
        %v2549 = vpack.c.b16 %v2249, %v2245
        %v2550 = vpack.c.b16 %v2254, %v2250
        %v2551 = vpack.c.b16 %v2255, %v2251
        %v2552 = vpack.c.b16 %v2256, %v2252
        %v2553 = vpack.c.b16 %v2257, %v2253
        %v2554 = vpack.c.b16 %v2262, %v2258
        %v2555 = vpack.c.b16 %v2263, %v2259
        %v2556 = vpack.c.b16 %v2264, %v2260
        %v2557 = vpack.c.b16 %v2265, %v2261
        %v2558 = vpack.c.b16 %v2270, %v2266
        %v2559 = vpack.c.b16 %v2271, %v2267
        %v2560 = vpack.c.b16 %v2272, %v2268
        %v2561 = vpack.c.b16 %v2273, %v2269
        %v2562 = vpack.c.b16 %v2278, %v2274
        %v2563 = vpack.c.b16 %v2279, %v2275
        %v2564 = vpack.c.b16 %v2280, %v2276
        %v2565 = vpack.c.b16 %v2281, %v2277
        %v2566 = vpack.c.b16 %v2286, %v2282
        %v2567 = vpack.c.b16 %v2287, %v2283
        %v2568 = vpack.c.b16 %v2288, %v2284
        %v2569 = vpack.c.b16 %v2289, %v2285
        %v2570 = vpack.c.b16 %v2294, %v2290
        %v2571 = vpack.c.b16 %v2295, %v2291
        %v2572 = vpack.c.b16 %v2296, %v2292
        %v2573 = vpack.c.b16 %v2297, %v2293
        %v2574 = vpack.c.b16 %v2302, %v2298
        %v2575 = vpack.c.b16 %v2303, %v2299
        %v2576 = vpack.c.b16 %v2304, %v2300
        %v2577 = vpack.c.b16 %v2305, %v2301
        %v2578 = vpack.c.b16 %v2310, %v2306
        %v2579 = vpack.c.b16 %v2311, %v2307
        %v2580 = vpack.c.b16 %v2312, %v2308
        %v2581 = vpack.c.b16 %v2313, %v2309
        %v2582 = vpack.c.b16 %v2318, %v2314
        %v2583 = vpack.c.b16 %v2319, %v2315
        %v2584 = vpack.c.b16 %v2320, %v2316
        %v2585 = vpack.c.b16 %v2321, %v2317
        %v2586 = vpack.c.b16 %v2326, %v2322
        %v2587 = vpack.c.b16 %v2327, %v2323
        %v2588 = vpack.c.b16 %v2328, %v2324
        %v2589 = vpack.c.b16 %v2329, %v2325
        %v2590 = vpack.c.b16 %v2334, %v2330
        %v2591 = vpack.c.b16 %v2335, %v2331
        %v2592 = vpack.c.b16 %v2336, %v2332
        %v2593 = vpack.c.b16 %v2337, %v2333
        %v2594 = vpack.c.b16 %v2342, %v2338
        %v2595 = vpack.c.b16 %v2343, %v2339
        %v2596 = vpack.c.b16 %v2344, %v2340
        %v2597 = vpack.c.b16 %v2345, %v2341
        %v2598 = vpack.c.b16 %v2350, %v2346
        %v2599 = vpack.c.b16 %v2351, %v2347
        %v2600 = vpack.c.b16 %v2352, %v2348
        %v2601 = vpack.c.b16 %v2353, %v2349
        %v2602 = vpack.c.b16 %v2358, %v2354
        %v2603 = vpack.c.b16 %v2359, %v2355
        %v2604 = vpack.c.b16 %v2360, %v2356
        %v2605 = vpack.c.b16 %v2361, %v2357
        %v2606 = vpack.c.b16 %v2366, %v2362
        %v2607 = vpack.c.b16 %v2367, %v2363
        %v2608 = vpack.c.b16 %v2368, %v2364
        %v2609 = vpack.c.b16 %v2369, %v2365
        %v2610 = vpack.c.b16 %v2374, %v2370
        %v2611 = vpack.c.b16 %v2375, %v2371
        %v2612 = vpack.c.b16 %v2376, %v2372
        %v2613 = vpack.c.b16 %v2377, %v2373
        %v2614 = vpack.c.b16 %v2382, %v2378
        %v2615 = vpack.c.b16 %v2383, %v2379
        %v2616 = vpack.c.b16 %v2384, %v2380
        %v2617 = vpack.c.b16 %v2385, %v2381
        %v2618 = vpack.c.b16 %v2390, %v2386
        %v2619 = vpack.c.b16 %v2391, %v2387
        %v2620 = vpack.c.b16 %v2392, %v2388
        %v2621 = vpack.c.b16 %v2393, %v2389
        %v2622 = vpack.c.b16 %v2398, %v2394
        %v2623 = vpack.c.b16 %v2399, %v2395
        %v2624 = vpack.c.b16 %v2400, %v2396
        %v2625 = vpack.c.b16 %v2401, %v2397
        %v2626 = vpack.c.b16 %v2406, %v2402
        %v2627 = vpack.c.b16 %v2407, %v2403
        %v2628 = vpack.c.b16 %v2408, %v2404
        %v2629 = vpack.c.b16 %v2409, %v2405
        %v2630 = vpack.c.b16 %v2414, %v2410
        %v2631 = vpack.c.b16 %v2415, %v2411
        %v2632 = vpack.c.b16 %v2416, %v2412
        %v2633 = vpack.c.b16 %v2417, %v2413
        %v2634 = vpack.c.b16 %v2422, %v2418
        %v2635 = vpack.c.b16 %v2423, %v2419
        %v2636 = vpack.c.b16 %v2424, %v2420
        %v2637 = vpack.c.b16 %v2425, %v2421
        %v2638 = vpack.c.b16 %v2430, %v2426
        %v2639 = vpack.c.b16 %v2431, %v2427
        %v2640 = vpack.c.b16 %v2432, %v2428
        %v2641 = vpack.c.b16 %v2433, %v2429
        %v2642 = vpack.c.b16 %v2438, %v2434
        %v2643 = vpack.c.b16 %v2439, %v2435
        %v2644 = vpack.c.b16 %v2440, %v2436
        %v2645 = vpack.c.b16 %v2441, %v2437
        %v2646 = vpack.c.b16 %v2446, %v2442
        %v2647 = vpack.c.b16 %v2447, %v2443
        %v2648 = vpack.c.b16 %v2448, %v2444
        %v2649 = vpack.c.b16 %v2449, %v2445
        %v2650 = vpack.c.b16 %v2454, %v2450
        %v2651 = vpack.c.b16 %v2455, %v2451
        %v2652 = vpack.c.b16 %v2456, %v2452
        %v2653 = vpack.c.b16 %v2457, %v2453
        %v2654 = vpack.c.b16 %v2462, %v2458
        %v2655 = vpack.c.b16 %v2463, %v2459
        %v2656 = vpack.c.b16 %v2464, %v2460
        %v2657 = vpack.c.b16 %v2465, %v2461
        %v2658 = vpack.c.b16 %v2470, %v2466
        %v2659 = vpack.c.b16 %v2471, %v2467
        %v2660 = vpack.c.b16 %v2472, %v2468
        %v2661 = vpack.c.b16 %v2473, %v2469
        %v2662 = vpack.c.b16 %v2478, %v2474
        %v2663 = vpack.c.b16 %v2479, %v2475
        %v2664 = vpack.c.b16 %v2480, %v2476
        %v2665 = vpack.c.b16 %v2481, %v2477
        %v2666 = vpack.c.b16 %v2486, %v2482
        %v2667 = vpack.c.b16 %v2487, %v2483
        %v2668 = vpack.c.b16 %v2488, %v2484
        %v2669 = vpack.c.b16 %v2489, %v2485
        %v2670 = vpack.c.b16 %v2494, %v2490
        %v2671 = vpack.c.b16 %v2495, %v2491
        %v2672 = vpack.c.b16 %v2496, %v2492
        %v2673 = vpack.c.b16 %v2497, %v2493
        %v2674 = vpack.c.b16 %v2502, %v2498
        %v2675 = vpack.c.b16 %v2503, %v2499
        %v2676 = vpack.c.b16 %v2504, %v2500
        %v2677 = vpack.c.b16 %v2505, %v2501
        %v2678 = vpack.c.b16 %v2510, %v2506
        %v2679 = vpack.c.b16 %v2511, %v2507
        %v2680 = vpack.c.b16 %v2512, %v2508
        %v2681 = vpack.c.b16 %v2513, %v2509
        %v2682 = vpack.c.b16 %v2518, %v2514
        %v2683 = vpack.c.b16 %v2519, %v2515
        %v2684 = vpack.c.b16 %v2520, %v2516
        %v2685 = vpack.c.b16 %v2521, %v2517
        %v2686 = vpack.c.b16 %v2526, %v2522
        %v2687 = vpack.c.b16 %v2527, %v2523
        %v2688 = vpack.c.b16 %v2528, %v2524
        %v2689 = vpack.c.b16 %v2529, %v2525
        %2850 = vmatprep.subr.bf16.mxu0 %v2531
        %2851 = vmatpush1.bf16.msra.mxu0 %v2530
        %2852 = vmatprep.subr.bf16.mxu0 %v2535
        %2853 = vmatpush1.bf16.msra.mxu0 %v2534
        %2854 = vmatprep.subr.bf16.mxu0 %v2539
        %2855 = vmatpush1.bf16.msra.mxu0 %v2538
        %2856 = vmatprep.subr.bf16.mxu0 %v2543
        %2857 = vmatpush1.bf16.msra.mxu0 %v2542
        %2858 = vmatprep.subr.bf16.mxu0 %v2547
        %2859 = vmatpush1.bf16.msra.mxu0 %v2546
        %2860 = vmatprep.subr.bf16.mxu0 %v2551
        %2861 = vmatpush1.bf16.msra.mxu0 %v2550
        %2862 = vmatprep.subr.bf16.mxu0 %v2555
        %2863 = vmatpush1.bf16.msra.mxu0 %v2554
        %2864 = vmatprep.subr.bf16.mxu0 %v2559
        %2865 = vmatpush1.bf16.msra.mxu0 %v2558
        %2866 = vmatprep.subr.bf16.mxu0 %v2563
        %2867 = vmatpush1.bf16.msra.mxu0 %v2562
        %2868 = vmatprep.subr.bf16.mxu0 %v2567
        %2869 = vmatpush1.bf16.msra.mxu0 %v2566
        %2870 = vmatprep.subr.bf16.mxu0 %v2571
        %2871 = vmatpush1.bf16.msra.mxu0 %v2570
        %2872 = vmatprep.subr.bf16.mxu0 %v2575
        %2873 = vmatpush1.bf16.msra.mxu0 %v2574
        %2874 = vmatprep.subr.bf16.mxu0 %v2579
        %2875 = vmatpush1.bf16.msra.mxu0 %v2578
        %2876 = vmatprep.subr.bf16.mxu0 %v2583
        %2877 = vmatpush1.bf16.msra.mxu0 %v2582
        %2878 = vmatprep.subr.bf16.mxu0 %v2587
        %2879 = vmatpush1.bf16.msra.mxu0 %v2586
        %2880 = vmatprep.subr.bf16.mxu0 %v2591
        %2881 = vmatpush1.bf16.msra.mxu0 %v2590
        %2882 = vmatprep.mubr.bf16.mxu0 %v2008
        %2883 = vmatmul.mubr.bf16.gmra.mrb[0].mxu0 %v1996
        %v2884 = vpop.f32.mrb[0].mxu0
        %v2885 = vadd.f32 0.0, %v2884
        %v2886 = vpop.f32.mrb[0].mxu0
        %v2887 = vadd.f32 0.0, %v2886
        %v2888 = vpop.f32.mrb[0].mxu0
        %v2889 = vadd.f32 0.0, %v2888
        %v2890 = vpop.f32.mrb[0].mxu0
        %v2891 = vadd.f32 0.0, %v2890
        %2892 = vdwg.mxu0
        %2893 = vmatprep.subr.bf16.mxu0 %v2595
        %2894 = vmatpush1.bf16.msra.mxu0 %v2594
        %2895 = vmatprep.subr.bf16.mxu0 %v2599
        %2896 = vmatpush1.bf16.msra.mxu0 %v2598
        %2897 = vmatprep.subr.bf16.mxu0 %v2603
        %2898 = vmatpush1.bf16.msra.mxu0 %v2602
        %2899 = vmatprep.subr.bf16.mxu0 %v2607
        %2900 = vmatpush1.bf16.msra.mxu0 %v2606
        %2901 = vmatprep.subr.bf16.mxu0 %v2611
        %2902 = vmatpush1.bf16.msra.mxu0 %v2610
        %2903 = vmatprep.subr.bf16.mxu0 %v2615
        %2904 = vmatpush1.bf16.msra.mxu0 %v2614
        %2905 = vmatprep.subr.bf16.mxu0 %v2619
        %2906 = vmatpush1.bf16.msra.mxu0 %v2618
        %2907 = vmatprep.subr.bf16.mxu0 %v2623
        %2908 = vmatpush1.bf16.msra.mxu0 %v2622
        %2909 = vmatprep.subr.bf16.mxu0 %v2627
        %2910 = vmatpush1.bf16.msra.mxu0 %v2626
        %2911 = vmatprep.subr.bf16.mxu0 %v2631
        %2912 = vmatpush1.bf16.msra.mxu0 %v2630
        %2913 = vmatprep.subr.bf16.mxu0 %v2635
        %2914 = vmatpush1.bf16.msra.mxu0 %v2634
        %2915 = vmatprep.subr.bf16.mxu0 %v2639
        %2916 = vmatpush1.bf16.msra.mxu0 %v2638
        %2917 = vmatprep.subr.bf16.mxu0 %v2643
        %2918 = vmatpush1.bf16.msra.mxu0 %v2642
        %2919 = vmatprep.subr.bf16.mxu0 %v2647
        %2920 = vmatpush1.bf16.msra.mxu0 %v2646
        %2921 = vmatprep.subr.bf16.mxu0 %v2651
        %2922 = vmatpush1.bf16.msra.mxu0 %v2650
        %2923 = vmatprep.subr.bf16.mxu0 %v2655
        %2924 = vmatpush1.bf16.msra.mxu0 %v2654
        %2925 = vmatprep.mubr.bf16.mxu0 %v2032
        %2926 = vmatmul.mubr.bf16.gmra.mrb[0].mxu0 %v2020
        %v2927 = vpop.f32.mrb[0].mxu0
        %v2928 = vadd.f32 %v2885, %v2927
        %v2929 = vpop.f32.mrb[0].mxu0
        %v2930 = vadd.f32 %v2887, %v2929
        %v2931 = vpop.f32.mrb[0].mxu0
        %v2932 = vadd.f32 %v2889, %v2931
        %v2933 = vpop.f32.mrb[0].mxu0
        %v2934 = vadd.f32 %v2891, %v2933
        %2935 = vdwg.mxu0
        %2936 = vmatprep.subr.bf16.mxu0 %v2659
        %2937 = vmatpush1.bf16.msra.mxu0 %v2658
        %2938 = vmatprep.subr.bf16.mxu0 %v2663
        %2939 = vmatpush1.bf16.msra.mxu0 %v2662
        %2940 = vmatprep.subr.bf16.mxu0 %v2667
        %2941 = vmatpush1.bf16.msra.mxu0 %v2666
        %2942 = vmatprep.subr.bf16.mxu0 %v2671
        %2943 = vmatpush1.bf16.msra.mxu0 %v2670
        %2944 = vmatprep.subr.bf16.mxu0 %v2675
        %2945 = vmatpush1.bf16.msra.mxu0 %v2674
        %2946 = vmatprep.subr.bf16.mxu0 %v2679
        %2947 = vmatpush1.bf16.msra.mxu0 %v2678
        %2948 = vmatprep.subr.bf16.mxu0 %v2683
        %2949 = vmatpush1.bf16.msra.mxu0 %v2682
        %2950 = vmatprep.subr.bf16.mxu0 %v2687
        %2951 = vmatpush1.bf16.msra.mxu0 %v2686
        %2952 = vmatprep.subr.bf16.mxu0 0
        %2953 = vmatpush1.bf16.msra.mxu0 0
        %2954 = vmatprep.subr.bf16.mxu0 0
        %2955 = vmatpush1.bf16.msra.mxu0 0
        %2956 = vmatprep.subr.bf16.mxu0 0
        %2957 = vmatpush1.bf16.msra.mxu0 0
        %2958 = vmatprep.subr.bf16.mxu0 0
        %2959 = vmatpush1.bf16.msra.mxu0 0
        %2960 = vmatprep.subr.bf16.mxu0 0
        %2961 = vmatpush1.bf16.msra.mxu0 0
        %2962 = vmatprep.subr.bf16.mxu0 0
        %2963 = vmatpush1.bf16.msra.mxu0 0
        %2964 = vmatprep.subr.bf16.mxu0 0
        %2965 = vmatpush1.bf16.msra.mxu0 0
        %2966 = vmatprep.subr.bf16.mxu0 0
        %2967 = vmatpush1.bf16.msra.mxu0 0
        %2968 = vmatprep.mubr.bf16.mxu0 0
        %2969 = vmatmul.mubr.bf16.gmra.mrb[0].mxu0 %v2044
        %v2970 = vpop.f32.mrb[0].mxu0
        %v2971 = vadd.f32 %v2928, %v2970
        %v2972 = vpop.f32.mrb[0].mxu0
        %v2973 = vadd.f32 %v2930, %v2972
        %v2974 = vpop.f32.mrb[0].mxu0
        %v2975 = vadd.f32 %v2932, %v2974
        %v2976 = vpop.f32.mrb[0].mxu0
        %v2977 = vadd.f32 %v2934, %v2976
        %2978 = vdwg.mxu0
        %2979 = vmatprep.subr.bf16.mxu0 %v2533
        %2980 = vmatpush1.bf16.msra.mxu0 %v2532
        %2981 = vmatprep.subr.bf16.mxu0 %v2537
        %2982 = vmatpush1.bf16.msra.mxu0 %v2536
        %2983 = vmatprep.subr.bf16.mxu0 %v2541
        %2984 = vmatpush1.bf16.msra.mxu0 %v2540
        %2985 = vmatprep.subr.bf16.mxu0 %v2545
        %2986 = vmatpush1.bf16.msra.mxu0 %v2544
        %2987 = vmatprep.subr.bf16.mxu0 %v2549
        %2988 = vmatpush1.bf16.msra.mxu0 %v2548
        %2989 = vmatprep.subr.bf16.mxu0 %v2553
        %2990 = vmatpush1.bf16.msra.mxu0 %v2552
        %2991 = vmatprep.subr.bf16.mxu0 %v2557
        %2992 = vmatpush1.bf16.msra.mxu0 %v2556
        %2993 = vmatprep.subr.bf16.mxu0 %v2561
        %2994 = vmatpush1.bf16.msra.mxu0 %v2560
        %2995 = vmatprep.subr.bf16.mxu0 %v2565
        %2996 = vmatpush1.bf16.msra.mxu0 %v2564
        %2997 = vmatprep.subr.bf16.mxu0 %v2569
        %2998 = vmatpush1.bf16.msra.mxu0 %v2568
        %2999 = vmatprep.subr.bf16.mxu0 %v2573
        %3000 = vmatpush1.bf16.msra.mxu0 %v2572
        %3001 = vmatprep.subr.bf16.mxu0 %v2577
        %3002 = vmatpush1.bf16.msra.mxu0 %v2576
        %3003 = vmatprep.subr.bf16.mxu0 %v2581
        %3004 = vmatpush1.bf16.msra.mxu0 %v2580
        %3005 = vmatprep.subr.bf16.mxu0 %v2585
        %3006 = vmatpush1.bf16.msra.mxu0 %v2584
        %3007 = vmatprep.subr.bf16.mxu0 %v2589
        %3008 = vmatpush1.bf16.msra.mxu0 %v2588
        %3009 = vmatprep.subr.bf16.mxu0 %v2593
        %3010 = vmatpush1.bf16.msra.mxu0 %v2592
        %3011 = vmatprep.mubr.bf16.mxu0 %v2008
        %3012 = vmatmul.mubr.bf16.gmra.mrb[0].mxu0 %v1996
        %v3013 = vpop.f32.mrb[0].mxu0
        %v3014 = vadd.f32 0.0, %v3013
        %v3015 = vpop.f32.mrb[0].mxu0
        %v3016 = vadd.f32 0.0, %v3015
        %v3017 = vpop.f32.mrb[0].mxu0
        %v3018 = vadd.f32 0.0, %v3017
        %v3019 = vpop.f32.mrb[0].mxu0
        %v3020 = vadd.f32 0.0, %v3019
        %3021 = vdwg.mxu0
        %3022 = vmatprep.subr.bf16.mxu0 %v2597
        %3023 = vmatpush1.bf16.msra.mxu0 %v2596
        %3024 = vmatprep.subr.bf16.mxu0 %v2601
        %3025 = vmatpush1.bf16.msra.mxu0 %v2600
        %3026 = vmatprep.subr.bf16.mxu0 %v2605
        %3027 = vmatpush1.bf16.msra.mxu0 %v2604
        %3028 = vmatprep.subr.bf16.mxu0 %v2609
        %3029 = vmatpush1.bf16.msra.mxu0 %v2608
        %3030 = vmatprep.subr.bf16.mxu0 %v2613
        %3031 = vmatpush1.bf16.msra.mxu0 %v2612
        %3032 = vmatprep.subr.bf16.mxu0 %v2617
        %3033 = vmatpush1.bf16.msra.mxu0 %v2616
        %3034 = vmatprep.subr.bf16.mxu0 %v2621
        %3035 = vmatpush1.bf16.msra.mxu0 %v2620
        %3036 = vmatprep.subr.bf16.mxu0 %v2625
        %3037 = vmatpush1.bf16.msra.mxu0 %v2624
        %3038 = vmatprep.subr.bf16.mxu0 %v2629
        %3039 = vmatpush1.bf16.msra.mxu0 %v2628
        %3040 = vmatprep.subr.bf16.mxu0 %v2633
        %3041 = vmatpush1.bf16.msra.mxu0 %v2632
        %3042 = vmatprep.subr.bf16.mxu0 %v2637
        %3043 = vmatpush1.bf16.msra.mxu0 %v2636
        %3044 = vmatprep.subr.bf16.mxu0 %v2641
        %3045 = vmatpush1.bf16.msra.mxu0 %v2640
        %3046 = vmatprep.subr.bf16.mxu0 %v2645
        %3047 = vmatpush1.bf16.msra.mxu0 %v2644
        %3048 = vmatprep.subr.bf16.mxu0 %v2649
        %3049 = vmatpush1.bf16.msra.mxu0 %v2648
        %3050 = vmatprep.subr.bf16.mxu0 %v2653
        %3051 = vmatpush1.bf16.msra.mxu0 %v2652
        %3052 = vmatprep.subr.bf16.mxu0 %v2657
        %3053 = vmatpush1.bf16.msra.mxu0 %v2656
        %3054 = vmatprep.mubr.bf16.mxu0 %v2032
        %3055 = vmatmul.mubr.bf16.gmra.mrb[0].mxu0 %v2020
        %v3056 = vpop.f32.mrb[0].mxu0
        %v3057 = vadd.f32 %v3014, %v3056
        %v3058 = vpop.f32.mrb[0].mxu0
        %v3059 = vadd.f32 %v3016, %v3058
        %v3060 = vpop.f32.mrb[0].mxu0
        %v3061 = vadd.f32 %v3018, %v3060
        %v3062 = vpop.f32.mrb[0].mxu0
        %v3063 = vadd.f32 %v3020, %v3062
        %3064 = vdwg.mxu0
        %3065 = vmatprep.subr.bf16.mxu0 %v2661
        %3066 = vmatpush1.bf16.msra.mxu0 %v2660
        %3067 = vmatprep.subr.bf16.mxu0 %v2665
        %3068 = vmatpush1.bf16.msra.mxu0 %v2664
        %3069 = vmatprep.subr.bf16.mxu0 %v2669
        %3070 = vmatpush1.bf16.msra.mxu0 %v2668
        %3071 = vmatprep.subr.bf16.mxu0 %v2673
        %3072 = vmatpush1.bf16.msra.mxu0 %v2672
        %3073 = vmatprep.subr.bf16.mxu0 %v2677
        %3074 = vmatpush1.bf16.msra.mxu0 %v2676
        %3075 = vmatprep.subr.bf16.mxu0 %v2681
        %3076 = vmatpush1.bf16.msra.mxu0 %v2680
        %3077 = vmatprep.subr.bf16.mxu0 %v2685
        %3078 = vmatpush1.bf16.msra.mxu0 %v2684
        %3079 = vmatprep.subr.bf16.mxu0 %v2689
        %3080 = vmatpush1.bf16.msra.mxu0 %v2688
        %3081 = vmatprep.subr.bf16.mxu0 0
        %3082 = vmatpush1.bf16.msra.mxu0 0
        %3083 = vmatprep.subr.bf16.mxu0 0
        %3084 = vmatpush1.bf16.msra.mxu0 0
        %3085 = vmatprep.subr.bf16.mxu0 0
        %3086 = vmatpush1.bf16.msra.mxu0 0
        %3087 = vmatprep.subr.bf16.mxu0 0
        %3088 = vmatpush1.bf16.msra.mxu0 0
        %3089 = vmatprep.subr.bf16.mxu0 0
        %3090 = vmatpush1.bf16.msra.mxu0 0
        %3091 = vmatprep.subr.bf16.mxu0 0
        %3092 = vmatpush1.bf16.msra.mxu0 0
        %3093 = vmatprep.subr.bf16.mxu0 0
        %3094 = vmatpush1.bf16.msra.mxu0 0
        %3095 = vmatprep.subr.bf16.mxu0 0
        %3096 = vmatpush1.bf16.msra.mxu0 0
        %3097 = vmatprep.mubr.bf16.mxu0 0
        %3098 = vmatmul.mubr.bf16.gmra.mrb[0].mxu0 %v2044
        %v3099 = vpop.f32.mrb[0].mxu0
        %v3100 = vadd.f32 %v3057, %v3099
        %v3101 = vpop.f32.mrb[0].mxu0
        %v3102 = vadd.f32 %v3059, %v3101
        %v3103 = vpop.f32.mrb[0].mxu0
        %v3104 = vadd.f32 %v3061, %v3103
        %v3105 = vpop.f32.mrb[0].mxu0
        %v3106 = vadd.f32 %v3063, %v3105
        %3107 = vdwg.mxu0
        %v3108 = vadd.f32 %v1781, %v2971
        %v3109 = vadd.f32 %v1782, %v2973
        %v3110 = vadd.f32 %v1783, %v3100
        %v3111 = vadd.f32 %v1784, %v3102
        %v3112 = vadd.f32 %v1785, %v2975
        %v3113 = vadd.f32 %v1786, %v2977
        %v3114 = vadd.f32 %v1787, %v3104
        %v3115 = vadd.f32 %v1788, %v3106
        %3116 = vst [vmem:[%s294] sm:$0xff] %v3108
        %3117 = vst [vmem:[%s294 + $0x8] sm:$0xff] %v3109
        %3118 = vst [vmem:[%s294 + $0x10] sm:$0xff] %v3110
        %3119 = vst [vmem:[%s294 + $0x18] sm:$0xff] %v3111
        %3120 = vst [vmem:[%s294 + $0x20] sm:$0xff] %v3112
        %3121 = vst [vmem:[%s294 + $0x28] sm:$0xff] %v3113
        %3122 = vst [vmem:[%s294 + $0x30] sm:$0xff] %v3114
        %3123 = vst [vmem:[%s294 + $0x38] sm:$0xff] %v3115
        %v3124 = vld [vmem:[#allocation2] sm:$0xee]
        %v3125 = vld [vmem:[#allocation2 + $0x8] sm:$0xee]
        %v3126 = vld [vmem:[#allocation2 + $0x10] sm:$0xe]
        %v3127 = vld [vmem:[#allocation2 + $0x14] sm:$0xff]
        %v3128 = vld [vmem:[#allocation2 + $0x1c] sm:$0xff]
        %v3129 = vld [vmem:[#allocation2 + $0x24] sm:$0xf]
        %v3130 = vld [vmem:[#allocation2 + $0x28] sm:$0x11]
        %v3131 = vld [vmem:[#allocation2 + $0x30] sm:$0x11]
        %v3132 = vld [vmem:[#allocation2 + $0x38] sm:$0x1]
        %v3133 = vld [vmem:[%s294] sm:$0xff]
        %v3134 = vld [vmem:[%s294 + $0x8] sm:$0xff]
        %v3135 = vld [vmem:[%s294 + $0x10] sm:$0xff]
        %v3136 = vld [vmem:[%s294 + $0x18] sm:$0xff]
        %v3137 = vld [vmem:[%s294 + $0x20] sm:$0xff]
        %v3138 = vld [vmem:[%s294 + $0x28] sm:$0xff]
        %v3139 = vld [vmem:[%s294 + $0x30] sm:$0xff]
        %v3140 = vld [vmem:[%s294 + $0x38] sm:$0xff]
        %s3141 = scalar_lea.vmem [#allocation9], 2560
        %v3142 = vld [vmem:[%s3141] sm:$0xff]
        %v3143 = vld [vmem:[%s3141 + $0x8] sm:$0xff]
        %v3144 = vld [vmem:[%s3141 + $0x10] sm:$0xff]
        %v3145 = vld [vmem:[%s3141 + $0x18] sm:$0xff]
        %v3146 = vld [vmem:[%s3141 + $0x20] sm:$0xff]
        %v3147 = vld [vmem:[%s3141 + $0x28] sm:$0xff]
        %v3148 = vld [vmem:[%s3141 + $0x30] sm:$0xff]
        %v3149 = vld [vmem:[%s3141 + $0x38] sm:$0xff]
        %v3150 = vld [vmem:[%s3141 + $0x40] sm:$0xff]
        %v3151 = vld [vmem:[%s3141 + $0x48] sm:$0xff]
        %v3152 = vld [vmem:[%s3141 + $0x50] sm:$0xff]
        %v3153 = vld [vmem:[%s3141 + $0x58] sm:$0xff]
        %v3154 = vld [vmem:[%s3141 + $0x60] sm:$0xff]
        %v3155 = vld [vmem:[%s3141 + $0x68] sm:$0xff]
        %v3156 = vld [vmem:[%s3141 + $0x70] sm:$0xff]
        %v3157 = vld [vmem:[%s3141 + $0x78] sm:$0xff]
        %v3158 = vld [vmem:[%s3141 + $0x80] sm:$0xff]
        %v3159 = vld [vmem:[%s3141 + $0x88] sm:$0xff]
        %v3160 = vld [vmem:[%s3141 + $0x90] sm:$0xff]
        %v3161 = vld [vmem:[%s3141 + $0x98] sm:$0xff]
        %v3162 = vld [vmem:[%s3141 + $0xa0] sm:$0xff]
        %v3163 = vld [vmem:[%s3141 + $0xa8] sm:$0xff]
        %v3164 = vld [vmem:[%s3141 + $0xb0] sm:$0xff]
        %v3165 = vld [vmem:[%s3141 + $0xb8] sm:$0xff]
        %v3166 = vld [vmem:[%s3141 + $0xc0] sm:$0xff]
        %v3167 = vld [vmem:[%s3141 + $0xc8] sm:$0xff]
        %v3168 = vld [vmem:[%s3141 + $0xd0] sm:$0xff]
        %v3169 = vld [vmem:[%s3141 + $0xd8] sm:$0xff]
        %v3170 = vld [vmem:[%s3141 + $0xe0] sm:$0xff]
        %v3171 = vld [vmem:[%s3141 + $0xe8] sm:$0xff]
        %v3172 = vld [vmem:[%s3141 + $0xf0] sm:$0xff]
        %v3173 = vld [vmem:[%s3141 + $0xf8] sm:$0xff]
        %v3174 = vld [vmem:[%s3141 + $0x100] sm:$0xff]
        %v3175 = vld [vmem:[%s3141 + $0x108] sm:$0xff]
        %v3176 = vld [vmem:[%s3141 + $0x110] sm:$0xff]
        %v3177 = vld [vmem:[%s3141 + $0x118] sm:$0xff]
        %v3178 = vld [vmem:[%s3141 + $0x120] sm:$0xff]
        %v3179 = vld [vmem:[%s3141 + $0x128] sm:$0xff]
        %v3180 = vld [vmem:[%s3141 + $0x130] sm:$0xff]
        %v3181 = vld [vmem:[%s3141 + $0x138] sm:$0xff]
        %v3182 = vld [vmem:[%s3141 + $0x140] sm:$0xff]
        %v3183 = vld [vmem:[%s3141 + $0x148] sm:$0xff]
        %v3184 = vld [vmem:[%s3141 + $0x150] sm:$0xff]
        %v3185 = vld [vmem:[%s3141 + $0x158] sm:$0xff]
        %v3186 = vld [vmem:[%s3141 + $0x160] sm:$0xff]
        %v3187 = vld [vmem:[%s3141 + $0x168] sm:$0xff]
        %v3188 = vld [vmem:[%s3141 + $0x170] sm:$0xff]
        %v3189 = vld [vmem:[%s3141 + $0x178] sm:$0xff]
        %v3190 = vld [vmem:[%s3141 + $0x180] sm:$0xff]
        %v3191 = vld [vmem:[%s3141 + $0x188] sm:$0xff]
        %v3192 = vld [vmem:[%s3141 + $0x190] sm:$0xff]
        %v3193 = vld [vmem:[%s3141 + $0x198] sm:$0xff]
        %v3194 = vld [vmem:[%s3141 + $0x1a0] sm:$0xff]
        %v3195 = vld [vmem:[%s3141 + $0x1a8] sm:$0xff]
        %v3196 = vld [vmem:[%s3141 + $0x1b0] sm:$0xff]
        %v3197 = vld [vmem:[%s3141 + $0x1b8] sm:$0xff]
        %v3198 = vld [vmem:[%s3141 + $0x1c0] sm:$0xff]
        %v3199 = vld [vmem:[%s3141 + $0x1c8] sm:$0xff]
        %v3200 = vld [vmem:[%s3141 + $0x1d0] sm:$0xff]
        %v3201 = vld [vmem:[%s3141 + $0x1d8] sm:$0xff]
        %v3202 = vld [vmem:[%s3141 + $0x1e0] sm:$0xff]
        %v3203 = vld [vmem:[%s3141 + $0x1e8] sm:$0xff]
        %v3204 = vld [vmem:[%s3141 + $0x1f0] sm:$0xff]
        %v3205 = vld [vmem:[%s3141 + $0x1f8] sm:$0xff]
        %v3206 = vld [vmem:[%s3141 + $0x200] sm:$0xff]
        %v3207 = vld [vmem:[%s3141 + $0x208] sm:$0xff]
        %v3208 = vld [vmem:[%s3141 + $0x210] sm:$0xff]
        %v3209 = vld [vmem:[%s3141 + $0x218] sm:$0xff]
        %v3210 = vld [vmem:[%s3141 + $0x220] sm:$0xff]
        %v3211 = vld [vmem:[%s3141 + $0x228] sm:$0xff]
        %v3212 = vld [vmem:[%s3141 + $0x230] sm:$0xff]
        %v3213 = vld [vmem:[%s3141 + $0x238] sm:$0xff]
        %v3214 = vld [vmem:[%s3141 + $0x240] sm:$0xff]
        %v3215 = vld [vmem:[%s3141 + $0x248] sm:$0xff]
        %v3216 = vld [vmem:[%s3141 + $0x250] sm:$0xff]
        %v3217 = vld [vmem:[%s3141 + $0x258] sm:$0xff]
        %v3218 = vld [vmem:[%s3141 + $0x260] sm:$0xff]
        %v3219 = vld [vmem:[%s3141 + $0x268] sm:$0xff]
        %v3220 = vld [vmem:[%s3141 + $0x270] sm:$0xff]
        %v3221 = vld [vmem:[%s3141 + $0x278] sm:$0xff]
        %v3222 = vld [vmem:[%s3141 + $0x280] sm:$0xff]
        %v3223 = vld [vmem:[%s3141 + $0x288] sm:$0xff]
        %v3224 = vld [vmem:[%s3141 + $0x290] sm:$0xff]
        %v3225 = vld [vmem:[%s3141 + $0x298] sm:$0xff]
        %v3226 = vld [vmem:[%s3141 + $0x2a0] sm:$0xff]
        %v3227 = vld [vmem:[%s3141 + $0x2a8] sm:$0xff]
        %v3228 = vld [vmem:[%s3141 + $0x2b0] sm:$0xff]
        %v3229 = vld [vmem:[%s3141 + $0x2b8] sm:$0xff]
        %v3230 = vld [vmem:[%s3141 + $0x2c0] sm:$0xff]
        %v3231 = vld [vmem:[%s3141 + $0x2c8] sm:$0xff]
        %v3232 = vld [vmem:[%s3141 + $0x2d0] sm:$0xff]
        %v3233 = vld [vmem:[%s3141 + $0x2d8] sm:$0xff]
        %v3234 = vld [vmem:[%s3141 + $0x2e0] sm:$0xff]
        %v3235 = vld [vmem:[%s3141 + $0x2e8] sm:$0xff]
        %v3236 = vld [vmem:[%s3141 + $0x2f0] sm:$0xff]
        %v3237 = vld [vmem:[%s3141 + $0x2f8] sm:$0xff]
        %v3238 = vld [vmem:[%s3141 + $0x300] sm:$0xff]
        %v3239 = vld [vmem:[%s3141 + $0x308] sm:$0xff]
        %v3240 = vld [vmem:[%s3141 + $0x310] sm:$0xff]
        %v3241 = vld [vmem:[%s3141 + $0x318] sm:$0xff]
        %v3242 = vld [vmem:[%s3141 + $0x320] sm:$0xff]
        %v3243 = vld [vmem:[%s3141 + $0x328] sm:$0xff]
        %v3244 = vld [vmem:[%s3141 + $0x330] sm:$0xff]
        %v3245 = vld [vmem:[%s3141 + $0x338] sm:$0xff]
        %v3246 = vld [vmem:[%s3141 + $0x340] sm:$0xff]
        %v3247 = vld [vmem:[%s3141 + $0x348] sm:$0xff]
        %v3248 = vld [vmem:[%s3141 + $0x350] sm:$0xff]
        %v3249 = vld [vmem:[%s3141 + $0x358] sm:$0xff]
        %v3250 = vld [vmem:[%s3141 + $0x360] sm:$0xff]
        %v3251 = vld [vmem:[%s3141 + $0x368] sm:$0xff]
        %v3252 = vld [vmem:[%s3141 + $0x370] sm:$0xff]
        %v3253 = vld [vmem:[%s3141 + $0x378] sm:$0xff]
        %v3254 = vld [vmem:[%s3141 + $0x380] sm:$0xff]
        %v3255 = vld [vmem:[%s3141 + $0x388] sm:$0xff]
        %v3256 = vld [vmem:[%s3141 + $0x390] sm:$0xff]
        %v3257 = vld [vmem:[%s3141 + $0x398] sm:$0xff]
        %v3258 = vld [vmem:[%s3141 + $0x3a0] sm:$0xff]
        %v3259 = vld [vmem:[%s3141 + $0x3a8] sm:$0xff]
        %v3260 = vld [vmem:[%s3141 + $0x3b0] sm:$0xff]
        %v3261 = vld [vmem:[%s3141 + $0x3b8] sm:$0xff]
        %v3262 = vld [vmem:[%s3141 + $0x3c0] sm:$0xff]
        %v3263 = vld [vmem:[%s3141 + $0x3c8] sm:$0xff]
        %v3264 = vld [vmem:[%s3141 + $0x3d0] sm:$0xff]
        %v3265 = vld [vmem:[%s3141 + $0x3d8] sm:$0xff]
        %v3266 = vld [vmem:[%s3141 + $0x3e0] sm:$0xff]
        %v3267 = vld [vmem:[%s3141 + $0x3e8] sm:$0xff]
        %v3268 = vld [vmem:[%s3141 + $0x3f0] sm:$0xff]
        %v3269 = vld [vmem:[%s3141 + $0x3f8] sm:$0xff]
        %v3270 = vld [vmem:[%s3141 + $0x400] sm:$0xff]
        %v3271 = vld [vmem:[%s3141 + $0x408] sm:$0xff]
        %v3272 = vld [vmem:[%s3141 + $0x410] sm:$0xff]
        %v3273 = vld [vmem:[%s3141 + $0x418] sm:$0xff]
        %v3274 = vld [vmem:[%s3141 + $0x420] sm:$0xff]
        %v3275 = vld [vmem:[%s3141 + $0x428] sm:$0xff]
        %v3276 = vld [vmem:[%s3141 + $0x430] sm:$0xff]
        %v3277 = vld [vmem:[%s3141 + $0x438] sm:$0xff]
        %v3278 = vld [vmem:[%s3141 + $0x440] sm:$0xff]
        %v3279 = vld [vmem:[%s3141 + $0x448] sm:$0xff]
        %v3280 = vld [vmem:[%s3141 + $0x450] sm:$0xff]
        %v3281 = vld [vmem:[%s3141 + $0x458] sm:$0xff]
        %v3282 = vld [vmem:[%s3141 + $0x460] sm:$0xff]
        %v3283 = vld [vmem:[%s3141 + $0x468] sm:$0xff]
        %v3284 = vld [vmem:[%s3141 + $0x470] sm:$0xff]
        %v3285 = vld [vmem:[%s3141 + $0x478] sm:$0xff]
        %v3286 = vld [vmem:[%s3141 + $0x480] sm:$0xff]
        %v3287 = vld [vmem:[%s3141 + $0x488] sm:$0xff]
        %v3288 = vld [vmem:[%s3141 + $0x490] sm:$0xff]
        %v3289 = vld [vmem:[%s3141 + $0x498] sm:$0xff]
        %v3290 = vld [vmem:[%s3141 + $0x4a0] sm:$0xff]
        %v3291 = vld [vmem:[%s3141 + $0x4a8] sm:$0xff]
        %v3292 = vld [vmem:[%s3141 + $0x4b0] sm:$0xff]
        %v3293 = vld [vmem:[%s3141 + $0x4b8] sm:$0xff]
        %v3294 = vld [vmem:[%s3141 + $0x4c0] sm:$0xff]
        %v3295 = vld [vmem:[%s3141 + $0x4c8] sm:$0xff]
        %v3296 = vld [vmem:[%s3141 + $0x4d0] sm:$0xff]
        %v3297 = vld [vmem:[%s3141 + $0x4d8] sm:$0xff]
        %v3298 = vld [vmem:[%s3141 + $0x4e0] sm:$0xff]
        %v3299 = vld [vmem:[%s3141 + $0x4e8] sm:$0xff]
        %v3300 = vld [vmem:[%s3141 + $0x4f0] sm:$0xff]
        %v3301 = vld [vmem:[%s3141 + $0x4f8] sm:$0xff]
        %v3311 = vunpack.c.l.b16 %v3124
        %v3312 = vunpack.c.h.b16 %v3124
        %v3313 = vunpack.c.l.b16 %v3125
        %v3314 = vunpack.c.h.b16 %v3125
        %v3315 = vunpack.c.l.b16 %v3126
        %v3316 = vunpack.c.l.b16 %v3127
        %v3317 = vunpack.c.h.b16 %v3127
        %v3318 = vunpack.c.l.b16 %v3128
        %v3319 = vunpack.c.h.b16 %v3128
        %v3320 = vunpack.c.l.b16 %v3129
        %v3321 = vunpack.c.l.b16 %v3130
        %v3322 = vunpack.c.h.b16 %v3130
        %v3323 = vunpack.c.l.b16 %v3131
        %v3324 = vunpack.c.h.b16 %v3131
        %v3325 = vunpack.c.l.b16 %v3132
        %v3326 = vpack.c.b16 %v3316, %v3311
        %v3327 = vpack.c.b16 %v3317, %v3312
        %v3328 = vpack.c.b16 %v3318, %v3313
        %v3329 = vpack.c.b16 %v3319, %v3314
        %v3330 = vpack.c.b16 %v3320, %v3315
        %v3331 = vpack.c.b16 %v3321, %v3321
        %v3332 = vpack.c.b16 %v3322, %v3322
        %v3333 = vpack.c.b16 %v3323, %v3323
        %v3334 = vpack.c.b16 %v3324, %v3324
        %v3335 = vpack.c.b16 %v3325, %v3325
        %vm3336 = vcmask 1046528
        %v3337 = vrot.slane %v3326, 1
        %v3338 = vrot.slane %v3331, 1
        %v3339 = vsel %vm3336, %v3337, %v3338
        %v3340 = vrot.slane %v3327, 1
        %v3341 = vrot.slane %v3332, 1
        %v3342 = vsel %vm3336, %v3340, %v3341
        %v3343 = vrot.slane %v3328, 1
        %v3344 = vrot.slane %v3333, 1
        %v3345 = vsel %vm3336, %v3343, %v3344
        %v3346 = vrot.slane %v3329, 1
        %v3347 = vrot.slane %v3334, 1
        %v3348 = vsel %vm3336, %v3346, %v3347
        %v3349 = vrot.slane %v3330, 1
        %v3350 = vrot.slane %v3335, 1
        %v3351 = vsel %vm3336, %v3349, %v3350
        %v3517 = vunpack.c.l.b16 %v3142
        %v3518 = vunpack.c.h.b16 %v3142
        %v3519 = vunpack.c.l.b16 %v3143
        %v3520 = vunpack.c.h.b16 %v3143
        %v3521 = vunpack.c.l.b16 %v3144
        %v3522 = vunpack.c.h.b16 %v3144
        %v3523 = vunpack.c.l.b16 %v3145
        %v3524 = vunpack.c.h.b16 %v3145
        %v3525 = vunpack.c.l.b16 %v3146
        %v3526 = vunpack.c.h.b16 %v3146
        %v3527 = vunpack.c.l.b16 %v3147
        %v3528 = vunpack.c.h.b16 %v3147
        %v3529 = vunpack.c.l.b16 %v3148
        %v3530 = vunpack.c.h.b16 %v3148
        %v3531 = vunpack.c.l.b16 %v3149
        %v3532 = vunpack.c.h.b16 %v3149
        %v3533 = vunpack.c.l.b16 %v3150
        %v3534 = vunpack.c.h.b16 %v3150
        %v3535 = vunpack.c.l.b16 %v3151
        %v3536 = vunpack.c.h.b16 %v3151
        %v3537 = vunpack.c.l.b16 %v3152
        %v3538 = vunpack.c.h.b16 %v3152
        %v3539 = vunpack.c.l.b16 %v3153
        %v3540 = vunpack.c.h.b16 %v3153
        %v3541 = vunpack.c.l.b16 %v3154
        %v3542 = vunpack.c.h.b16 %v3154
        %v3543 = vunpack.c.l.b16 %v3155
        %v3544 = vunpack.c.h.b16 %v3155
        %v3545 = vunpack.c.l.b16 %v3156
        %v3546 = vunpack.c.h.b16 %v3156
        %v3547 = vunpack.c.l.b16 %v3157
        %v3548 = vunpack.c.h.b16 %v3157
        %v3549 = vunpack.c.l.b16 %v3158
        %v3550 = vunpack.c.h.b16 %v3158
        %v3551 = vunpack.c.l.b16 %v3159
        %v3552 = vunpack.c.h.b16 %v3159
        %v3553 = vunpack.c.l.b16 %v3160
        %v3554 = vunpack.c.h.b16 %v3160
        %v3555 = vunpack.c.l.b16 %v3161
        %v3556 = vunpack.c.h.b16 %v3161
        %v3557 = vunpack.c.l.b16 %v3162
        %v3558 = vunpack.c.h.b16 %v3162
        %v3559 = vunpack.c.l.b16 %v3163
        %v3560 = vunpack.c.h.b16 %v3163
        %v3561 = vunpack.c.l.b16 %v3164
        %v3562 = vunpack.c.h.b16 %v3164
        %v3563 = vunpack.c.l.b16 %v3165
        %v3564 = vunpack.c.h.b16 %v3165
        %v3565 = vunpack.c.l.b16 %v3166
        %v3566 = vunpack.c.h.b16 %v3166
        %v3567 = vunpack.c.l.b16 %v3167
        %v3568 = vunpack.c.h.b16 %v3167
        %v3569 = vunpack.c.l.b16 %v3168
        %v3570 = vunpack.c.h.b16 %v3168
        %v3571 = vunpack.c.l.b16 %v3169
        %v3572 = vunpack.c.h.b16 %v3169
        %v3573 = vunpack.c.l.b16 %v3170
        %v3574 = vunpack.c.h.b16 %v3170
        %v3575 = vunpack.c.l.b16 %v3171
        %v3576 = vunpack.c.h.b16 %v3171
        %v3577 = vunpack.c.l.b16 %v3172
        %v3578 = vunpack.c.h.b16 %v3172
        %v3579 = vunpack.c.l.b16 %v3173
        %v3580 = vunpack.c.h.b16 %v3173
        %v3581 = vunpack.c.l.b16 %v3174
        %v3582 = vunpack.c.h.b16 %v3174
        %v3583 = vunpack.c.l.b16 %v3175
        %v3584 = vunpack.c.h.b16 %v3175
        %v3585 = vunpack.c.l.b16 %v3176
        %v3586 = vunpack.c.h.b16 %v3176
        %v3587 = vunpack.c.l.b16 %v3177
        %v3588 = vunpack.c.h.b16 %v3177
        %v3589 = vunpack.c.l.b16 %v3178
        %v3590 = vunpack.c.h.b16 %v3178
        %v3591 = vunpack.c.l.b16 %v3179
        %v3592 = vunpack.c.h.b16 %v3179
        %v3593 = vunpack.c.l.b16 %v3180
        %v3594 = vunpack.c.h.b16 %v3180
        %v3595 = vunpack.c.l.b16 %v3181
        %v3596 = vunpack.c.h.b16 %v3181
        %v3597 = vunpack.c.l.b16 %v3182
        %v3598 = vunpack.c.h.b16 %v3182
        %v3599 = vunpack.c.l.b16 %v3183
        %v3600 = vunpack.c.h.b16 %v3183
        %v3601 = vunpack.c.l.b16 %v3184
        %v3602 = vunpack.c.h.b16 %v3184
        %v3603 = vunpack.c.l.b16 %v3185
        %v3604 = vunpack.c.h.b16 %v3185
        %v3605 = vunpack.c.l.b16 %v3186
        %v3606 = vunpack.c.h.b16 %v3186
        %v3607 = vunpack.c.l.b16 %v3187
        %v3608 = vunpack.c.h.b16 %v3187
        %v3609 = vunpack.c.l.b16 %v3188
        %v3610 = vunpack.c.h.b16 %v3188
        %v3611 = vunpack.c.l.b16 %v3189
        %v3612 = vunpack.c.h.b16 %v3189
        %v3613 = vunpack.c.l.b16 %v3190
        %v3614 = vunpack.c.h.b16 %v3190
        %v3615 = vunpack.c.l.b16 %v3191
        %v3616 = vunpack.c.h.b16 %v3191
        %v3617 = vunpack.c.l.b16 %v3192
        %v3618 = vunpack.c.h.b16 %v3192
        %v3619 = vunpack.c.l.b16 %v3193
        %v3620 = vunpack.c.h.b16 %v3193
        %v3621 = vunpack.c.l.b16 %v3194
        %v3622 = vunpack.c.h.b16 %v3194
        %v3623 = vunpack.c.l.b16 %v3195
        %v3624 = vunpack.c.h.b16 %v3195
        %v3625 = vunpack.c.l.b16 %v3196
        %v3626 = vunpack.c.h.b16 %v3196
        %v3627 = vunpack.c.l.b16 %v3197
        %v3628 = vunpack.c.h.b16 %v3197
        %v3629 = vunpack.c.l.b16 %v3198
        %v3630 = vunpack.c.h.b16 %v3198
        %v3631 = vunpack.c.l.b16 %v3199
        %v3632 = vunpack.c.h.b16 %v3199
        %v3633 = vunpack.c.l.b16 %v3200
        %v3634 = vunpack.c.h.b16 %v3200
        %v3635 = vunpack.c.l.b16 %v3201
        %v3636 = vunpack.c.h.b16 %v3201
        %v3637 = vunpack.c.l.b16 %v3202
        %v3638 = vunpack.c.h.b16 %v3202
        %v3639 = vunpack.c.l.b16 %v3203
        %v3640 = vunpack.c.h.b16 %v3203
        %v3641 = vunpack.c.l.b16 %v3204
        %v3642 = vunpack.c.h.b16 %v3204
        %v3643 = vunpack.c.l.b16 %v3205
        %v3644 = vunpack.c.h.b16 %v3205
        %v3645 = vunpack.c.l.b16 %v3206
        %v3646 = vunpack.c.h.b16 %v3206
        %v3647 = vunpack.c.l.b16 %v3207
        %v3648 = vunpack.c.h.b16 %v3207
        %v3649 = vunpack.c.l.b16 %v3208
        %v3650 = vunpack.c.h.b16 %v3208
        %v3651 = vunpack.c.l.b16 %v3209
        %v3652 = vunpack.c.h.b16 %v3209
        %v3653 = vunpack.c.l.b16 %v3210
        %v3654 = vunpack.c.h.b16 %v3210
        %v3655 = vunpack.c.l.b16 %v3211
        %v3656 = vunpack.c.h.b16 %v3211
        %v3657 = vunpack.c.l.b16 %v3212
        %v3658 = vunpack.c.h.b16 %v3212
        %v3659 = vunpack.c.l.b16 %v3213
        %v3660 = vunpack.c.h.b16 %v3213
        %v3661 = vunpack.c.l.b16 %v3214
        %v3662 = vunpack.c.h.b16 %v3214
        %v3663 = vunpack.c.l.b16 %v3215
        %v3664 = vunpack.c.h.b16 %v3215
        %v3665 = vunpack.c.l.b16 %v3216
        %v3666 = vunpack.c.h.b16 %v3216
        %v3667 = vunpack.c.l.b16 %v3217
        %v3668 = vunpack.c.h.b16 %v3217
        %v3669 = vunpack.c.l.b16 %v3218
        %v3670 = vunpack.c.h.b16 %v3218
        %v3671 = vunpack.c.l.b16 %v3219
        %v3672 = vunpack.c.h.b16 %v3219
        %v3673 = vunpack.c.l.b16 %v3220
        %v3674 = vunpack.c.h.b16 %v3220
        %v3675 = vunpack.c.l.b16 %v3221
        %v3676 = vunpack.c.h.b16 %v3221
        %v3677 = vunpack.c.l.b16 %v3222
        %v3678 = vunpack.c.h.b16 %v3222
        %v3679 = vunpack.c.l.b16 %v3223
        %v3680 = vunpack.c.h.b16 %v3223
        %v3681 = vunpack.c.l.b16 %v3224
        %v3682 = vunpack.c.h.b16 %v3224
        %v3683 = vunpack.c.l.b16 %v3225
        %v3684 = vunpack.c.h.b16 %v3225
        %v3685 = vunpack.c.l.b16 %v3226
        %v3686 = vunpack.c.h.b16 %v3226
        %v3687 = vunpack.c.l.b16 %v3227
        %v3688 = vunpack.c.h.b16 %v3227
        %v3689 = vunpack.c.l.b16 %v3228
        %v3690 = vunpack.c.h.b16 %v3228
        %v3691 = vunpack.c.l.b16 %v3229
        %v3692 = vunpack.c.h.b16 %v3229
        %v3693 = vunpack.c.l.b16 %v3230
        %v3694 = vunpack.c.h.b16 %v3230
        %v3695 = vunpack.c.l.b16 %v3231
        %v3696 = vunpack.c.h.b16 %v3231
        %v3697 = vunpack.c.l.b16 %v3232
        %v3698 = vunpack.c.h.b16 %v3232
        %v3699 = vunpack.c.l.b16 %v3233
        %v3700 = vunpack.c.h.b16 %v3233
        %v3701 = vunpack.c.l.b16 %v3234
        %v3702 = vunpack.c.h.b16 %v3234
        %v3703 = vunpack.c.l.b16 %v3235
        %v3704 = vunpack.c.h.b16 %v3235
        %v3705 = vunpack.c.l.b16 %v3236
        %v3706 = vunpack.c.h.b16 %v3236
        %v3707 = vunpack.c.l.b16 %v3237
        %v3708 = vunpack.c.h.b16 %v3237
        %v3709 = vunpack.c.l.b16 %v3238
        %v3710 = vunpack.c.h.b16 %v3238
        %v3711 = vunpack.c.l.b16 %v3239
        %v3712 = vunpack.c.h.b16 %v3239
        %v3713 = vunpack.c.l.b16 %v3240
        %v3714 = vunpack.c.h.b16 %v3240
        %v3715 = vunpack.c.l.b16 %v3241
        %v3716 = vunpack.c.h.b16 %v3241
        %v3717 = vunpack.c.l.b16 %v3242
        %v3718 = vunpack.c.h.b16 %v3242
        %v3719 = vunpack.c.l.b16 %v3243
        %v3720 = vunpack.c.h.b16 %v3243
        %v3721 = vunpack.c.l.b16 %v3244
        %v3722 = vunpack.c.h.b16 %v3244
        %v3723 = vunpack.c.l.b16 %v3245
        %v3724 = vunpack.c.h.b16 %v3245
        %v3725 = vunpack.c.l.b16 %v3246
        %v3726 = vunpack.c.h.b16 %v3246
        %v3727 = vunpack.c.l.b16 %v3247
        %v3728 = vunpack.c.h.b16 %v3247
        %v3729 = vunpack.c.l.b16 %v3248
        %v3730 = vunpack.c.h.b16 %v3248
        %v3731 = vunpack.c.l.b16 %v3249
        %v3732 = vunpack.c.h.b16 %v3249
        %v3733 = vunpack.c.l.b16 %v3250
        %v3734 = vunpack.c.h.b16 %v3250
        %v3735 = vunpack.c.l.b16 %v3251
        %v3736 = vunpack.c.h.b16 %v3251
        %v3737 = vunpack.c.l.b16 %v3252
        %v3738 = vunpack.c.h.b16 %v3252
        %v3739 = vunpack.c.l.b16 %v3253
        %v3740 = vunpack.c.h.b16 %v3253
        %v3741 = vunpack.c.l.b16 %v3254
        %v3742 = vunpack.c.h.b16 %v3254
        %v3743 = vunpack.c.l.b16 %v3255
        %v3744 = vunpack.c.h.b16 %v3255
        %v3745 = vunpack.c.l.b16 %v3256
        %v3746 = vunpack.c.h.b16 %v3256
        %v3747 = vunpack.c.l.b16 %v3257
        %v3748 = vunpack.c.h.b16 %v3257
        %v3749 = vunpack.c.l.b16 %v3258
        %v3750 = vunpack.c.h.b16 %v3258
        %v3751 = vunpack.c.l.b16 %v3259
        %v3752 = vunpack.c.h.b16 %v3259
        %v3753 = vunpack.c.l.b16 %v3260
        %v3754 = vunpack.c.h.b16 %v3260
        %v3755 = vunpack.c.l.b16 %v3261
        %v3756 = vunpack.c.h.b16 %v3261
        %v3757 = vunpack.c.l.b16 %v3262
        %v3758 = vunpack.c.h.b16 %v3262
        %v3759 = vunpack.c.l.b16 %v3263
        %v3760 = vunpack.c.h.b16 %v3263
        %v3761 = vunpack.c.l.b16 %v3264
        %v3762 = vunpack.c.h.b16 %v3264
        %v3763 = vunpack.c.l.b16 %v3265
        %v3764 = vunpack.c.h.b16 %v3265
        %v3765 = vunpack.c.l.b16 %v3266
        %v3766 = vunpack.c.h.b16 %v3266
        %v3767 = vunpack.c.l.b16 %v3267
        %v3768 = vunpack.c.h.b16 %v3267
        %v3769 = vunpack.c.l.b16 %v3268
        %v3770 = vunpack.c.h.b16 %v3268
        %v3771 = vunpack.c.l.b16 %v3269
        %v3772 = vunpack.c.h.b16 %v3269
        %v3773 = vunpack.c.l.b16 %v3270
        %v3774 = vunpack.c.h.b16 %v3270
        %v3775 = vunpack.c.l.b16 %v3271
        %v3776 = vunpack.c.h.b16 %v3271
        %v3777 = vunpack.c.l.b16 %v3272
        %v3778 = vunpack.c.h.b16 %v3272
        %v3779 = vunpack.c.l.b16 %v3273
        %v3780 = vunpack.c.h.b16 %v3273
        %v3781 = vunpack.c.l.b16 %v3274
        %v3782 = vunpack.c.h.b16 %v3274
        %v3783 = vunpack.c.l.b16 %v3275
        %v3784 = vunpack.c.h.b16 %v3275
        %v3785 = vunpack.c.l.b16 %v3276
        %v3786 = vunpack.c.h.b16 %v3276
        %v3787 = vunpack.c.l.b16 %v3277
        %v3788 = vunpack.c.h.b16 %v3277
        %v3789 = vunpack.c.l.b16 %v3278
        %v3790 = vunpack.c.h.b16 %v3278
        %v3791 = vunpack.c.l.b16 %v3279
        %v3792 = vunpack.c.h.b16 %v3279
        %v3793 = vunpack.c.l.b16 %v3280
        %v3794 = vunpack.c.h.b16 %v3280
        %v3795 = vunpack.c.l.b16 %v3281
        %v3796 = vunpack.c.h.b16 %v3281
        %v3797 = vunpack.c.l.b16 %v3282
        %v3798 = vunpack.c.h.b16 %v3282
        %v3799 = vunpack.c.l.b16 %v3283
        %v3800 = vunpack.c.h.b16 %v3283
        %v3801 = vunpack.c.l.b16 %v3284
        %v3802 = vunpack.c.h.b16 %v3284
        %v3803 = vunpack.c.l.b16 %v3285
        %v3804 = vunpack.c.h.b16 %v3285
        %v3805 = vunpack.c.l.b16 %v3286
        %v3806 = vunpack.c.h.b16 %v3286
        %v3807 = vunpack.c.l.b16 %v3287
        %v3808 = vunpack.c.h.b16 %v3287
        %v3809 = vunpack.c.l.b16 %v3288
        %v3810 = vunpack.c.h.b16 %v3288
        %v3811 = vunpack.c.l.b16 %v3289
        %v3812 = vunpack.c.h.b16 %v3289
        %v3813 = vunpack.c.l.b16 %v3290
        %v3814 = vunpack.c.h.b16 %v3290
        %v3815 = vunpack.c.l.b16 %v3291
        %v3816 = vunpack.c.h.b16 %v3291
        %v3817 = vunpack.c.l.b16 %v3292
        %v3818 = vunpack.c.h.b16 %v3292
        %v3819 = vunpack.c.l.b16 %v3293
        %v3820 = vunpack.c.h.b16 %v3293
        %v3821 = vunpack.c.l.b16 %v3294
        %v3822 = vunpack.c.h.b16 %v3294
        %v3823 = vunpack.c.l.b16 %v3295
        %v3824 = vunpack.c.h.b16 %v3295
        %v3825 = vunpack.c.l.b16 %v3296
        %v3826 = vunpack.c.h.b16 %v3296
        %v3827 = vunpack.c.l.b16 %v3297
        %v3828 = vunpack.c.h.b16 %v3297
        %v3829 = vunpack.c.l.b16 %v3298
        %v3830 = vunpack.c.h.b16 %v3298
        %v3831 = vunpack.c.l.b16 %v3299
        %v3832 = vunpack.c.h.b16 %v3299
        %v3833 = vunpack.c.l.b16 %v3300
        %v3834 = vunpack.c.h.b16 %v3300
        %v3835 = vunpack.c.l.b16 %v3301
        %v3836 = vunpack.c.h.b16 %v3301
        %v3837 = vpack.c.b16 %v3521, %v3517
        %v3838 = vpack.c.b16 %v3522, %v3518
        %v3839 = vpack.c.b16 %v3523, %v3519
        %v3840 = vpack.c.b16 %v3524, %v3520
        %v3841 = vpack.c.b16 %v3529, %v3525
        %v3842 = vpack.c.b16 %v3530, %v3526
        %v3843 = vpack.c.b16 %v3531, %v3527
        %v3844 = vpack.c.b16 %v3532, %v3528
        %v3845 = vpack.c.b16 %v3537, %v3533
        %v3846 = vpack.c.b16 %v3538, %v3534
        %v3847 = vpack.c.b16 %v3539, %v3535
        %v3848 = vpack.c.b16 %v3540, %v3536
        %v3849 = vpack.c.b16 %v3545, %v3541
        %v3850 = vpack.c.b16 %v3546, %v3542
        %v3851 = vpack.c.b16 %v3547, %v3543
        %v3852 = vpack.c.b16 %v3548, %v3544
        %v3853 = vpack.c.b16 %v3553, %v3549
        %v3854 = vpack.c.b16 %v3554, %v3550
        %v3855 = vpack.c.b16 %v3555, %v3551
        %v3856 = vpack.c.b16 %v3556, %v3552
        %v3857 = vpack.c.b16 %v3561, %v3557
        %v3858 = vpack.c.b16 %v3562, %v3558
        %v3859 = vpack.c.b16 %v3563, %v3559
        %v3860 = vpack.c.b16 %v3564, %v3560
        %v3861 = vpack.c.b16 %v3569, %v3565
        %v3862 = vpack.c.b16 %v3570, %v3566
        %v3863 = vpack.c.b16 %v3571, %v3567
        %v3864 = vpack.c.b16 %v3572, %v3568
        %v3865 = vpack.c.b16 %v3577, %v3573
        %v3866 = vpack.c.b16 %v3578, %v3574
        %v3867 = vpack.c.b16 %v3579, %v3575
        %v3868 = vpack.c.b16 %v3580, %v3576
        %v3869 = vpack.c.b16 %v3585, %v3581
        %v3870 = vpack.c.b16 %v3586, %v3582
        %v3871 = vpack.c.b16 %v3587, %v3583
        %v3872 = vpack.c.b16 %v3588, %v3584
        %v3873 = vpack.c.b16 %v3593, %v3589
        %v3874 = vpack.c.b16 %v3594, %v3590
        %v3875 = vpack.c.b16 %v3595, %v3591
        %v3876 = vpack.c.b16 %v3596, %v3592
        %v3877 = vpack.c.b16 %v3601, %v3597
        %v3878 = vpack.c.b16 %v3602, %v3598
        %v3879 = vpack.c.b16 %v3603, %v3599
        %v3880 = vpack.c.b16 %v3604, %v3600
        %v3881 = vpack.c.b16 %v3609, %v3605
        %v3882 = vpack.c.b16 %v3610, %v3606
        %v3883 = vpack.c.b16 %v3611, %v3607
        %v3884 = vpack.c.b16 %v3612, %v3608
        %v3885 = vpack.c.b16 %v3617, %v3613
        %v3886 = vpack.c.b16 %v3618, %v3614
        %v3887 = vpack.c.b16 %v3619, %v3615
        %v3888 = vpack.c.b16 %v3620, %v3616
        %v3889 = vpack.c.b16 %v3625, %v3621
        %v3890 = vpack.c.b16 %v3626, %v3622
        %v3891 = vpack.c.b16 %v3627, %v3623
        %v3892 = vpack.c.b16 %v3628, %v3624
        %v3893 = vpack.c.b16 %v3633, %v3629
        %v3894 = vpack.c.b16 %v3634, %v3630
        %v3895 = vpack.c.b16 %v3635, %v3631
        %v3896 = vpack.c.b16 %v3636, %v3632
        %v3897 = vpack.c.b16 %v3641, %v3637
        %v3898 = vpack.c.b16 %v3642, %v3638
        %v3899 = vpack.c.b16 %v3643, %v3639
        %v3900 = vpack.c.b16 %v3644, %v3640
        %v3901 = vpack.c.b16 %v3649, %v3645
        %v3902 = vpack.c.b16 %v3650, %v3646
        %v3903 = vpack.c.b16 %v3651, %v3647
        %v3904 = vpack.c.b16 %v3652, %v3648
        %v3905 = vpack.c.b16 %v3657, %v3653
        %v3906 = vpack.c.b16 %v3658, %v3654
        %v3907 = vpack.c.b16 %v3659, %v3655
        %v3908 = vpack.c.b16 %v3660, %v3656
        %v3909 = vpack.c.b16 %v3665, %v3661
        %v3910 = vpack.c.b16 %v3666, %v3662
        %v3911 = vpack.c.b16 %v3667, %v3663
        %v3912 = vpack.c.b16 %v3668, %v3664
        %v3913 = vpack.c.b16 %v3673, %v3669
        %v3914 = vpack.c.b16 %v3674, %v3670
        %v3915 = vpack.c.b16 %v3675, %v3671
        %v3916 = vpack.c.b16 %v3676, %v3672
        %v3917 = vpack.c.b16 %v3681, %v3677
        %v3918 = vpack.c.b16 %v3682, %v3678
        %v3919 = vpack.c.b16 %v3683, %v3679
        %v3920 = vpack.c.b16 %v3684, %v3680
        %v3921 = vpack.c.b16 %v3689, %v3685
        %v3922 = vpack.c.b16 %v3690, %v3686
        %v3923 = vpack.c.b16 %v3691, %v3687
        %v3924 = vpack.c.b16 %v3692, %v3688
        %v3925 = vpack.c.b16 %v3697, %v3693
        %v3926 = vpack.c.b16 %v3698, %v3694
        %v3927 = vpack.c.b16 %v3699, %v3695
        %v3928 = vpack.c.b16 %v3700, %v3696
        %v3929 = vpack.c.b16 %v3705, %v3701
        %v3930 = vpack.c.b16 %v3706, %v3702
        %v3931 = vpack.c.b16 %v3707, %v3703
        %v3932 = vpack.c.b16 %v3708, %v3704
        %v3933 = vpack.c.b16 %v3713, %v3709
        %v3934 = vpack.c.b16 %v3714, %v3710
        %v3935 = vpack.c.b16 %v3715, %v3711
        %v3936 = vpack.c.b16 %v3716, %v3712
        %v3937 = vpack.c.b16 %v3721, %v3717
        %v3938 = vpack.c.b16 %v3722, %v3718
        %v3939 = vpack.c.b16 %v3723, %v3719
        %v3940 = vpack.c.b16 %v3724, %v3720
        %v3941 = vpack.c.b16 %v3729, %v3725
        %v3942 = vpack.c.b16 %v3730, %v3726
        %v3943 = vpack.c.b16 %v3731, %v3727
        %v3944 = vpack.c.b16 %v3732, %v3728
        %v3945 = vpack.c.b16 %v3737, %v3733
        %v3946 = vpack.c.b16 %v3738, %v3734
        %v3947 = vpack.c.b16 %v3739, %v3735
        %v3948 = vpack.c.b16 %v3740, %v3736
        %v3949 = vpack.c.b16 %v3745, %v3741
        %v3950 = vpack.c.b16 %v3746, %v3742
        %v3951 = vpack.c.b16 %v3747, %v3743
        %v3952 = vpack.c.b16 %v3748, %v3744
        %v3953 = vpack.c.b16 %v3753, %v3749
        %v3954 = vpack.c.b16 %v3754, %v3750
        %v3955 = vpack.c.b16 %v3755, %v3751
        %v3956 = vpack.c.b16 %v3756, %v3752
        %v3957 = vpack.c.b16 %v3761, %v3757
        %v3958 = vpack.c.b16 %v3762, %v3758
        %v3959 = vpack.c.b16 %v3763, %v3759
        %v3960 = vpack.c.b16 %v3764, %v3760
        %v3961 = vpack.c.b16 %v3769, %v3765
        %v3962 = vpack.c.b16 %v3770, %v3766
        %v3963 = vpack.c.b16 %v3771, %v3767
        %v3964 = vpack.c.b16 %v3772, %v3768
        %v3965 = vpack.c.b16 %v3777, %v3773
        %v3966 = vpack.c.b16 %v3778, %v3774
        %v3967 = vpack.c.b16 %v3779, %v3775
        %v3968 = vpack.c.b16 %v3780, %v3776
        %v3969 = vpack.c.b16 %v3785, %v3781
        %v3970 = vpack.c.b16 %v3786, %v3782
        %v3971 = vpack.c.b16 %v3787, %v3783
        %v3972 = vpack.c.b16 %v3788, %v3784
        %v3973 = vpack.c.b16 %v3793, %v3789
        %v3974 = vpack.c.b16 %v3794, %v3790
        %v3975 = vpack.c.b16 %v3795, %v3791
        %v3976 = vpack.c.b16 %v3796, %v3792
        %v3977 = vpack.c.b16 %v3801, %v3797
        %v3978 = vpack.c.b16 %v3802, %v3798
        %v3979 = vpack.c.b16 %v3803, %v3799
        %v3980 = vpack.c.b16 %v3804, %v3800
        %v3981 = vpack.c.b16 %v3809, %v3805
        %v3982 = vpack.c.b16 %v3810, %v3806
        %v3983 = vpack.c.b16 %v3811, %v3807
        %v3984 = vpack.c.b16 %v3812, %v3808
        %v3985 = vpack.c.b16 %v3817, %v3813
        %v3986 = vpack.c.b16 %v3818, %v3814
        %v3987 = vpack.c.b16 %v3819, %v3815
        %v3988 = vpack.c.b16 %v3820, %v3816
        %v3989 = vpack.c.b16 %v3825, %v3821
        %v3990 = vpack.c.b16 %v3826, %v3822
        %v3991 = vpack.c.b16 %v3827, %v3823
        %v3992 = vpack.c.b16 %v3828, %v3824
        %v3993 = vpack.c.b16 %v3833, %v3829
        %v3994 = vpack.c.b16 %v3834, %v3830
        %v3995 = vpack.c.b16 %v3835, %v3831
        %v3996 = vpack.c.b16 %v3836, %v3832
        %4157 = vmatprep.subr.bf16.mxu0 %v3838
        %4158 = vmatpush1.bf16.msra.mxu0 %v3837
        %4159 = vmatprep.subr.bf16.mxu0 %v3842
        %4160 = vmatpush1.bf16.msra.mxu0 %v3841
        %4161 = vmatprep.subr.bf16.mxu0 %v3846
        %4162 = vmatpush1.bf16.msra.mxu0 %v3845
        %4163 = vmatprep.subr.bf16.mxu0 %v3850
        %4164 = vmatpush1.bf16.msra.mxu0 %v3849
        %4165 = vmatprep.subr.bf16.mxu0 %v3854
        %4166 = vmatpush1.bf16.msra.mxu0 %v3853
        %4167 = vmatprep.subr.bf16.mxu0 %v3858
        %4168 = vmatpush1.bf16.msra.mxu0 %v3857
        %4169 = vmatprep.subr.bf16.mxu0 %v3862
        %4170 = vmatpush1.bf16.msra.mxu0 %v3861
        %4171 = vmatprep.subr.bf16.mxu0 %v3866
        %4172 = vmatpush1.bf16.msra.mxu0 %v3865
        %4173 = vmatprep.subr.bf16.mxu0 %v3870
        %4174 = vmatpush1.bf16.msra.mxu0 %v3869
        %4175 = vmatprep.subr.bf16.mxu0 %v3874
        %4176 = vmatpush1.bf16.msra.mxu0 %v3873
        %4177 = vmatprep.subr.bf16.mxu0 %v3878
        %4178 = vmatpush1.bf16.msra.mxu0 %v3877
        %4179 = vmatprep.subr.bf16.mxu0 %v3882
        %4180 = vmatpush1.bf16.msra.mxu0 %v3881
        %4181 = vmatprep.subr.bf16.mxu0 %v3886
        %4182 = vmatpush1.bf16.msra.mxu0 %v3885
        %4183 = vmatprep.subr.bf16.mxu0 %v3890
        %4184 = vmatpush1.bf16.msra.mxu0 %v3889
        %4185 = vmatprep.subr.bf16.mxu0 %v3894
        %4186 = vmatpush1.bf16.msra.mxu0 %v3893
        %4187 = vmatprep.subr.bf16.mxu0 %v3898
        %4188 = vmatpush1.bf16.msra.mxu0 %v3897
        %4189 = vmatprep.mubr.bf16.mxu0 %v3342
        %4190 = vmatmul.mubr.bf16.gmra.mrb[0].mxu0 %v3339
        %v4191 = vpop.f32.mrb[0].mxu0
        %v4192 = vadd.f32 0.0, %v4191
        %v4193 = vpop.f32.mrb[0].mxu0
        %v4194 = vadd.f32 0.0, %v4193
        %v4195 = vpop.f32.mrb[0].mxu0
        %v4196 = vadd.f32 0.0, %v4195
        %v4197 = vpop.f32.mrb[0].mxu0
        %v4198 = vadd.f32 0.0, %v4197
        %4199 = vdwg.mxu0
        %4200 = vmatprep.subr.bf16.mxu0 %v3902
        %4201 = vmatpush1.bf16.msra.mxu0 %v3901
        %4202 = vmatprep.subr.bf16.mxu0 %v3906
        %4203 = vmatpush1.bf16.msra.mxu0 %v3905
        %4204 = vmatprep.subr.bf16.mxu0 %v3910
        %4205 = vmatpush1.bf16.msra.mxu0 %v3909
        %4206 = vmatprep.subr.bf16.mxu0 %v3914
        %4207 = vmatpush1.bf16.msra.mxu0 %v3913
        %4208 = vmatprep.subr.bf16.mxu0 %v3918
        %4209 = vmatpush1.bf16.msra.mxu0 %v3917
        %4210 = vmatprep.subr.bf16.mxu0 %v3922
        %4211 = vmatpush1.bf16.msra.mxu0 %v3921
        %4212 = vmatprep.subr.bf16.mxu0 %v3926
        %4213 = vmatpush1.bf16.msra.mxu0 %v3925
        %4214 = vmatprep.subr.bf16.mxu0 %v3930
        %4215 = vmatpush1.bf16.msra.mxu0 %v3929
        %4216 = vmatprep.subr.bf16.mxu0 %v3934
        %4217 = vmatpush1.bf16.msra.mxu0 %v3933
        %4218 = vmatprep.subr.bf16.mxu0 %v3938
        %4219 = vmatpush1.bf16.msra.mxu0 %v3937
        %4220 = vmatprep.subr.bf16.mxu0 %v3942
        %4221 = vmatpush1.bf16.msra.mxu0 %v3941
        %4222 = vmatprep.subr.bf16.mxu0 %v3946
        %4223 = vmatpush1.bf16.msra.mxu0 %v3945
        %4224 = vmatprep.subr.bf16.mxu0 %v3950
        %4225 = vmatpush1.bf16.msra.mxu0 %v3949
        %4226 = vmatprep.subr.bf16.mxu0 %v3954
        %4227 = vmatpush1.bf16.msra.mxu0 %v3953
        %4228 = vmatprep.subr.bf16.mxu0 %v3958
        %4229 = vmatpush1.bf16.msra.mxu0 %v3957
        %4230 = vmatprep.subr.bf16.mxu0 %v3962
        %4231 = vmatpush1.bf16.msra.mxu0 %v3961
        %4232 = vmatprep.mubr.bf16.mxu0 %v3348
        %4233 = vmatmul.mubr.bf16.gmra.mrb[0].mxu0 %v3345
        %v4234 = vpop.f32.mrb[0].mxu0
        %v4235 = vadd.f32 %v4192, %v4234
        %v4236 = vpop.f32.mrb[0].mxu0
        %v4237 = vadd.f32 %v4194, %v4236
        %v4238 = vpop.f32.mrb[0].mxu0
        %v4239 = vadd.f32 %v4196, %v4238
        %v4240 = vpop.f32.mrb[0].mxu0
        %v4241 = vadd.f32 %v4198, %v4240
        %4242 = vdwg.mxu0
        %4243 = vmatprep.subr.bf16.mxu0 %v3966
        %4244 = vmatpush1.bf16.msra.mxu0 %v3965
        %4245 = vmatprep.subr.bf16.mxu0 %v3970
        %4246 = vmatpush1.bf16.msra.mxu0 %v3969
        %4247 = vmatprep.subr.bf16.mxu0 %v3974
        %4248 = vmatpush1.bf16.msra.mxu0 %v3973
        %4249 = vmatprep.subr.bf16.mxu0 %v3978
        %4250 = vmatpush1.bf16.msra.mxu0 %v3977
        %4251 = vmatprep.subr.bf16.mxu0 %v3982
        %4252 = vmatpush1.bf16.msra.mxu0 %v3981
        %4253 = vmatprep.subr.bf16.mxu0 %v3986
        %4254 = vmatpush1.bf16.msra.mxu0 %v3985
        %4255 = vmatprep.subr.bf16.mxu0 %v3990
        %4256 = vmatpush1.bf16.msra.mxu0 %v3989
        %4257 = vmatprep.subr.bf16.mxu0 %v3994
        %4258 = vmatpush1.bf16.msra.mxu0 %v3993
        %4259 = vmatprep.subr.bf16.mxu0 0
        %4260 = vmatpush1.bf16.msra.mxu0 0
        %4261 = vmatprep.subr.bf16.mxu0 0
        %4262 = vmatpush1.bf16.msra.mxu0 0
        %4263 = vmatprep.subr.bf16.mxu0 0
        %4264 = vmatpush1.bf16.msra.mxu0 0
        %4265 = vmatprep.subr.bf16.mxu0 0
        %4266 = vmatpush1.bf16.msra.mxu0 0
        %4267 = vmatprep.subr.bf16.mxu0 0
        %4268 = vmatpush1.bf16.msra.mxu0 0
        %4269 = vmatprep.subr.bf16.mxu0 0
        %4270 = vmatpush1.bf16.msra.mxu0 0
        %4271 = vmatprep.subr.bf16.mxu0 0
        %4272 = vmatpush1.bf16.msra.mxu0 0
        %4273 = vmatprep.subr.bf16.mxu0 0
        %4274 = vmatpush1.bf16.msra.mxu0 0
        %4275 = vmatprep.mubr.bf16.mxu0 0
        %4276 = vmatmul.mubr.bf16.gmra.mrb[0].mxu0 %v3351
        %v4277 = vpop.f32.mrb[0].mxu0
        %v4278 = vadd.f32 %v4235, %v4277
        %v4279 = vpop.f32.mrb[0].mxu0
        %v4280 = vadd.f32 %v4237, %v4279
        %v4281 = vpop.f32.mrb[0].mxu0
        %v4282 = vadd.f32 %v4239, %v4281
        %v4283 = vpop.f32.mrb[0].mxu0
        %v4284 = vadd.f32 %v4241, %v4283
        %4285 = vdwg.mxu0
        %4286 = vmatprep.subr.bf16.mxu0 %v3840
        %4287 = vmatpush1.bf16.msra.mxu0 %v3839
        %4288 = vmatprep.subr.bf16.mxu0 %v3844
        %4289 = vmatpush1.bf16.msra.mxu0 %v3843
        %4290 = vmatprep.subr.bf16.mxu0 %v3848
        %4291 = vmatpush1.bf16.msra.mxu0 %v3847
        %4292 = vmatprep.subr.bf16.mxu0 %v3852
        %4293 = vmatpush1.bf16.msra.mxu0 %v3851
        %4294 = vmatprep.subr.bf16.mxu0 %v3856
        %4295 = vmatpush1.bf16.msra.mxu0 %v3855
        %4296 = vmatprep.subr.bf16.mxu0 %v3860
        %4297 = vmatpush1.bf16.msra.mxu0 %v3859
        %4298 = vmatprep.subr.bf16.mxu0 %v3864
        %4299 = vmatpush1.bf16.msra.mxu0 %v3863
        %4300 = vmatprep.subr.bf16.mxu0 %v3868
        %4301 = vmatpush1.bf16.msra.mxu0 %v3867
        %4302 = vmatprep.subr.bf16.mxu0 %v3872
        %4303 = vmatpush1.bf16.msra.mxu0 %v3871
        %4304 = vmatprep.subr.bf16.mxu0 %v3876
        %4305 = vmatpush1.bf16.msra.mxu0 %v3875
        %4306 = vmatprep.subr.bf16.mxu0 %v3880
        %4307 = vmatpush1.bf16.msra.mxu0 %v3879
        %4308 = vmatprep.subr.bf16.mxu0 %v3884
        %4309 = vmatpush1.bf16.msra.mxu0 %v3883
        %4310 = vmatprep.subr.bf16.mxu0 %v3888
        %4311 = vmatpush1.bf16.msra.mxu0 %v3887
        %4312 = vmatprep.subr.bf16.mxu0 %v3892
        %4313 = vmatpush1.bf16.msra.mxu0 %v3891
        %4314 = vmatprep.subr.bf16.mxu0 %v3896
        %4315 = vmatpush1.bf16.msra.mxu0 %v3895
        %4316 = vmatprep.subr.bf16.mxu0 %v3900
        %4317 = vmatpush1.bf16.msra.mxu0 %v3899
        %4318 = vmatprep.mubr.bf16.mxu0 %v3342
        %4319 = vmatmul.mubr.bf16.gmra.mrb[0].mxu0 %v3339
        %v4320 = vpop.f32.mrb[0].mxu0
        %v4321 = vadd.f32 0.0, %v4320
        %v4322 = vpop.f32.mrb[0].mxu0
        %v4323 = vadd.f32 0.0, %v4322
        %v4324 = vpop.f32.mrb[0].mxu0
        %v4325 = vadd.f32 0.0, %v4324
        %v4326 = vpop.f32.mrb[0].mxu0
        %v4327 = vadd.f32 0.0, %v4326
        %4328 = vdwg.mxu0
        %4329 = vmatprep.subr.bf16.mxu0 %v3904
        %4330 = vmatpush1.bf16.msra.mxu0 %v3903
        %4331 = vmatprep.subr.bf16.mxu0 %v3908
        %4332 = vmatpush1.bf16.msra.mxu0 %v3907
        %4333 = vmatprep.subr.bf16.mxu0 %v3912
        %4334 = vmatpush1.bf16.msra.mxu0 %v3911
        %4335 = vmatprep.subr.bf16.mxu0 %v3916
        %4336 = vmatpush1.bf16.msra.mxu0 %v3915
        %4337 = vmatprep.subr.bf16.mxu0 %v3920
        %4338 = vmatpush1.bf16.msra.mxu0 %v3919
        %4339 = vmatprep.subr.bf16.mxu0 %v3924
        %4340 = vmatpush1.bf16.msra.mxu0 %v3923
        %4341 = vmatprep.subr.bf16.mxu0 %v3928
        %4342 = vmatpush1.bf16.msra.mxu0 %v3927
        %4343 = vmatprep.subr.bf16.mxu0 %v3932
        %4344 = vmatpush1.bf16.msra.mxu0 %v3931
        %4345 = vmatprep.subr.bf16.mxu0 %v3936
        %4346 = vmatpush1.bf16.msra.mxu0 %v3935
        %4347 = vmatprep.subr.bf16.mxu0 %v3940
        %4348 = vmatpush1.bf16.msra.mxu0 %v3939
        %4349 = vmatprep.subr.bf16.mxu0 %v3944
        %4350 = vmatpush1.bf16.msra.mxu0 %v3943
        %4351 = vmatprep.subr.bf16.mxu0 %v3948
        %4352 = vmatpush1.bf16.msra.mxu0 %v3947
        %4353 = vmatprep.subr.bf16.mxu0 %v3952
        %4354 = vmatpush1.bf16.msra.mxu0 %v3951
        %4355 = vmatprep.subr.bf16.mxu0 %v3956
        %4356 = vmatpush1.bf16.msra.mxu0 %v3955
        %4357 = vmatprep.subr.bf16.mxu0 %v3960
        %4358 = vmatpush1.bf16.msra.mxu0 %v3959
        %4359 = vmatprep.subr.bf16.mxu0 %v3964
        %4360 = vmatpush1.bf16.msra.mxu0 %v3963
        %4361 = vmatprep.mubr.bf16.mxu0 %v3348
        %4362 = vmatmul.mubr.bf16.gmra.mrb[0].mxu0 %v3345
        %v4363 = vpop.f32.mrb[0].mxu0
        %v4364 = vadd.f32 %v4321, %v4363
        %v4365 = vpop.f32.mrb[0].mxu0
        %v4366 = vadd.f32 %v4323, %v4365
        %v4367 = vpop.f32.mrb[0].mxu0
        %v4368 = vadd.f32 %v4325, %v4367
        %v4369 = vpop.f32.mrb[0].mxu0
        %v4370 = vadd.f32 %v4327, %v4369
        %4371 = vdwg.mxu0
        %4372 = vmatprep.subr.bf16.mxu0 %v3968
        %4373 = vmatpush1.bf16.msra.mxu0 %v3967
        %4374 = vmatprep.subr.bf16.mxu0 %v3972
        %4375 = vmatpush1.bf16.msra.mxu0 %v3971
        %4376 = vmatprep.subr.bf16.mxu0 %v3976
        %4377 = vmatpush1.bf16.msra.mxu0 %v3975
        %4378 = vmatprep.subr.bf16.mxu0 %v3980
        %4379 = vmatpush1.bf16.msra.mxu0 %v3979
        %4380 = vmatprep.subr.bf16.mxu0 %v3984
        %4381 = vmatpush1.bf16.msra.mxu0 %v3983
        %4382 = vmatprep.subr.bf16.mxu0 %v3988
        %4383 = vmatpush1.bf16.msra.mxu0 %v3987
        %4384 = vmatprep.subr.bf16.mxu0 %v3992
        %4385 = vmatpush1.bf16.msra.mxu0 %v3991
        %4386 = vmatprep.subr.bf16.mxu0 %v3996
        %4387 = vmatpush1.bf16.msra.mxu0 %v3995
        %4388 = vmatprep.subr.bf16.mxu0 0
        %4389 = vmatpush1.bf16.msra.mxu0 0
        %4390 = vmatprep.subr.bf16.mxu0 0
        %4391 = vmatpush1.bf16.msra.mxu0 0
        %4392 = vmatprep.subr.bf16.mxu0 0
        %4393 = vmatpush1.bf16.msra.mxu0 0
        %4394 = vmatprep.subr.bf16.mxu0 0
        %4395 = vmatpush1.bf16.msra.mxu0 0
        %4396 = vmatprep.subr.bf16.mxu0 0
        %4397 = vmatpush1.bf16.msra.mxu0 0
        %4398 = vmatprep.subr.bf16.mxu0 0
        %4399 = vmatpush1.bf16.msra.mxu0 0
        %4400 = vmatprep.subr.bf16.mxu0 0
        %4401 = vmatpush1.bf16.msra.mxu0 0
        %4402 = vmatprep.subr.bf16.mxu0 0
        %4403 = vmatpush1.bf16.msra.mxu0 0
        %4404 = vmatprep.mubr.bf16.mxu0 0
        %4405 = vmatmul.mubr.bf16.gmra.mrb[0].mxu0 %v3351
        %v4406 = vpop.f32.mrb[0].mxu0
        %v4407 = vadd.f32 %v4364, %v4406
        %v4408 = vpop.f32.mrb[0].mxu0
        %v4409 = vadd.f32 %v4366, %v4408
        %v4410 = vpop.f32.mrb[0].mxu0
        %v4411 = vadd.f32 %v4368, %v4410
        %v4412 = vpop.f32.mrb[0].mxu0
        %v4413 = vadd.f32 %v4370, %v4412
        %4414 = vdwg.mxu0
        %v4415 = vadd.f32 %v3133, %v4278
        %v4416 = vadd.f32 %v3134, %v4280
        %v4417 = vadd.f32 %v3135, %v4407
        %v4418 = vadd.f32 %v3136, %v4409
        %v4419 = vadd.f32 %v3137, %v4282
        %v4420 = vadd.f32 %v3138, %v4284
        %v4421 = vadd.f32 %v3139, %v4411
        %v4422 = vadd.f32 %v3140, %v4413
        %4423 = vst [vmem:[%s294] sm:$0xff] %v4415
        %4424 = vst [vmem:[%s294 + $0x8] sm:$0xff] %v4416
        %4425 = vst [vmem:[%s294 + $0x10] sm:$0xff] %v4417
        %4426 = vst [vmem:[%s294 + $0x18] sm:$0xff] %v4418
        %4427 = vst [vmem:[%s294 + $0x20] sm:$0xff] %v4419
        %4428 = vst [vmem:[%s294 + $0x28] sm:$0xff] %v4420
        %4429 = vst [vmem:[%s294 + $0x30] sm:$0xff] %v4421
        %4430 = vst [vmem:[%s294 + $0x38] sm:$0xff] %v4422
        %v4431 = vld [vmem:[#allocation2] sm:$0xee]
        %v4432 = vld [vmem:[#allocation2 + $0x8] sm:$0xee]
        %v4433 = vld [vmem:[#allocation2 + $0x10] sm:$0xe]
        %v4434 = vld [vmem:[#allocation2 + $0x14] sm:$0xff]
        %v4435 = vld [vmem:[#allocation2 + $0x1c] sm:$0xff]
        %v4436 = vld [vmem:[#allocation2 + $0x24] sm:$0xf]
        %v4437 = vld [vmem:[#allocation2 + $0x28] sm:$0x33]
        %v4438 = vld [vmem:[#allocation2 + $0x30] sm:$0x33]
        %v4439 = vld [vmem:[#allocation2 + $0x38] sm:$0x3]
        %v4440 = vld [vmem:[%s294] sm:$0xff]
        %v4441 = vld [vmem:[%s294 + $0x8] sm:$0xff]
        %v4442 = vld [vmem:[%s294 + $0x10] sm:$0xff]
        %v4443 = vld [vmem:[%s294 + $0x18] sm:$0xff]
        %v4444 = vld [vmem:[%s294 + $0x20] sm:$0xff]
        %v4445 = vld [vmem:[%s294 + $0x28] sm:$0xff]
        %v4446 = vld [vmem:[%s294 + $0x30] sm:$0xff]
        %v4447 = vld [vmem:[%s294 + $0x38] sm:$0xff]
        %s4448 = scalar_lea.vmem [#allocation9], 3840
        %v4449 = vld [vmem:[%s4448] sm:$0xff]
        %v4450 = vld [vmem:[%s4448 + $0x8] sm:$0xff]
        %v4451 = vld [vmem:[%s4448 + $0x10] sm:$0xff]
        %v4452 = vld [vmem:[%s4448 + $0x18] sm:$0xff]
        %v4453 = vld [vmem:[%s4448 + $0x20] sm:$0xff]
        %v4454 = vld [vmem:[%s4448 + $0x28] sm:$0xff]
        %v4455 = vld [vmem:[%s4448 + $0x30] sm:$0xff]
        %v4456 = vld [vmem:[%s4448 + $0x38] sm:$0xff]
        %v4457 = vld [vmem:[%s4448 + $0x40] sm:$0xff]
        %v4458 = vld [vmem:[%s4448 + $0x48] sm:$0xff]
        %v4459 = vld [vmem:[%s4448 + $0x50] sm:$0xff]
        %v4460 = vld [vmem:[%s4448 + $0x58] sm:$0xff]
        %v4461 = vld [vmem:[%s4448 + $0x60] sm:$0xff]
        %v4462 = vld [vmem:[%s4448 + $0x68] sm:$0xff]
        %v4463 = vld [vmem:[%s4448 + $0x70] sm:$0xff]
        %v4464 = vld [vmem:[%s4448 + $0x78] sm:$0xff]
        %v4465 = vld [vmem:[%s4448 + $0x80] sm:$0xff]
        %v4466 = vld [vmem:[%s4448 + $0x88] sm:$0xff]
        %v4467 = vld [vmem:[%s4448 + $0x90] sm:$0xff]
        %v4468 = vld [vmem:[%s4448 + $0x98] sm:$0xff]
        %v4469 = vld [vmem:[%s4448 + $0xa0] sm:$0xff]
        %v4470 = vld [vmem:[%s4448 + $0xa8] sm:$0xff]
        %v4471 = vld [vmem:[%s4448 + $0xb0] sm:$0xff]
        %v4472 = vld [vmem:[%s4448 + $0xb8] sm:$0xff]
        %v4473 = vld [vmem:[%s4448 + $0xc0] sm:$0xff]
        %v4474 = vld [vmem:[%s4448 + $0xc8] sm:$0xff]
        %v4475 = vld [vmem:[%s4448 + $0xd0] sm:$0xff]
        %v4476 = vld [vmem:[%s4448 + $0xd8] sm:$0xff]
        %v4477 = vld [vmem:[%s4448 + $0xe0] sm:$0xff]
        %v4478 = vld [vmem:[%s4448 + $0xe8] sm:$0xff]
        %v4479 = vld [vmem:[%s4448 + $0xf0] sm:$0xff]
        %v4480 = vld [vmem:[%s4448 + $0xf8] sm:$0xff]
        %v4481 = vld [vmem:[%s4448 + $0x100] sm:$0xff]
        %v4482 = vld [vmem:[%s4448 + $0x108] sm:$0xff]
        %v4483 = vld [vmem:[%s4448 + $0x110] sm:$0xff]
        %v4484 = vld [vmem:[%s4448 + $0x118] sm:$0xff]
        %v4485 = vld [vmem:[%s4448 + $0x120] sm:$0xff]
        %v4486 = vld [vmem:[%s4448 + $0x128] sm:$0xff]
        %v4487 = vld [vmem:[%s4448 + $0x130] sm:$0xff]
        %v4488 = vld [vmem:[%s4448 + $0x138] sm:$0xff]
        %v4489 = vld [vmem:[%s4448 + $0x140] sm:$0xff]
        %v4490 = vld [vmem:[%s4448 + $0x148] sm:$0xff]
        %v4491 = vld [vmem:[%s4448 + $0x150] sm:$0xff]
        %v4492 = vld [vmem:[%s4448 + $0x158] sm:$0xff]
        %v4493 = vld [vmem:[%s4448 + $0x160] sm:$0xff]
        %v4494 = vld [vmem:[%s4448 + $0x168] sm:$0xff]
        %v4495 = vld [vmem:[%s4448 + $0x170] sm:$0xff]
        %v4496 = vld [vmem:[%s4448 + $0x178] sm:$0xff]
        %v4497 = vld [vmem:[%s4448 + $0x180] sm:$0xff]
        %v4498 = vld [vmem:[%s4448 + $0x188] sm:$0xff]
        %v4499 = vld [vmem:[%s4448 + $0x190] sm:$0xff]
        %v4500 = vld [vmem:[%s4448 + $0x198] sm:$0xff]
        %v4501 = vld [vmem:[%s4448 + $0x1a0] sm:$0xff]
        %v4502 = vld [vmem:[%s4448 + $0x1a8] sm:$0xff]
        %v4503 = vld [vmem:[%s4448 + $0x1b0] sm:$0xff]
        %v4504 = vld [vmem:[%s4448 + $0x1b8] sm:$0xff]
        %v4505 = vld [vmem:[%s4448 + $0x1c0] sm:$0xff]
        %v4506 = vld [vmem:[%s4448 + $0x1c8] sm:$0xff]
        %v4507 = vld [vmem:[%s4448 + $0x1d0] sm:$0xff]
        %v4508 = vld [vmem:[%s4448 + $0x1d8] sm:$0xff]
        %v4509 = vld [vmem:[%s4448 + $0x1e0] sm:$0xff]
        %v4510 = vld [vmem:[%s4448 + $0x1e8] sm:$0xff]
        %v4511 = vld [vmem:[%s4448 + $0x1f0] sm:$0xff]
        %v4512 = vld [vmem:[%s4448 + $0x1f8] sm:$0xff]
        %v4513 = vld [vmem:[%s4448 + $0x200] sm:$0xff]
        %v4514 = vld [vmem:[%s4448 + $0x208] sm:$0xff]
        %v4515 = vld [vmem:[%s4448 + $0x210] sm:$0xff]
        %v4516 = vld [vmem:[%s4448 + $0x218] sm:$0xff]
        %v4517 = vld [vmem:[%s4448 + $0x220] sm:$0xff]
        %v4518 = vld [vmem:[%s4448 + $0x228] sm:$0xff]
        %v4519 = vld [vmem:[%s4448 + $0x230] sm:$0xff]
        %v4520 = vld [vmem:[%s4448 + $0x238] sm:$0xff]
        %v4521 = vld [vmem:[%s4448 + $0x240] sm:$0xff]
        %v4522 = vld [vmem:[%s4448 + $0x248] sm:$0xff]
        %v4523 = vld [vmem:[%s4448 + $0x250] sm:$0xff]
        %v4524 = vld [vmem:[%s4448 + $0x258] sm:$0xff]
        %v4525 = vld [vmem:[%s4448 + $0x260] sm:$0xff]
        %v4526 = vld [vmem:[%s4448 + $0x268] sm:$0xff]
        %v4527 = vld [vmem:[%s4448 + $0x270] sm:$0xff]
        %v4528 = vld [vmem:[%s4448 + $0x278] sm:$0xff]
        %v4529 = vld [vmem:[%s4448 + $0x280] sm:$0xff]
        %v4530 = vld [vmem:[%s4448 + $0x288] sm:$0xff]
        %v4531 = vld [vmem:[%s4448 + $0x290] sm:$0xff]
        %v4532 = vld [vmem:[%s4448 + $0x298] sm:$0xff]
        %v4533 = vld [vmem:[%s4448 + $0x2a0] sm:$0xff]
        %v4534 = vld [vmem:[%s4448 + $0x2a8] sm:$0xff]
        %v4535 = vld [vmem:[%s4448 + $0x2b0] sm:$0xff]
        %v4536 = vld [vmem:[%s4448 + $0x2b8] sm:$0xff]
        %v4537 = vld [vmem:[%s4448 + $0x2c0] sm:$0xff]
        %v4538 = vld [vmem:[%s4448 + $0x2c8] sm:$0xff]
        %v4539 = vld [vmem:[%s4448 + $0x2d0] sm:$0xff]
        %v4540 = vld [vmem:[%s4448 + $0x2d8] sm:$0xff]
        %v4541 = vld [vmem:[%s4448 + $0x2e0] sm:$0xff]
        %v4542 = vld [vmem:[%s4448 + $0x2e8] sm:$0xff]
        %v4543 = vld [vmem:[%s4448 + $0x2f0] sm:$0xff]
        %v4544 = vld [vmem:[%s4448 + $0x2f8] sm:$0xff]
        %v4545 = vld [vmem:[%s4448 + $0x300] sm:$0xff]
        %v4546 = vld [vmem:[%s4448 + $0x308] sm:$0xff]
        %v4547 = vld [vmem:[%s4448 + $0x310] sm:$0xff]
        %v4548 = vld [vmem:[%s4448 + $0x318] sm:$0xff]
        %v4549 = vld [vmem:[%s4448 + $0x320] sm:$0xff]
        %v4550 = vld [vmem:[%s4448 + $0x328] sm:$0xff]
        %v4551 = vld [vmem:[%s4448 + $0x330] sm:$0xff]
        %v4552 = vld [vmem:[%s4448 + $0x338] sm:$0xff]
        %v4553 = vld [vmem:[%s4448 + $0x340] sm:$0xff]
        %v4554 = vld [vmem:[%s4448 + $0x348] sm:$0xff]
        %v4555 = vld [vmem:[%s4448 + $0x350] sm:$0xff]
        %v4556 = vld [vmem:[%s4448 + $0x358] sm:$0xff]
        %v4557 = vld [vmem:[%s4448 + $0x360] sm:$0xff]
        %v4558 = vld [vmem:[%s4448 + $0x368] sm:$0xff]
        %v4559 = vld [vmem:[%s4448 + $0x370] sm:$0xff]
        %v4560 = vld [vmem:[%s4448 + $0x378] sm:$0xff]
        %v4561 = vld [vmem:[%s4448 + $0x380] sm:$0xff]
        %v4562 = vld [vmem:[%s4448 + $0x388] sm:$0xff]
        %v4563 = vld [vmem:[%s4448 + $0x390] sm:$0xff]
        %v4564 = vld [vmem:[%s4448 + $0x398] sm:$0xff]
        %v4565 = vld [vmem:[%s4448 + $0x3a0] sm:$0xff]
        %v4566 = vld [vmem:[%s4448 + $0x3a8] sm:$0xff]
        %v4567 = vld [vmem:[%s4448 + $0x3b0] sm:$0xff]
        %v4568 = vld [vmem:[%s4448 + $0x3b8] sm:$0xff]
        %v4569 = vld [vmem:[%s4448 + $0x3c0] sm:$0xff]
        %v4570 = vld [vmem:[%s4448 + $0x3c8] sm:$0xff]
        %v4571 = vld [vmem:[%s4448 + $0x3d0] sm:$0xff]
        %v4572 = vld [vmem:[%s4448 + $0x3d8] sm:$0xff]
        %v4573 = vld [vmem:[%s4448 + $0x3e0] sm:$0xff]
        %v4574 = vld [vmem:[%s4448 + $0x3e8] sm:$0xff]
        %v4575 = vld [vmem:[%s4448 + $0x3f0] sm:$0xff]
        %v4576 = vld [vmem:[%s4448 + $0x3f8] sm:$0xff]
        %v4577 = vld [vmem:[%s4448 + $0x400] sm:$0xff]
        %v4578 = vld [vmem:[%s4448 + $0x408] sm:$0xff]
        %v4579 = vld [vmem:[%s4448 + $0x410] sm:$0xff]
        %v4580 = vld [vmem:[%s4448 + $0x418] sm:$0xff]
        %v4581 = vld [vmem:[%s4448 + $0x420] sm:$0xff]
        %v4582 = vld [vmem:[%s4448 + $0x428] sm:$0xff]
        %v4583 = vld [vmem:[%s4448 + $0x430] sm:$0xff]
        %v4584 = vld [vmem:[%s4448 + $0x438] sm:$0xff]
        %v4585 = vld [vmem:[%s4448 + $0x440] sm:$0xff]
        %v4586 = vld [vmem:[%s4448 + $0x448] sm:$0xff]
        %v4587 = vld [vmem:[%s4448 + $0x450] sm:$0xff]
        %v4588 = vld [vmem:[%s4448 + $0x458] sm:$0xff]
        %v4589 = vld [vmem:[%s4448 + $0x460] sm:$0xff]
        %v4590 = vld [vmem:[%s4448 + $0x468] sm:$0xff]
        %v4591 = vld [vmem:[%s4448 + $0x470] sm:$0xff]
        %v4592 = vld [vmem:[%s4448 + $0x478] sm:$0xff]
        %v4593 = vld [vmem:[%s4448 + $0x480] sm:$0xff]
        %v4594 = vld [vmem:[%s4448 + $0x488] sm:$0xff]
        %v4595 = vld [vmem:[%s4448 + $0x490] sm:$0xff]
        %v4596 = vld [vmem:[%s4448 + $0x498] sm:$0xff]
        %v4597 = vld [vmem:[%s4448 + $0x4a0] sm:$0xff]
        %v4598 = vld [vmem:[%s4448 + $0x4a8] sm:$0xff]
        %v4599 = vld [vmem:[%s4448 + $0x4b0] sm:$0xff]
        %v4600 = vld [vmem:[%s4448 + $0x4b8] sm:$0xff]
        %v4601 = vld [vmem:[%s4448 + $0x4c0] sm:$0xff]
        %v4602 = vld [vmem:[%s4448 + $0x4c8] sm:$0xff]
        %v4603 = vld [vmem:[%s4448 + $0x4d0] sm:$0xff]
        %v4604 = vld [vmem:[%s4448 + $0x4d8] sm:$0xff]
        %v4605 = vld [vmem:[%s4448 + $0x4e0] sm:$0xff]
        %v4606 = vld [vmem:[%s4448 + $0x4e8] sm:$0xff]
        %v4607 = vld [vmem:[%s4448 + $0x4f0] sm:$0xff]
        %v4608 = vld [vmem:[%s4448 + $0x4f8] sm:$0xff]
        %v4618 = vunpack.c.l.b16 %v4431
        %v4619 = vunpack.c.h.b16 %v4431
        %v4620 = vunpack.c.l.b16 %v4432
        %v4621 = vunpack.c.h.b16 %v4432
        %v4622 = vunpack.c.l.b16 %v4433
        %v4623 = vunpack.c.l.b16 %v4434
        %v4624 = vunpack.c.h.b16 %v4434
        %v4625 = vunpack.c.l.b16 %v4435
        %v4626 = vunpack.c.h.b16 %v4435
        %v4627 = vunpack.c.l.b16 %v4436
        %v4628 = vunpack.c.l.b16 %v4437
        %v4629 = vunpack.c.h.b16 %v4437
        %v4630 = vunpack.c.l.b16 %v4438
        %v4631 = vunpack.c.h.b16 %v4438
        %v4632 = vunpack.c.l.b16 %v4439
        %v4633 = vpack.c.b16 %v4623, %v4618
        %v4634 = vpack.c.b16 %v4624, %v4619
        %v4635 = vpack.c.b16 %v4625, %v4620
        %v4636 = vpack.c.b16 %v4626, %v4621
        %v4637 = vpack.c.b16 %v4627, %v4622
        %v4638 = vpack.c.b16 %v4628, %v4628
        %v4639 = vpack.c.b16 %v4629, %v4629
        %v4640 = vpack.c.b16 %v4630, %v4630
        %v4641 = vpack.c.b16 %v4631, %v4631
        %v4642 = vpack.c.b16 %v4632, %v4632
        %vm4643 = vsmask.f32 6400
        %v4645 = vshrl.u32 %v4633, 16
        %v4647 = vrot.slane %v4645, 1
        %v4648 = vshll.u32 %v4633, 16
        %v4650 = vrot.slane %v4648, 2
        %v4651 = vor.u32 %v4647, %v4650
        %v4653 = vshrl.u32 %v4638, 16
        %v4655 = vrot.slane %v4653, 1
        %v4656 = vshll.u32 %v4638, 16
        %v4658 = vrot.slane %v4656, 2
        %v4659 = vor.u32 %v4655, %v4658
        %v4660 = vsel %vm4643, %v4651, %v4659
        %v4662 = vshrl.u32 %v4634, 16
        %v4664 = vrot.slane %v4662, 1
        %v4665 = vshll.u32 %v4634, 16
        %v4667 = vrot.slane %v4665, 2
        %v4668 = vor.u32 %v4664, %v4667
        %v4670 = vshrl.u32 %v4639, 16
        %v4672 = vrot.slane %v4670, 1
        %v4673 = vshll.u32 %v4639, 16
        %v4675 = vrot.slane %v4673, 2
        %v4676 = vor.u32 %v4672, %v4675
        %v4677 = vsel %vm4643, %v4668, %v4676
        %v4679 = vshrl.u32 %v4635, 16
        %v4681 = vrot.slane %v4679, 1
        %v4682 = vshll.u32 %v4635, 16
        %v4684 = vrot.slane %v4682, 2
        %v4685 = vor.u32 %v4681, %v4684
        %v4687 = vshrl.u32 %v4640, 16
        %v4689 = vrot.slane %v4687, 1
        %v4690 = vshll.u32 %v4640, 16
        %v4692 = vrot.slane %v4690, 2
        %v4693 = vor.u32 %v4689, %v4692
        %v4694 = vsel %vm4643, %v4685, %v4693
        %v4696 = vshrl.u32 %v4636, 16
        %v4698 = vrot.slane %v4696, 1
        %v4699 = vshll.u32 %v4636, 16
        %v4701 = vrot.slane %v4699, 2
        %v4702 = vor.u32 %v4698, %v4701
        %v4704 = vshrl.u32 %v4641, 16
        %v4706 = vrot.slane %v4704, 1
        %v4707 = vshll.u32 %v4641, 16
        %v4709 = vrot.slane %v4707, 2
        %v4710 = vor.u32 %v4706, %v4709
        %v4711 = vsel %vm4643, %v4702, %v4710
        %v4713 = vshrl.u32 %v4637, 16
        %v4715 = vrot.slane %v4713, 1
        %v4716 = vshll.u32 %v4637, 16
        %v4718 = vrot.slane %v4716, 2
        %v4719 = vor.u32 %v4715, %v4718
        %v4721 = vshrl.u32 %v4642, 16
        %v4723 = vrot.slane %v4721, 1
        %v4724 = vshll.u32 %v4642, 16
        %v4726 = vrot.slane %v4724, 2
        %v4727 = vor.u32 %v4723, %v4726
        %v4728 = vsel %vm4643, %v4719, %v4727
        %v4894 = vunpack.c.l.b16 %v4449
        %v4895 = vunpack.c.h.b16 %v4449
        %v4896 = vunpack.c.l.b16 %v4450
        %v4897 = vunpack.c.h.b16 %v4450
        %v4898 = vunpack.c.l.b16 %v4451
        %v4899 = vunpack.c.h.b16 %v4451
        %v4900 = vunpack.c.l.b16 %v4452
        %v4901 = vunpack.c.h.b16 %v4452
        %v4902 = vunpack.c.l.b16 %v4453
        %v4903 = vunpack.c.h.b16 %v4453
        %v4904 = vunpack.c.l.b16 %v4454
        %v4905 = vunpack.c.h.b16 %v4454
        %v4906 = vunpack.c.l.b16 %v4455
        %v4907 = vunpack.c.h.b16 %v4455
        %v4908 = vunpack.c.l.b16 %v4456
        %v4909 = vunpack.c.h.b16 %v4456
        %v4910 = vunpack.c.l.b16 %v4457
        %v4911 = vunpack.c.h.b16 %v4457
        %v4912 = vunpack.c.l.b16 %v4458
        %v4913 = vunpack.c.h.b16 %v4458
        %v4914 = vunpack.c.l.b16 %v4459
        %v4915 = vunpack.c.h.b16 %v4459
        %v4916 = vunpack.c.l.b16 %v4460
        %v4917 = vunpack.c.h.b16 %v4460
        %v4918 = vunpack.c.l.b16 %v4461
        %v4919 = vunpack.c.h.b16 %v4461
        %v4920 = vunpack.c.l.b16 %v4462
        %v4921 = vunpack.c.h.b16 %v4462
        %v4922 = vunpack.c.l.b16 %v4463
        %v4923 = vunpack.c.h.b16 %v4463
        %v4924 = vunpack.c.l.b16 %v4464
        %v4925 = vunpack.c.h.b16 %v4464
        %v4926 = vunpack.c.l.b16 %v4465
        %v4927 = vunpack.c.h.b16 %v4465
        %v4928 = vunpack.c.l.b16 %v4466
        %v4929 = vunpack.c.h.b16 %v4466
        %v4930 = vunpack.c.l.b16 %v4467
        %v4931 = vunpack.c.h.b16 %v4467
        %v4932 = vunpack.c.l.b16 %v4468
        %v4933 = vunpack.c.h.b16 %v4468
        %v4934 = vunpack.c.l.b16 %v4469
        %v4935 = vunpack.c.h.b16 %v4469
        %v4936 = vunpack.c.l.b16 %v4470
        %v4937 = vunpack.c.h.b16 %v4470
        %v4938 = vunpack.c.l.b16 %v4471
        %v4939 = vunpack.c.h.b16 %v4471
        %v4940 = vunpack.c.l.b16 %v4472
        %v4941 = vunpack.c.h.b16 %v4472
        %v4942 = vunpack.c.l.b16 %v4473
        %v4943 = vunpack.c.h.b16 %v4473
        %v4944 = vunpack.c.l.b16 %v4474
        %v4945 = vunpack.c.h.b16 %v4474
        %v4946 = vunpack.c.l.b16 %v4475
        %v4947 = vunpack.c.h.b16 %v4475
        %v4948 = vunpack.c.l.b16 %v4476
        %v4949 = vunpack.c.h.b16 %v4476
        %v4950 = vunpack.c.l.b16 %v4477
        %v4951 = vunpack.c.h.b16 %v4477
        %v4952 = vunpack.c.l.b16 %v4478
        %v4953 = vunpack.c.h.b16 %v4478
        %v4954 = vunpack.c.l.b16 %v4479
        %v4955 = vunpack.c.h.b16 %v4479
        %v4956 = vunpack.c.l.b16 %v4480
        %v4957 = vunpack.c.h.b16 %v4480
        %v4958 = vunpack.c.l.b16 %v4481
        %v4959 = vunpack.c.h.b16 %v4481
        %v4960 = vunpack.c.l.b16 %v4482
        %v4961 = vunpack.c.h.b16 %v4482
        %v4962 = vunpack.c.l.b16 %v4483
        %v4963 = vunpack.c.h.b16 %v4483
        %v4964 = vunpack.c.l.b16 %v4484
        %v4965 = vunpack.c.h.b16 %v4484
        %v4966 = vunpack.c.l.b16 %v4485
        %v4967 = vunpack.c.h.b16 %v4485
        %v4968 = vunpack.c.l.b16 %v4486
        %v4969 = vunpack.c.h.b16 %v4486
        %v4970 = vunpack.c.l.b16 %v4487
        %v4971 = vunpack.c.h.b16 %v4487
        %v4972 = vunpack.c.l.b16 %v4488
        %v4973 = vunpack.c.h.b16 %v4488
        %v4974 = vunpack.c.l.b16 %v4489
        %v4975 = vunpack.c.h.b16 %v4489
        %v4976 = vunpack.c.l.b16 %v4490
        %v4977 = vunpack.c.h.b16 %v4490
        %v4978 = vunpack.c.l.b16 %v4491
        %v4979 = vunpack.c.h.b16 %v4491
        %v4980 = vunpack.c.l.b16 %v4492
        %v4981 = vunpack.c.h.b16 %v4492
        %v4982 = vunpack.c.l.b16 %v4493
        %v4983 = vunpack.c.h.b16 %v4493
        %v4984 = vunpack.c.l.b16 %v4494
        %v4985 = vunpack.c.h.b16 %v4494
        %v4986 = vunpack.c.l.b16 %v4495
        %v4987 = vunpack.c.h.b16 %v4495
        %v4988 = vunpack.c.l.b16 %v4496
        %v4989 = vunpack.c.h.b16 %v4496
        %v4990 = vunpack.c.l.b16 %v4497
        %v4991 = vunpack.c.h.b16 %v4497
        %v4992 = vunpack.c.l.b16 %v4498
        %v4993 = vunpack.c.h.b16 %v4498
        %v4994 = vunpack.c.l.b16 %v4499
        %v4995 = vunpack.c.h.b16 %v4499
        %v4996 = vunpack.c.l.b16 %v4500
        %v4997 = vunpack.c.h.b16 %v4500
        %v4998 = vunpack.c.l.b16 %v4501
        %v4999 = vunpack.c.h.b16 %v4501
        %v5000 = vunpack.c.l.b16 %v4502
        %v5001 = vunpack.c.h.b16 %v4502
        %v5002 = vunpack.c.l.b16 %v4503
        %v5003 = vunpack.c.h.b16 %v4503
        %v5004 = vunpack.c.l.b16 %v4504
        %v5005 = vunpack.c.h.b16 %v4504
        %v5006 = vunpack.c.l.b16 %v4505
        %v5007 = vunpack.c.h.b16 %v4505
        %v5008 = vunpack.c.l.b16 %v4506
        %v5009 = vunpack.c.h.b16 %v4506
        %v5010 = vunpack.c.l.b16 %v4507
        %v5011 = vunpack.c.h.b16 %v4507
        %v5012 = vunpack.c.l.b16 %v4508
        %v5013 = vunpack.c.h.b16 %v4508
        %v5014 = vunpack.c.l.b16 %v4509
        %v5015 = vunpack.c.h.b16 %v4509
        %v5016 = vunpack.c.l.b16 %v4510
        %v5017 = vunpack.c.h.b16 %v4510
        %v5018 = vunpack.c.l.b16 %v4511
        %v5019 = vunpack.c.h.b16 %v4511
        %v5020 = vunpack.c.l.b16 %v4512
        %v5021 = vunpack.c.h.b16 %v4512
        %v5022 = vunpack.c.l.b16 %v4513
        %v5023 = vunpack.c.h.b16 %v4513
        %v5024 = vunpack.c.l.b16 %v4514
        %v5025 = vunpack.c.h.b16 %v4514
        %v5026 = vunpack.c.l.b16 %v4515
        %v5027 = vunpack.c.h.b16 %v4515
        %v5028 = vunpack.c.l.b16 %v4516
        %v5029 = vunpack.c.h.b16 %v4516
        %v5030 = vunpack.c.l.b16 %v4517
        %v5031 = vunpack.c.h.b16 %v4517
        %v5032 = vunpack.c.l.b16 %v4518
        %v5033 = vunpack.c.h.b16 %v4518
        %v5034 = vunpack.c.l.b16 %v4519
        %v5035 = vunpack.c.h.b16 %v4519
        %v5036 = vunpack.c.l.b16 %v4520
        %v5037 = vunpack.c.h.b16 %v4520
        %v5038 = vunpack.c.l.b16 %v4521
        %v5039 = vunpack.c.h.b16 %v4521
        %v5040 = vunpack.c.l.b16 %v4522
        %v5041 = vunpack.c.h.b16 %v4522
        %v5042 = vunpack.c.l.b16 %v4523
        %v5043 = vunpack.c.h.b16 %v4523
        %v5044 = vunpack.c.l.b16 %v4524
        %v5045 = vunpack.c.h.b16 %v4524
        %v5046 = vunpack.c.l.b16 %v4525
        %v5047 = vunpack.c.h.b16 %v4525
        %v5048 = vunpack.c.l.b16 %v4526
        %v5049 = vunpack.c.h.b16 %v4526
        %v5050 = vunpack.c.l.b16 %v4527
        %v5051 = vunpack.c.h.b16 %v4527
        %v5052 = vunpack.c.l.b16 %v4528
        %v5053 = vunpack.c.h.b16 %v4528
        %v5054 = vunpack.c.l.b16 %v4529
        %v5055 = vunpack.c.h.b16 %v4529
        %v5056 = vunpack.c.l.b16 %v4530
        %v5057 = vunpack.c.h.b16 %v4530
        %v5058 = vunpack.c.l.b16 %v4531
        %v5059 = vunpack.c.h.b16 %v4531
        %v5060 = vunpack.c.l.b16 %v4532
        %v5061 = vunpack.c.h.b16 %v4532
        %v5062 = vunpack.c.l.b16 %v4533
        %v5063 = vunpack.c.h.b16 %v4533
        %v5064 = vunpack.c.l.b16 %v4534
        %v5065 = vunpack.c.h.b16 %v4534
        %v5066 = vunpack.c.l.b16 %v4535
        %v5067 = vunpack.c.h.b16 %v4535
        %v5068 = vunpack.c.l.b16 %v4536
        %v5069 = vunpack.c.h.b16 %v4536
        %v5070 = vunpack.c.l.b16 %v4537
        %v5071 = vunpack.c.h.b16 %v4537
        %v5072 = vunpack.c.l.b16 %v4538
        %v5073 = vunpack.c.h.b16 %v4538
        %v5074 = vunpack.c.l.b16 %v4539
        %v5075 = vunpack.c.h.b16 %v4539
        %v5076 = vunpack.c.l.b16 %v4540
        %v5077 = vunpack.c.h.b16 %v4540
        %v5078 = vunpack.c.l.b16 %v4541
        %v5079 = vunpack.c.h.b16 %v4541
        %v5080 = vunpack.c.l.b16 %v4542
        %v5081 = vunpack.c.h.b16 %v4542
        %v5082 = vunpack.c.l.b16 %v4543
        %v5083 = vunpack.c.h.b16 %v4543
        %v5084 = vunpack.c.l.b16 %v4544
        %v5085 = vunpack.c.h.b16 %v4544
        %v5086 = vunpack.c.l.b16 %v4545
        %v5087 = vunpack.c.h.b16 %v4545
        %v5088 = vunpack.c.l.b16 %v4546
        %v5089 = vunpack.c.h.b16 %v4546
        %v5090 = vunpack.c.l.b16 %v4547
        %v5091 = vunpack.c.h.b16 %v4547
        %v5092 = vunpack.c.l.b16 %v4548
        %v5093 = vunpack.c.h.b16 %v4548
        %v5094 = vunpack.c.l.b16 %v4549
        %v5095 = vunpack.c.h.b16 %v4549
        %v5096 = vunpack.c.l.b16 %v4550
        %v5097 = vunpack.c.h.b16 %v4550
        %v5098 = vunpack.c.l.b16 %v4551
        %v5099 = vunpack.c.h.b16 %v4551
        %v5100 = vunpack.c.l.b16 %v4552
        %v5101 = vunpack.c.h.b16 %v4552
        %v5102 = vunpack.c.l.b16 %v4553
        %v5103 = vunpack.c.h.b16 %v4553
        %v5104 = vunpack.c.l.b16 %v4554
        %v5105 = vunpack.c.h.b16 %v4554
        %v5106 = vunpack.c.l.b16 %v4555
        %v5107 = vunpack.c.h.b16 %v4555
        %v5108 = vunpack.c.l.b16 %v4556
        %v5109 = vunpack.c.h.b16 %v4556
        %v5110 = vunpack.c.l.b16 %v4557
        %v5111 = vunpack.c.h.b16 %v4557
        %v5112 = vunpack.c.l.b16 %v4558
        %v5113 = vunpack.c.h.b16 %v4558
        %v5114 = vunpack.c.l.b16 %v4559
        %v5115 = vunpack.c.h.b16 %v4559
        %v5116 = vunpack.c.l.b16 %v4560
        %v5117 = vunpack.c.h.b16 %v4560
        %v5118 = vunpack.c.l.b16 %v4561
        %v5119 = vunpack.c.h.b16 %v4561
        %v5120 = vunpack.c.l.b16 %v4562
        %v5121 = vunpack.c.h.b16 %v4562
        %v5122 = vunpack.c.l.b16 %v4563
        %v5123 = vunpack.c.h.b16 %v4563
        %v5124 = vunpack.c.l.b16 %v4564
        %v5125 = vunpack.c.h.b16 %v4564
        %v5126 = vunpack.c.l.b16 %v4565
        %v5127 = vunpack.c.h.b16 %v4565
        %v5128 = vunpack.c.l.b16 %v4566
        %v5129 = vunpack.c.h.b16 %v4566
        %v5130 = vunpack.c.l.b16 %v4567
        %v5131 = vunpack.c.h.b16 %v4567
        %v5132 = vunpack.c.l.b16 %v4568
        %v5133 = vunpack.c.h.b16 %v4568
        %v5134 = vunpack.c.l.b16 %v4569
        %v5135 = vunpack.c.h.b16 %v4569
        %v5136 = vunpack.c.l.b16 %v4570
        %v5137 = vunpack.c.h.b16 %v4570
        %v5138 = vunpack.c.l.b16 %v4571
        %v5139 = vunpack.c.h.b16 %v4571
        %v5140 = vunpack.c.l.b16 %v4572
        %v5141 = vunpack.c.h.b16 %v4572
        %v5142 = vunpack.c.l.b16 %v4573
        %v5143 = vunpack.c.h.b16 %v4573
        %v5144 = vunpack.c.l.b16 %v4574
        %v5145 = vunpack.c.h.b16 %v4574
        %v5146 = vunpack.c.l.b16 %v4575
        %v5147 = vunpack.c.h.b16 %v4575
        %v5148 = vunpack.c.l.b16 %v4576
        %v5149 = vunpack.c.h.b16 %v4576
        %v5150 = vunpack.c.l.b16 %v4577
        %v5151 = vunpack.c.h.b16 %v4577
        %v5152 = vunpack.c.l.b16 %v4578
        %v5153 = vunpack.c.h.b16 %v4578
        %v5154 = vunpack.c.l.b16 %v4579
        %v5155 = vunpack.c.h.b16 %v4579
        %v5156 = vunpack.c.l.b16 %v4580
        %v5157 = vunpack.c.h.b16 %v4580
        %v5158 = vunpack.c.l.b16 %v4581
        %v5159 = vunpack.c.h.b16 %v4581
        %v5160 = vunpack.c.l.b16 %v4582
        %v5161 = vunpack.c.h.b16 %v4582
        %v5162 = vunpack.c.l.b16 %v4583
        %v5163 = vunpack.c.h.b16 %v4583
        %v5164 = vunpack.c.l.b16 %v4584
        %v5165 = vunpack.c.h.b16 %v4584
        %v5166 = vunpack.c.l.b16 %v4585
        %v5167 = vunpack.c.h.b16 %v4585
        %v5168 = vunpack.c.l.b16 %v4586
        %v5169 = vunpack.c.h.b16 %v4586
        %v5170 = vunpack.c.l.b16 %v4587
        %v5171 = vunpack.c.h.b16 %v4587
        %v5172 = vunpack.c.l.b16 %v4588
        %v5173 = vunpack.c.h.b16 %v4588
        %v5174 = vunpack.c.l.b16 %v4589
        %v5175 = vunpack.c.h.b16 %v4589
        %v5176 = vunpack.c.l.b16 %v4590
        %v5177 = vunpack.c.h.b16 %v4590
        %v5178 = vunpack.c.l.b16 %v4591
        %v5179 = vunpack.c.h.b16 %v4591
        %v5180 = vunpack.c.l.b16 %v4592
        %v5181 = vunpack.c.h.b16 %v4592
        %v5182 = vunpack.c.l.b16 %v4593
        %v5183 = vunpack.c.h.b16 %v4593
        %v5184 = vunpack.c.l.b16 %v4594
        %v5185 = vunpack.c.h.b16 %v4594
        %v5186 = vunpack.c.l.b16 %v4595
        %v5187 = vunpack.c.h.b16 %v4595
        %v5188 = vunpack.c.l.b16 %v4596
        %v5189 = vunpack.c.h.b16 %v4596
        %v5190 = vunpack.c.l.b16 %v4597
        %v5191 = vunpack.c.h.b16 %v4597
        %v5192 = vunpack.c.l.b16 %v4598
        %v5193 = vunpack.c.h.b16 %v4598
        %v5194 = vunpack.c.l.b16 %v4599
        %v5195 = vunpack.c.h.b16 %v4599
        %v5196 = vunpack.c.l.b16 %v4600
        %v5197 = vunpack.c.h.b16 %v4600
        %v5198 = vunpack.c.l.b16 %v4601
        %v5199 = vunpack.c.h.b16 %v4601
        %v5200 = vunpack.c.l.b16 %v4602
        %v5201 = vunpack.c.h.b16 %v4602
        %v5202 = vunpack.c.l.b16 %v4603
        %v5203 = vunpack.c.h.b16 %v4603
        %v5204 = vunpack.c.l.b16 %v4604
        %v5205 = vunpack.c.h.b16 %v4604
        %v5206 = vunpack.c.l.b16 %v4605
        %v5207 = vunpack.c.h.b16 %v4605
        %v5208 = vunpack.c.l.b16 %v4606
        %v5209 = vunpack.c.h.b16 %v4606
        %v5210 = vunpack.c.l.b16 %v4607
        %v5211 = vunpack.c.h.b16 %v4607
        %v5212 = vunpack.c.l.b16 %v4608
        %v5213 = vunpack.c.h.b16 %v4608
        %v5214 = vpack.c.b16 %v4898, %v4894
        %v5215 = vpack.c.b16 %v4899, %v4895
        %v5216 = vpack.c.b16 %v4900, %v4896
        %v5217 = vpack.c.b16 %v4901, %v4897
        %v5218 = vpack.c.b16 %v4906, %v4902
        %v5219 = vpack.c.b16 %v4907, %v4903
        %v5220 = vpack.c.b16 %v4908, %v4904
        %v5221 = vpack.c.b16 %v4909, %v4905
        %v5222 = vpack.c.b16 %v4914, %v4910
        %v5223 = vpack.c.b16 %v4915, %v4911
        %v5224 = vpack.c.b16 %v4916, %v4912
        %v5225 = vpack.c.b16 %v4917, %v4913
        %v5226 = vpack.c.b16 %v4922, %v4918
        %v5227 = vpack.c.b16 %v4923, %v4919
        %v5228 = vpack.c.b16 %v4924, %v4920
        %v5229 = vpack.c.b16 %v4925, %v4921
        %v5230 = vpack.c.b16 %v4930, %v4926
        %v5231 = vpack.c.b16 %v4931, %v4927
        %v5232 = vpack.c.b16 %v4932, %v4928
        %v5233 = vpack.c.b16 %v4933, %v4929
        %v5234 = vpack.c.b16 %v4938, %v4934
        %v5235 = vpack.c.b16 %v4939, %v4935
        %v5236 = vpack.c.b16 %v4940, %v4936
        %v5237 = vpack.c.b16 %v4941, %v4937
        %v5238 = vpack.c.b16 %v4946, %v4942
        %v5239 = vpack.c.b16 %v4947, %v4943
        %v5240 = vpack.c.b16 %v4948, %v4944
        %v5241 = vpack.c.b16 %v4949, %v4945
        %v5242 = vpack.c.b16 %v4954, %v4950
        %v5243 = vpack.c.b16 %v4955, %v4951
        %v5244 = vpack.c.b16 %v4956, %v4952
        %v5245 = vpack.c.b16 %v4957, %v4953
        %v5246 = vpack.c.b16 %v4962, %v4958
        %v5247 = vpack.c.b16 %v4963, %v4959
        %v5248 = vpack.c.b16 %v4964, %v4960
        %v5249 = vpack.c.b16 %v4965, %v4961
        %v5250 = vpack.c.b16 %v4970, %v4966
        %v5251 = vpack.c.b16 %v4971, %v4967
        %v5252 = vpack.c.b16 %v4972, %v4968
        %v5253 = vpack.c.b16 %v4973, %v4969
        %v5254 = vpack.c.b16 %v4978, %v4974
        %v5255 = vpack.c.b16 %v4979, %v4975
        %v5256 = vpack.c.b16 %v4980, %v4976
        %v5257 = vpack.c.b16 %v4981, %v4977
        %v5258 = vpack.c.b16 %v4986, %v4982
        %v5259 = vpack.c.b16 %v4987, %v4983
        %v5260 = vpack.c.b16 %v4988, %v4984
        %v5261 = vpack.c.b16 %v4989, %v4985
        %v5262 = vpack.c.b16 %v4994, %v4990
        %v5263 = vpack.c.b16 %v4995, %v4991
        %v5264 = vpack.c.b16 %v4996, %v4992
        %v5265 = vpack.c.b16 %v4997, %v4993
        %v5266 = vpack.c.b16 %v5002, %v4998
        %v5267 = vpack.c.b16 %v5003, %v4999
        %v5268 = vpack.c.b16 %v5004, %v5000
        %v5269 = vpack.c.b16 %v5005, %v5001
        %v5270 = vpack.c.b16 %v5010, %v5006
        %v5271 = vpack.c.b16 %v5011, %v5007
        %v5272 = vpack.c.b16 %v5012, %v5008
        %v5273 = vpack.c.b16 %v5013, %v5009
        %v5274 = vpack.c.b16 %v5018, %v5014
        %v5275 = vpack.c.b16 %v5019, %v5015
        %v5276 = vpack.c.b16 %v5020, %v5016
        %v5277 = vpack.c.b16 %v5021, %v5017
        %v5278 = vpack.c.b16 %v5026, %v5022
        %v5279 = vpack.c.b16 %v5027, %v5023
        %v5280 = vpack.c.b16 %v5028, %v5024
        %v5281 = vpack.c.b16 %v5029, %v5025
        %v5282 = vpack.c.b16 %v5034, %v5030
        %v5283 = vpack.c.b16 %v5035, %v5031
        %v5284 = vpack.c.b16 %v5036, %v5032
        %v5285 = vpack.c.b16 %v5037, %v5033
        %v5286 = vpack.c.b16 %v5042, %v5038
        %v5287 = vpack.c.b16 %v5043, %v5039
        %v5288 = vpack.c.b16 %v5044, %v5040
        %v5289 = vpack.c.b16 %v5045, %v5041
        %v5290 = vpack.c.b16 %v5050, %v5046
        %v5291 = vpack.c.b16 %v5051, %v5047
        %v5292 = vpack.c.b16 %v5052, %v5048
        %v5293 = vpack.c.b16 %v5053, %v5049
        %v5294 = vpack.c.b16 %v5058, %v5054
        %v5295 = vpack.c.b16 %v5059, %v5055
        %v5296 = vpack.c.b16 %v5060, %v5056
        %v5297 = vpack.c.b16 %v5061, %v5057
        %v5298 = vpack.c.b16 %v5066, %v5062
        %v5299 = vpack.c.b16 %v5067, %v5063
        %v5300 = vpack.c.b16 %v5068, %v5064
        %v5301 = vpack.c.b16 %v5069, %v5065
        %v5302 = vpack.c.b16 %v5074, %v5070
        %v5303 = vpack.c.b16 %v5075, %v5071
        %v5304 = vpack.c.b16 %v5076, %v5072
        %v5305 = vpack.c.b16 %v5077, %v5073
        %v5306 = vpack.c.b16 %v5082, %v5078
        %v5307 = vpack.c.b16 %v5083, %v5079
        %v5308 = vpack.c.b16 %v5084, %v5080
        %v5309 = vpack.c.b16 %v5085, %v5081
        %v5310 = vpack.c.b16 %v5090, %v5086
        %v5311 = vpack.c.b16 %v5091, %v5087
        %v5312 = vpack.c.b16 %v5092, %v5088
        %v5313 = vpack.c.b16 %v5093, %v5089
        %v5314 = vpack.c.b16 %v5098, %v5094
        %v5315 = vpack.c.b16 %v5099, %v5095
        %v5316 = vpack.c.b16 %v5100, %v5096
        %v5317 = vpack.c.b16 %v5101, %v5097
        %v5318 = vpack.c.b16 %v5106, %v5102
        %v5319 = vpack.c.b16 %v5107, %v5103
        %v5320 = vpack.c.b16 %v5108, %v5104
        %v5321 = vpack.c.b16 %v5109, %v5105
        %v5322 = vpack.c.b16 %v5114, %v5110
        %v5323 = vpack.c.b16 %v5115, %v5111
        %v5324 = vpack.c.b16 %v5116, %v5112
        %v5325 = vpack.c.b16 %v5117, %v5113
        %v5326 = vpack.c.b16 %v5122, %v5118
        %v5327 = vpack.c.b16 %v5123, %v5119
        %v5328 = vpack.c.b16 %v5124, %v5120
        %v5329 = vpack.c.b16 %v5125, %v5121
        %v5330 = vpack.c.b16 %v5130, %v5126
        %v5331 = vpack.c.b16 %v5131, %v5127
        %v5332 = vpack.c.b16 %v5132, %v5128
        %v5333 = vpack.c.b16 %v5133, %v5129
        %v5334 = vpack.c.b16 %v5138, %v5134
        %v5335 = vpack.c.b16 %v5139, %v5135
        %v5336 = vpack.c.b16 %v5140, %v5136
        %v5337 = vpack.c.b16 %v5141, %v5137
        %v5338 = vpack.c.b16 %v5146, %v5142
        %v5339 = vpack.c.b16 %v5147, %v5143
        %v5340 = vpack.c.b16 %v5148, %v5144
        %v5341 = vpack.c.b16 %v5149, %v5145
        %v5342 = vpack.c.b16 %v5154, %v5150
        %v5343 = vpack.c.b16 %v5155, %v5151
        %v5344 = vpack.c.b16 %v5156, %v5152
        %v5345 = vpack.c.b16 %v5157, %v5153
        %v5346 = vpack.c.b16 %v5162, %v5158
        %v5347 = vpack.c.b16 %v5163, %v5159
        %v5348 = vpack.c.b16 %v5164, %v5160
        %v5349 = vpack.c.b16 %v5165, %v5161
        %v5350 = vpack.c.b16 %v5170, %v5166
        %v5351 = vpack.c.b16 %v5171, %v5167
        %v5352 = vpack.c.b16 %v5172, %v5168
        %v5353 = vpack.c.b16 %v5173, %v5169
        %v5354 = vpack.c.b16 %v5178, %v5174
        %v5355 = vpack.c.b16 %v5179, %v5175
        %v5356 = vpack.c.b16 %v5180, %v5176
        %v5357 = vpack.c.b16 %v5181, %v5177
        %v5358 = vpack.c.b16 %v5186, %v5182
        %v5359 = vpack.c.b16 %v5187, %v5183
        %v5360 = vpack.c.b16 %v5188, %v5184
        %v5361 = vpack.c.b16 %v5189, %v5185
        %v5362 = vpack.c.b16 %v5194, %v5190
        %v5363 = vpack.c.b16 %v5195, %v5191
        %v5364 = vpack.c.b16 %v5196, %v5192
        %v5365 = vpack.c.b16 %v5197, %v5193
        %v5366 = vpack.c.b16 %v5202, %v5198
        %v5367 = vpack.c.b16 %v5203, %v5199
        %v5368 = vpack.c.b16 %v5204, %v5200
        %v5369 = vpack.c.b16 %v5205, %v5201
        %v5370 = vpack.c.b16 %v5210, %v5206
        %v5371 = vpack.c.b16 %v5211, %v5207
        %v5372 = vpack.c.b16 %v5212, %v5208
        %v5373 = vpack.c.b16 %v5213, %v5209
        %5534 = vmatprep.subr.bf16.mxu0 %v5215
        %5535 = vmatpush1.bf16.msra.mxu0 %v5214
        %5536 = vmatprep.subr.bf16.mxu0 %v5219
        %5537 = vmatpush1.bf16.msra.mxu0 %v5218
        %5538 = vmatprep.subr.bf16.mxu0 %v5223
        %5539 = vmatpush1.bf16.msra.mxu0 %v5222
        %5540 = vmatprep.subr.bf16.mxu0 %v5227
        %5541 = vmatpush1.bf16.msra.mxu0 %v5226
        %5542 = vmatprep.subr.bf16.mxu0 %v5231
        %5543 = vmatpush1.bf16.msra.mxu0 %v5230
        %5544 = vmatprep.subr.bf16.mxu0 %v5235
        %5545 = vmatpush1.bf16.msra.mxu0 %v5234
        %5546 = vmatprep.subr.bf16.mxu0 %v5239
        %5547 = vmatpush1.bf16.msra.mxu0 %v5238
        %5548 = vmatprep.subr.bf16.mxu0 %v5243
        %5549 = vmatpush1.bf16.msra.mxu0 %v5242
        %5550 = vmatprep.subr.bf16.mxu0 %v5247
        %5551 = vmatpush1.bf16.msra.mxu0 %v5246
        %5552 = vmatprep.subr.bf16.mxu0 %v5251
        %5553 = vmatpush1.bf16.msra.mxu0 %v5250
        %5554 = vmatprep.subr.bf16.mxu0 %v5255
        %5555 = vmatpush1.bf16.msra.mxu0 %v5254
        %5556 = vmatprep.subr.bf16.mxu0 %v5259
        %5557 = vmatpush1.bf16.msra.mxu0 %v5258
        %5558 = vmatprep.subr.bf16.mxu0 %v5263
        %5559 = vmatpush1.bf16.msra.mxu0 %v5262
        %5560 = vmatprep.subr.bf16.mxu0 %v5267
        %5561 = vmatpush1.bf16.msra.mxu0 %v5266
        %5562 = vmatprep.subr.bf16.mxu0 %v5271
        %5563 = vmatpush1.bf16.msra.mxu0 %v5270
        %5564 = vmatprep.subr.bf16.mxu0 %v5275
        %5565 = vmatpush1.bf16.msra.mxu0 %v5274
        %5566 = vmatprep.mubr.bf16.mxu0 %v4677
        %5567 = vmatmul.mubr.bf16.gmra.mrb[0].mxu0 %v4660
        %v5568 = vpop.f32.mrb[0].mxu0
        %v5569 = vadd.f32 0.0, %v5568
        %v5570 = vpop.f32.mrb[0].mxu0
        %v5571 = vadd.f32 0.0, %v5570
        %v5572 = vpop.f32.mrb[0].mxu0
        %v5573 = vadd.f32 0.0, %v5572
        %v5574 = vpop.f32.mrb[0].mxu0
        %v5575 = vadd.f32 0.0, %v5574
        %5576 = vdwg.mxu0
        %5577 = vmatprep.subr.bf16.mxu0 %v5279
        %5578 = vmatpush1.bf16.msra.mxu0 %v5278
        %5579 = vmatprep.subr.bf16.mxu0 %v5283
        %5580 = vmatpush1.bf16.msra.mxu0 %v5282
        %5581 = vmatprep.subr.bf16.mxu0 %v5287
        %5582 = vmatpush1.bf16.msra.mxu0 %v5286
        %5583 = vmatprep.subr.bf16.mxu0 %v5291
        %5584 = vmatpush1.bf16.msra.mxu0 %v5290
        %5585 = vmatprep.subr.bf16.mxu0 %v5295
        %5586 = vmatpush1.bf16.msra.mxu0 %v5294
        %5587 = vmatprep.subr.bf16.mxu0 %v5299
        %5588 = vmatpush1.bf16.msra.mxu0 %v5298
        %5589 = vmatprep.subr.bf16.mxu0 %v5303
        %5590 = vmatpush1.bf16.msra.mxu0 %v5302
        %5591 = vmatprep.subr.bf16.mxu0 %v5307
        %5592 = vmatpush1.bf16.msra.mxu0 %v5306
        %5593 = vmatprep.subr.bf16.mxu0 %v5311
        %5594 = vmatpush1.bf16.msra.mxu0 %v5310
        %5595 = vmatprep.subr.bf16.mxu0 %v5315
        %5596 = vmatpush1.bf16.msra.mxu0 %v5314
        %5597 = vmatprep.subr.bf16.mxu0 %v5319
        %5598 = vmatpush1.bf16.msra.mxu0 %v5318
        %5599 = vmatprep.subr.bf16.mxu0 %v5323
        %5600 = vmatpush1.bf16.msra.mxu0 %v5322
        %5601 = vmatprep.subr.bf16.mxu0 %v5327
        %5602 = vmatpush1.bf16.msra.mxu0 %v5326
        %5603 = vmatprep.subr.bf16.mxu0 %v5331
        %5604 = vmatpush1.bf16.msra.mxu0 %v5330
        %5605 = vmatprep.subr.bf16.mxu0 %v5335
        %5606 = vmatpush1.bf16.msra.mxu0 %v5334
        %5607 = vmatprep.subr.bf16.mxu0 %v5339
        %5608 = vmatpush1.bf16.msra.mxu0 %v5338
        %5609 = vmatprep.mubr.bf16.mxu0 %v4711
        %5610 = vmatmul.mubr.bf16.gmra.mrb[0].mxu0 %v4694
        %v5611 = vpop.f32.mrb[0].mxu0
        %v5612 = vadd.f32 %v5569, %v5611
        %v5613 = vpop.f32.mrb[0].mxu0
        %v5614 = vadd.f32 %v5571, %v5613
        %v5615 = vpop.f32.mrb[0].mxu0
        %v5616 = vadd.f32 %v5573, %v5615
        %v5617 = vpop.f32.mrb[0].mxu0
        %v5618 = vadd.f32 %v5575, %v5617
        %5619 = vdwg.mxu0
        %5620 = vmatprep.subr.bf16.mxu0 %v5343
        %5621 = vmatpush1.bf16.msra.mxu0 %v5342
        %5622 = vmatprep.subr.bf16.mxu0 %v5347
        %5623 = vmatpush1.bf16.msra.mxu0 %v5346
        %5624 = vmatprep.subr.bf16.mxu0 %v5351
        %5625 = vmatpush1.bf16.msra.mxu0 %v5350
        %5626 = vmatprep.subr.bf16.mxu0 %v5355
        %5627 = vmatpush1.bf16.msra.mxu0 %v5354
        %5628 = vmatprep.subr.bf16.mxu0 %v5359
        %5629 = vmatpush1.bf16.msra.mxu0 %v5358
        %5630 = vmatprep.subr.bf16.mxu0 %v5363
        %5631 = vmatpush1.bf16.msra.mxu0 %v5362
        %5632 = vmatprep.subr.bf16.mxu0 %v5367
        %5633 = vmatpush1.bf16.msra.mxu0 %v5366
        %5634 = vmatprep.subr.bf16.mxu0 %v5371
        %5635 = vmatpush1.bf16.msra.mxu0 %v5370
        %5636 = vmatprep.subr.bf16.mxu0 0
        %5637 = vmatpush1.bf16.msra.mxu0 0
        %5638 = vmatprep.subr.bf16.mxu0 0
        %5639 = vmatpush1.bf16.msra.mxu0 0
        %5640 = vmatprep.subr.bf16.mxu0 0
        %5641 = vmatpush1.bf16.msra.mxu0 0
        %5642 = vmatprep.subr.bf16.mxu0 0
        %5643 = vmatpush1.bf16.msra.mxu0 0
        %5644 = vmatprep.subr.bf16.mxu0 0
        %5645 = vmatpush1.bf16.msra.mxu0 0
        %5646 = vmatprep.subr.bf16.mxu0 0
        %5647 = vmatpush1.bf16.msra.mxu0 0
        %5648 = vmatprep.subr.bf16.mxu0 0
        %5649 = vmatpush1.bf16.msra.mxu0 0
        %5650 = vmatprep.subr.bf16.mxu0 0
        %5651 = vmatpush1.bf16.msra.mxu0 0
        %5652 = vmatprep.mubr.bf16.mxu0 0
        %5653 = vmatmul.mubr.bf16.gmra.mrb[0].mxu0 %v4728
        %v5654 = vpop.f32.mrb[0].mxu0
        %v5655 = vadd.f32 %v5612, %v5654
        %v5656 = vpop.f32.mrb[0].mxu0
        %v5657 = vadd.f32 %v5614, %v5656
        %v5658 = vpop.f32.mrb[0].mxu0
        %v5659 = vadd.f32 %v5616, %v5658
        %v5660 = vpop.f32.mrb[0].mxu0
        %v5661 = vadd.f32 %v5618, %v5660
        %5662 = vdwg.mxu0
        %5663 = vmatprep.subr.bf16.mxu0 %v5217
        %5664 = vmatpush1.bf16.msra.mxu0 %v5216
        %5665 = vmatprep.subr.bf16.mxu0 %v5221
        %5666 = vmatpush1.bf16.msra.mxu0 %v5220
        %5667 = vmatprep.subr.bf16.mxu0 %v5225
        %5668 = vmatpush1.bf16.msra.mxu0 %v5224
        %5669 = vmatprep.subr.bf16.mxu0 %v5229
        %5670 = vmatpush1.bf16.msra.mxu0 %v5228
        %5671 = vmatprep.subr.bf16.mxu0 %v5233
        %5672 = vmatpush1.bf16.msra.mxu0 %v5232
        %5673 = vmatprep.subr.bf16.mxu0 %v5237
        %5674 = vmatpush1.bf16.msra.mxu0 %v5236
        %5675 = vmatprep.subr.bf16.mxu0 %v5241
        %5676 = vmatpush1.bf16.msra.mxu0 %v5240
        %5677 = vmatprep.subr.bf16.mxu0 %v5245
        %5678 = vmatpush1.bf16.msra.mxu0 %v5244
        %5679 = vmatprep.subr.bf16.mxu0 %v5249
        %5680 = vmatpush1.bf16.msra.mxu0 %v5248
        %5681 = vmatprep.subr.bf16.mxu0 %v5253
        %5682 = vmatpush1.bf16.msra.mxu0 %v5252
        %5683 = vmatprep.subr.bf16.mxu0 %v5257
        %5684 = vmatpush1.bf16.msra.mxu0 %v5256
        %5685 = vmatprep.subr.bf16.mxu0 %v5261
        %5686 = vmatpush1.bf16.msra.mxu0 %v5260
        %5687 = vmatprep.subr.bf16.mxu0 %v5265
        %5688 = vmatpush1.bf16.msra.mxu0 %v5264
        %5689 = vmatprep.subr.bf16.mxu0 %v5269
        %5690 = vmatpush1.bf16.msra.mxu0 %v5268
        %5691 = vmatprep.subr.bf16.mxu0 %v5273
        %5692 = vmatpush1.bf16.msra.mxu0 %v5272
        %5693 = vmatprep.subr.bf16.mxu0 %v5277
        %5694 = vmatpush1.bf16.msra.mxu0 %v5276
        %5695 = vmatprep.mubr.bf16.mxu0 %v4677
        %5696 = vmatmul.mubr.bf16.gmra.mrb[0].mxu0 %v4660
        %v5697 = vpop.f32.mrb[0].mxu0
        %v5698 = vadd.f32 0.0, %v5697
        %v5699 = vpop.f32.mrb[0].mxu0
        %v5700 = vadd.f32 0.0, %v5699
        %v5701 = vpop.f32.mrb[0].mxu0
        %v5702 = vadd.f32 0.0, %v5701
        %v5703 = vpop.f32.mrb[0].mxu0
        %v5704 = vadd.f32 0.0, %v5703
        %5705 = vdwg.mxu0
        %5706 = vmatprep.subr.bf16.mxu0 %v5281
        %5707 = vmatpush1.bf16.msra.mxu0 %v5280
        %5708 = vmatprep.subr.bf16.mxu0 %v5285
        %5709 = vmatpush1.bf16.msra.mxu0 %v5284
        %5710 = vmatprep.subr.bf16.mxu0 %v5289
        %5711 = vmatpush1.bf16.msra.mxu0 %v5288
        %5712 = vmatprep.subr.bf16.mxu0 %v5293
        %5713 = vmatpush1.bf16.msra.mxu0 %v5292
        %5714 = vmatprep.subr.bf16.mxu0 %v5297
        %5715 = vmatpush1.bf16.msra.mxu0 %v5296
        %5716 = vmatprep.subr.bf16.mxu0 %v5301
        %5717 = vmatpush1.bf16.msra.mxu0 %v5300
        %5718 = vmatprep.subr.bf16.mxu0 %v5305
        %5719 = vmatpush1.bf16.msra.mxu0 %v5304
        %5720 = vmatprep.subr.bf16.mxu0 %v5309
        %5721 = vmatpush1.bf16.msra.mxu0 %v5308
        %5722 = vmatprep.subr.bf16.mxu0 %v5313
        %5723 = vmatpush1.bf16.msra.mxu0 %v5312
        %5724 = vmatprep.subr.bf16.mxu0 %v5317
        %5725 = vmatpush1.bf16.msra.mxu0 %v5316
        %5726 = vmatprep.subr.bf16.mxu0 %v5321
        %5727 = vmatpush1.bf16.msra.mxu0 %v5320
        %5728 = vmatprep.subr.bf16.mxu0 %v5325
        %5729 = vmatpush1.bf16.msra.mxu0 %v5324
        %5730 = vmatprep.subr.bf16.mxu0 %v5329
        %5731 = vmatpush1.bf16.msra.mxu0 %v5328
        %5732 = vmatprep.subr.bf16.mxu0 %v5333
        %5733 = vmatpush1.bf16.msra.mxu0 %v5332
        %5734 = vmatprep.subr.bf16.mxu0 %v5337
        %5735 = vmatpush1.bf16.msra.mxu0 %v5336
        %5736 = vmatprep.subr.bf16.mxu0 %v5341
        %5737 = vmatpush1.bf16.msra.mxu0 %v5340
        %5738 = vmatprep.mubr.bf16.mxu0 %v4711
        %5739 = vmatmul.mubr.bf16.gmra.mrb[0].mxu0 %v4694
        %v5740 = vpop.f32.mrb[0].mxu0
        %v5741 = vadd.f32 %v5698, %v5740
        %v5742 = vpop.f32.mrb[0].mxu0
        %v5743 = vadd.f32 %v5700, %v5742
        %v5744 = vpop.f32.mrb[0].mxu0
        %v5745 = vadd.f32 %v5702, %v5744
        %v5746 = vpop.f32.mrb[0].mxu0
        %v5747 = vadd.f32 %v5704, %v5746
        %5748 = vdwg.mxu0
        %5749 = vmatprep.subr.bf16.mxu0 %v5345
        %5750 = vmatpush1.bf16.msra.mxu0 %v5344
        %5751 = vmatprep.subr.bf16.mxu0 %v5349
        %5752 = vmatpush1.bf16.msra.mxu0 %v5348
        %5753 = vmatprep.subr.bf16.mxu0 %v5353
        %5754 = vmatpush1.bf16.msra.mxu0 %v5352
        %5755 = vmatprep.subr.bf16.mxu0 %v5357
        %5756 = vmatpush1.bf16.msra.mxu0 %v5356
        %5757 = vmatprep.subr.bf16.mxu0 %v5361
        %5758 = vmatpush1.bf16.msra.mxu0 %v5360
        %5759 = vmatprep.subr.bf16.mxu0 %v5365
        %5760 = vmatpush1.bf16.msra.mxu0 %v5364
        %5761 = vmatprep.subr.bf16.mxu0 %v5369
        %5762 = vmatpush1.bf16.msra.mxu0 %v5368
        %5763 = vmatprep.subr.bf16.mxu0 %v5373
        %5764 = vmatpush1.bf16.msra.mxu0 %v5372
        %5765 = vmatprep.subr.bf16.mxu0 0
        %5766 = vmatpush1.bf16.msra.mxu0 0
        %5767 = vmatprep.subr.bf16.mxu0 0
        %5768 = vmatpush1.bf16.msra.mxu0 0
        %5769 = vmatprep.subr.bf16.mxu0 0
        %5770 = vmatpush1.bf16.msra.mxu0 0
        %5771 = vmatprep.subr.bf16.mxu0 0
        %5772 = vmatpush1.bf16.msra.mxu0 0
        %5773 = vmatprep.subr.bf16.mxu0 0
        %5774 = vmatpush1.bf16.msra.mxu0 0
        %5775 = vmatprep.subr.bf16.mxu0 0
        %5776 = vmatpush1.bf16.msra.mxu0 0
        %5777 = vmatprep.subr.bf16.mxu0 0
        %5778 = vmatpush1.bf16.msra.mxu0 0
        %5779 = vmatprep.subr.bf16.mxu0 0
        %5780 = vmatpush1.bf16.msra.mxu0 0
        %5781 = vmatprep.mubr.bf16.mxu0 0
        %5782 = vmatmul.mubr.bf16.gmra.mrb[0].mxu0 %v4728
        %v5783 = vpop.f32.mrb[0].mxu0
        %v5784 = vadd.f32 %v5741, %v5783
        %v5785 = vpop.f32.mrb[0].mxu0
        %v5786 = vadd.f32 %v5743, %v5785
        %v5787 = vpop.f32.mrb[0].mxu0
        %v5788 = vadd.f32 %v5745, %v5787
        %v5789 = vpop.f32.mrb[0].mxu0
        %v5790 = vadd.f32 %v5747, %v5789
        %5791 = vdwg.mxu0
        %v5792 = vadd.f32 %v4440, %v5655
        %v5793 = vadd.f32 %v4441, %v5657
        %v5794 = vadd.f32 %v4442, %v5784
        %v5795 = vadd.f32 %v4443, %v5786
        %v5796 = vadd.f32 %v4444, %v5659
        %v5797 = vadd.f32 %v4445, %v5661
        %v5798 = vadd.f32 %v4446, %v5788
        %v5799 = vadd.f32 %v4447, %v5790
        %5800 = vst [vmem:[%s294] sm:$0xff] %v5792
        %5801 = vst [vmem:[%s294 + $0x8] sm:$0xff] %v5793
        %5802 = vst [vmem:[%s294 + $0x10] sm:$0xff] %v5794
        %5803 = vst [vmem:[%s294 + $0x18] sm:$0xff] %v5795
        %5804 = vst [vmem:[%s294 + $0x20] sm:$0xff] %v5796
        %5805 = vst [vmem:[%s294 + $0x28] sm:$0xff] %v5797
        %5806 = vst [vmem:[%s294 + $0x30] sm:$0xff] %v5798
        %5807 = vst [vmem:[%s294 + $0x38] sm:$0xff] %v5799
        %v5808 = vld [vmem:[#allocation2] sm:$0xcc]
        %v5809 = vld [vmem:[#allocation2 + $0x8] sm:$0xcc]
        %v5810 = vld [vmem:[#allocation2 + $0x10] sm:$0xc]
        %v5811 = vld [vmem:[#allocation2 + $0x14] sm:$0xff]
        %v5812 = vld [vmem:[#allocation2 + $0x1c] sm:$0xff]
        %v5813 = vld [vmem:[#allocation2 + $0x24] sm:$0xf]
        %v5814 = vld [vmem:[#allocation2 + $0x28] sm:$0x33]
        %v5815 = vld [vmem:[#allocation2 + $0x30] sm:$0x33]
        %v5816 = vld [vmem:[#allocation2 + $0x38] sm:$0x3]
        %v5817 = vld [vmem:[%s294] sm:$0xff]
        %v5818 = vld [vmem:[%s294 + $0x8] sm:$0xff]
        %v5819 = vld [vmem:[%s294 + $0x10] sm:$0xff]
        %v5820 = vld [vmem:[%s294 + $0x18] sm:$0xff]
        %v5821 = vld [vmem:[%s294 + $0x20] sm:$0xff]
        %v5822 = vld [vmem:[%s294 + $0x28] sm:$0xff]
        %v5823 = vld [vmem:[%s294 + $0x30] sm:$0xff]
        %v5824 = vld [vmem:[%s294 + $0x38] sm:$0xff]
        %s5825 = scalar_lea.vmem [#allocation9], 5120
        %v5826 = vld [vmem:[%s5825] sm:$0xff]
        %v5827 = vld [vmem:[%s5825 + $0x8] sm:$0xff]
        %v5828 = vld [vmem:[%s5825 + $0x10] sm:$0xff]
        %v5829 = vld [vmem:[%s5825 + $0x18] sm:$0xff]
        %v5830 = vld [vmem:[%s5825 + $0x20] sm:$0xff]
        %v5831 = vld [vmem:[%s5825 + $0x28] sm:$0xff]
        %v5832 = vld [vmem:[%s5825 + $0x30] sm:$0xff]
        %v5833 = vld [vmem:[%s5825 + $0x38] sm:$0xff]
        %v5834 = vld [vmem:[%s5825 + $0x40] sm:$0xff]
        %v5835 = vld [vmem:[%s5825 + $0x48] sm:$0xff]
        %v5836 = vld [vmem:[%s5825 + $0x50] sm:$0xff]
        %v5837 = vld [vmem:[%s5825 + $0x58] sm:$0xff]
        %v5838 = vld [vmem:[%s5825 + $0x60] sm:$0xff]
        %v5839 = vld [vmem:[%s5825 + $0x68] sm:$0xff]
        %v5840 = vld [vmem:[%s5825 + $0x70] sm:$0xff]
        %v5841 = vld [vmem:[%s5825 + $0x78] sm:$0xff]
        %v5842 = vld [vmem:[%s5825 + $0x80] sm:$0xff]
        %v5843 = vld [vmem:[%s5825 + $0x88] sm:$0xff]
        %v5844 = vld [vmem:[%s5825 + $0x90] sm:$0xff]
        %v5845 = vld [vmem:[%s5825 + $0x98] sm:$0xff]
        %v5846 = vld [vmem:[%s5825 + $0xa0] sm:$0xff]
        %v5847 = vld [vmem:[%s5825 + $0xa8] sm:$0xff]
        %v5848 = vld [vmem:[%s5825 + $0xb0] sm:$0xff]
        %v5849 = vld [vmem:[%s5825 + $0xb8] sm:$0xff]
        %v5850 = vld [vmem:[%s5825 + $0xc0] sm:$0xff]
        %v5851 = vld [vmem:[%s5825 + $0xc8] sm:$0xff]
        %v5852 = vld [vmem:[%s5825 + $0xd0] sm:$0xff]
        %v5853 = vld [vmem:[%s5825 + $0xd8] sm:$0xff]
        %v5854 = vld [vmem:[%s5825 + $0xe0] sm:$0xff]
        %v5855 = vld [vmem:[%s5825 + $0xe8] sm:$0xff]
        %v5856 = vld [vmem:[%s5825 + $0xf0] sm:$0xff]
        %v5857 = vld [vmem:[%s5825 + $0xf8] sm:$0xff]
        %v5858 = vld [vmem:[%s5825 + $0x100] sm:$0xff]
        %v5859 = vld [vmem:[%s5825 + $0x108] sm:$0xff]
        %v5860 = vld [vmem:[%s5825 + $0x110] sm:$0xff]
        %v5861 = vld [vmem:[%s5825 + $0x118] sm:$0xff]
        %v5862 = vld [vmem:[%s5825 + $0x120] sm:$0xff]
        %v5863 = vld [vmem:[%s5825 + $0x128] sm:$0xff]
        %v5864 = vld [vmem:[%s5825 + $0x130] sm:$0xff]
        %v5865 = vld [vmem:[%s5825 + $0x138] sm:$0xff]
        %v5866 = vld [vmem:[%s5825 + $0x140] sm:$0xff]
        %v5867 = vld [vmem:[%s5825 + $0x148] sm:$0xff]
        %v5868 = vld [vmem:[%s5825 + $0x150] sm:$0xff]
        %v5869 = vld [vmem:[%s5825 + $0x158] sm:$0xff]
        %v5870 = vld [vmem:[%s5825 + $0x160] sm:$0xff]
        %v5871 = vld [vmem:[%s5825 + $0x168] sm:$0xff]
        %v5872 = vld [vmem:[%s5825 + $0x170] sm:$0xff]
        %v5873 = vld [vmem:[%s5825 + $0x178] sm:$0xff]
        %v5874 = vld [vmem:[%s5825 + $0x180] sm:$0xff]
        %v5875 = vld [vmem:[%s5825 + $0x188] sm:$0xff]
        %v5876 = vld [vmem:[%s5825 + $0x190] sm:$0xff]
        %v5877 = vld [vmem:[%s5825 + $0x198] sm:$0xff]
        %v5878 = vld [vmem:[%s5825 + $0x1a0] sm:$0xff]
        %v5879 = vld [vmem:[%s5825 + $0x1a8] sm:$0xff]
        %v5880 = vld [vmem:[%s5825 + $0x1b0] sm:$0xff]
        %v5881 = vld [vmem:[%s5825 + $0x1b8] sm:$0xff]
        %v5882 = vld [vmem:[%s5825 + $0x1c0] sm:$0xff]
        %v5883 = vld [vmem:[%s5825 + $0x1c8] sm:$0xff]
        %v5884 = vld [vmem:[%s5825 + $0x1d0] sm:$0xff]
        %v5885 = vld [vmem:[%s5825 + $0x1d8] sm:$0xff]
        %v5886 = vld [vmem:[%s5825 + $0x1e0] sm:$0xff]
        %v5887 = vld [vmem:[%s5825 + $0x1e8] sm:$0xff]
        %v5888 = vld [vmem:[%s5825 + $0x1f0] sm:$0xff]
        %v5889 = vld [vmem:[%s5825 + $0x1f8] sm:$0xff]
        %v5890 = vld [vmem:[%s5825 + $0x200] sm:$0xff]
        %v5891 = vld [vmem:[%s5825 + $0x208] sm:$0xff]
        %v5892 = vld [vmem:[%s5825 + $0x210] sm:$0xff]
        %v5893 = vld [vmem:[%s5825 + $0x218] sm:$0xff]
        %v5894 = vld [vmem:[%s5825 + $0x220] sm:$0xff]
        %v5895 = vld [vmem:[%s5825 + $0x228] sm:$0xff]
        %v5896 = vld [vmem:[%s5825 + $0x230] sm:$0xff]
        %v5897 = vld [vmem:[%s5825 + $0x238] sm:$0xff]
        %v5898 = vld [vmem:[%s5825 + $0x240] sm:$0xff]
        %v5899 = vld [vmem:[%s5825 + $0x248] sm:$0xff]
        %v5900 = vld [vmem:[%s5825 + $0x250] sm:$0xff]
        %v5901 = vld [vmem:[%s5825 + $0x258] sm:$0xff]
        %v5902 = vld [vmem:[%s5825 + $0x260] sm:$0xff]
        %v5903 = vld [vmem:[%s5825 + $0x268] sm:$0xff]
        %v5904 = vld [vmem:[%s5825 + $0x270] sm:$0xff]
        %v5905 = vld [vmem:[%s5825 + $0x278] sm:$0xff]
        %v5906 = vld [vmem:[%s5825 + $0x280] sm:$0xff]
        %v5907 = vld [vmem:[%s5825 + $0x288] sm:$0xff]
        %v5908 = vld [vmem:[%s5825 + $0x290] sm:$0xff]
        %v5909 = vld [vmem:[%s5825 + $0x298] sm:$0xff]
        %v5910 = vld [vmem:[%s5825 + $0x2a0] sm:$0xff]
        %v5911 = vld [vmem:[%s5825 + $0x2a8] sm:$0xff]
        %v5912 = vld [vmem:[%s5825 + $0x2b0] sm:$0xff]
        %v5913 = vld [vmem:[%s5825 + $0x2b8] sm:$0xff]
        %v5914 = vld [vmem:[%s5825 + $0x2c0] sm:$0xff]
        %v5915 = vld [vmem:[%s5825 + $0x2c8] sm:$0xff]
        %v5916 = vld [vmem:[%s5825 + $0x2d0] sm:$0xff]
        %v5917 = vld [vmem:[%s5825 + $0x2d8] sm:$0xff]
        %v5918 = vld [vmem:[%s5825 + $0x2e0] sm:$0xff]
        %v5919 = vld [vmem:[%s5825 + $0x2e8] sm:$0xff]
        %v5920 = vld [vmem:[%s5825 + $0x2f0] sm:$0xff]
        %v5921 = vld [vmem:[%s5825 + $0x2f8] sm:$0xff]
        %v5922 = vld [vmem:[%s5825 + $0x300] sm:$0xff]
        %v5923 = vld [vmem:[%s5825 + $0x308] sm:$0xff]
        %v5924 = vld [vmem:[%s5825 + $0x310] sm:$0xff]
        %v5925 = vld [vmem:[%s5825 + $0x318] sm:$0xff]
        %v5926 = vld [vmem:[%s5825 + $0x320] sm:$0xff]
        %v5927 = vld [vmem:[%s5825 + $0x328] sm:$0xff]
        %v5928 = vld [vmem:[%s5825 + $0x330] sm:$0xff]
        %v5929 = vld [vmem:[%s5825 + $0x338] sm:$0xff]
        %v5930 = vld [vmem:[%s5825 + $0x340] sm:$0xff]
        %v5931 = vld [vmem:[%s5825 + $0x348] sm:$0xff]
        %v5932 = vld [vmem:[%s5825 + $0x350] sm:$0xff]
        %v5933 = vld [vmem:[%s5825 + $0x358] sm:$0xff]
        %v5934 = vld [vmem:[%s5825 + $0x360] sm:$0xff]
        %v5935 = vld [vmem:[%s5825 + $0x368] sm:$0xff]
        %v5936 = vld [vmem:[%s5825 + $0x370] sm:$0xff]
        %v5937 = vld [vmem:[%s5825 + $0x378] sm:$0xff]
        %v5938 = vld [vmem:[%s5825 + $0x380] sm:$0xff]
        %v5939 = vld [vmem:[%s5825 + $0x388] sm:$0xff]
        %v5940 = vld [vmem:[%s5825 + $0x390] sm:$0xff]
        %v5941 = vld [vmem:[%s5825 + $0x398] sm:$0xff]
        %v5942 = vld [vmem:[%s5825 + $0x3a0] sm:$0xff]
        %v5943 = vld [vmem:[%s5825 + $0x3a8] sm:$0xff]
        %v5944 = vld [vmem:[%s5825 + $0x3b0] sm:$0xff]
        %v5945 = vld [vmem:[%s5825 + $0x3b8] sm:$0xff]
        %v5946 = vld [vmem:[%s5825 + $0x3c0] sm:$0xff]
        %v5947 = vld [vmem:[%s5825 + $0x3c8] sm:$0xff]
        %v5948 = vld [vmem:[%s5825 + $0x3d0] sm:$0xff]
        %v5949 = vld [vmem:[%s5825 + $0x3d8] sm:$0xff]
        %v5950 = vld [vmem:[%s5825 + $0x3e0] sm:$0xff]
        %v5951 = vld [vmem:[%s5825 + $0x3e8] sm:$0xff]
        %v5952 = vld [vmem:[%s5825 + $0x3f0] sm:$0xff]
        %v5953 = vld [vmem:[%s5825 + $0x3f8] sm:$0xff]
        %v5954 = vld [vmem:[%s5825 + $0x400] sm:$0xff]
        %v5955 = vld [vmem:[%s5825 + $0x408] sm:$0xff]
        %v5956 = vld [vmem:[%s5825 + $0x410] sm:$0xff]
        %v5957 = vld [vmem:[%s5825 + $0x418] sm:$0xff]
        %v5958 = vld [vmem:[%s5825 + $0x420] sm:$0xff]
        %v5959 = vld [vmem:[%s5825 + $0x428] sm:$0xff]
        %v5960 = vld [vmem:[%s5825 + $0x430] sm:$0xff]
        %v5961 = vld [vmem:[%s5825 + $0x438] sm:$0xff]
        %v5962 = vld [vmem:[%s5825 + $0x440] sm:$0xff]
        %v5963 = vld [vmem:[%s5825 + $0x448] sm:$0xff]
        %v5964 = vld [vmem:[%s5825 + $0x450] sm:$0xff]
        %v5965 = vld [vmem:[%s5825 + $0x458] sm:$0xff]
        %v5966 = vld [vmem:[%s5825 + $0x460] sm:$0xff]
        %v5967 = vld [vmem:[%s5825 + $0x468] sm:$0xff]
        %v5968 = vld [vmem:[%s5825 + $0x470] sm:$0xff]
        %v5969 = vld [vmem:[%s5825 + $0x478] sm:$0xff]
        %v5970 = vld [vmem:[%s5825 + $0x480] sm:$0xff]
        %v5971 = vld [vmem:[%s5825 + $0x488] sm:$0xff]
        %v5972 = vld [vmem:[%s5825 + $0x490] sm:$0xff]
        %v5973 = vld [vmem:[%s5825 + $0x498] sm:$0xff]
        %v5974 = vld [vmem:[%s5825 + $0x4a0] sm:$0xff]
        %v5975 = vld [vmem:[%s5825 + $0x4a8] sm:$0xff]
        %v5976 = vld [vmem:[%s5825 + $0x4b0] sm:$0xff]
        %v5977 = vld [vmem:[%s5825 + $0x4b8] sm:$0xff]
        %v5978 = vld [vmem:[%s5825 + $0x4c0] sm:$0xff]
        %v5979 = vld [vmem:[%s5825 + $0x4c8] sm:$0xff]
        %v5980 = vld [vmem:[%s5825 + $0x4d0] sm:$0xff]
        %v5981 = vld [vmem:[%s5825 + $0x4d8] sm:$0xff]
        %v5982 = vld [vmem:[%s5825 + $0x4e0] sm:$0xff]
        %v5983 = vld [vmem:[%s5825 + $0x4e8] sm:$0xff]
        %v5984 = vld [vmem:[%s5825 + $0x4f0] sm:$0xff]
        %v5985 = vld [vmem:[%s5825 + $0x4f8] sm:$0xff]
        %v5995 = vunpack.c.l.b16 %v5808
        %v5996 = vunpack.c.h.b16 %v5808
        %v5997 = vunpack.c.l.b16 %v5809
        %v5998 = vunpack.c.h.b16 %v5809
        %v5999 = vunpack.c.l.b16 %v5810
        %v6000 = vunpack.c.l.b16 %v5811
        %v6001 = vunpack.c.h.b16 %v5811
        %v6002 = vunpack.c.l.b16 %v5812
        %v6003 = vunpack.c.h.b16 %v5812
        %v6004 = vunpack.c.l.b16 %v5813
        %v6005 = vunpack.c.l.b16 %v5814
        %v6006 = vunpack.c.h.b16 %v5814
        %v6007 = vunpack.c.l.b16 %v5815
        %v6008 = vunpack.c.h.b16 %v5815
        %v6009 = vunpack.c.l.b16 %v5816
        %v6010 = vpack.c.b16 %v6000, %v5995
        %v6011 = vpack.c.b16 %v6001, %v5996
        %v6012 = vpack.c.b16 %v6002, %v5997
        %v6013 = vpack.c.b16 %v6003, %v5998
        %v6014 = vpack.c.b16 %v6004, %v5999
        %v6015 = vpack.c.b16 %v6005, %v6005
        %v6016 = vpack.c.b16 %v6006, %v6006
        %v6017 = vpack.c.b16 %v6007, %v6007
        %v6018 = vpack.c.b16 %v6008, %v6008
        %v6019 = vpack.c.b16 %v6009, %v6009
        %vm6020 = vcmask 1045504
        %v6021 = vrot.slane %v6010, 2
        %v6022 = vrot.slane %v6015, 2
        %v6023 = vsel %vm6020, %v6021, %v6022
        %v6024 = vrot.slane %v6011, 2
        %v6025 = vrot.slane %v6016, 2
        %v6026 = vsel %vm6020, %v6024, %v6025
        %v6027 = vrot.slane %v6012, 2
        %v6028 = vrot.slane %v6017, 2
        %v6029 = vsel %vm6020, %v6027, %v6028
        %v6030 = vrot.slane %v6013, 2
        %v6031 = vrot.slane %v6018, 2
        %v6032 = vsel %vm6020, %v6030, %v6031
        %v6033 = vrot.slane %v6014, 2
        %v6034 = vrot.slane %v6019, 2
        %v6035 = vsel %vm6020, %v6033, %v6034
        %v6201 = vunpack.c.l.b16 %v5826
        %v6202 = vunpack.c.h.b16 %v5826
        %v6203 = vunpack.c.l.b16 %v5827
        %v6204 = vunpack.c.h.b16 %v5827
        %v6205 = vunpack.c.l.b16 %v5828
        %v6206 = vunpack.c.h.b16 %v5828
        %v6207 = vunpack.c.l.b16 %v5829
        %v6208 = vunpack.c.h.b16 %v5829
        %v6209 = vunpack.c.l.b16 %v5830
        %v6210 = vunpack.c.h.b16 %v5830
        %v6211 = vunpack.c.l.b16 %v5831
        %v6212 = vunpack.c.h.b16 %v5831
        %v6213 = vunpack.c.l.b16 %v5832
        %v6214 = vunpack.c.h.b16 %v5832
        %v6215 = vunpack.c.l.b16 %v5833
        %v6216 = vunpack.c.h.b16 %v5833
        %v6217 = vunpack.c.l.b16 %v5834
        %v6218 = vunpack.c.h.b16 %v5834
        %v6219 = vunpack.c.l.b16 %v5835
        %v6220 = vunpack.c.h.b16 %v5835
        %v6221 = vunpack.c.l.b16 %v5836
        %v6222 = vunpack.c.h.b16 %v5836
        %v6223 = vunpack.c.l.b16 %v5837
        %v6224 = vunpack.c.h.b16 %v5837
        %v6225 = vunpack.c.l.b16 %v5838
        %v6226 = vunpack.c.h.b16 %v5838
        %v6227 = vunpack.c.l.b16 %v5839
        %v6228 = vunpack.c.h.b16 %v5839
        %v6229 = vunpack.c.l.b16 %v5840
        %v6230 = vunpack.c.h.b16 %v5840
        %v6231 = vunpack.c.l.b16 %v5841
        %v6232 = vunpack.c.h.b16 %v5841
        %v6233 = vunpack.c.l.b16 %v5842
        %v6234 = vunpack.c.h.b16 %v5842
        %v6235 = vunpack.c.l.b16 %v5843
        %v6236 = vunpack.c.h.b16 %v5843
        %v6237 = vunpack.c.l.b16 %v5844
        %v6238 = vunpack.c.h.b16 %v5844
        %v6239 = vunpack.c.l.b16 %v5845
        %v6240 = vunpack.c.h.b16 %v5845
        %v6241 = vunpack.c.l.b16 %v5846
        %v6242 = vunpack.c.h.b16 %v5846
        %v6243 = vunpack.c.l.b16 %v5847
        %v6244 = vunpack.c.h.b16 %v5847
        %v6245 = vunpack.c.l.b16 %v5848
        %v6246 = vunpack.c.h.b16 %v5848
        %v6247 = vunpack.c.l.b16 %v5849
        %v6248 = vunpack.c.h.b16 %v5849
        %v6249 = vunpack.c.l.b16 %v5850
        %v6250 = vunpack.c.h.b16 %v5850
        %v6251 = vunpack.c.l.b16 %v5851
        %v6252 = vunpack.c.h.b16 %v5851
        %v6253 = vunpack.c.l.b16 %v5852
        %v6254 = vunpack.c.h.b16 %v5852
        %v6255 = vunpack.c.l.b16 %v5853
        %v6256 = vunpack.c.h.b16 %v5853
        %v6257 = vunpack.c.l.b16 %v5854
        %v6258 = vunpack.c.h.b16 %v5854
        %v6259 = vunpack.c.l.b16 %v5855
        %v6260 = vunpack.c.h.b16 %v5855
        %v6261 = vunpack.c.l.b16 %v5856
        %v6262 = vunpack.c.h.b16 %v5856
        %v6263 = vunpack.c.l.b16 %v5857
        %v6264 = vunpack.c.h.b16 %v5857
        %v6265 = vunpack.c.l.b16 %v5858
        %v6266 = vunpack.c.h.b16 %v5858
        %v6267 = vunpack.c.l.b16 %v5859
        %v6268 = vunpack.c.h.b16 %v5859
        %v6269 = vunpack.c.l.b16 %v5860
        %v6270 = vunpack.c.h.b16 %v5860
        %v6271 = vunpack.c.l.b16 %v5861
        %v6272 = vunpack.c.h.b16 %v5861
        %v6273 = vunpack.c.l.b16 %v5862
        %v6274 = vunpack.c.h.b16 %v5862
        %v6275 = vunpack.c.l.b16 %v5863
        %v6276 = vunpack.c.h.b16 %v5863
        %v6277 = vunpack.c.l.b16 %v5864
        %v6278 = vunpack.c.h.b16 %v5864
        %v6279 = vunpack.c.l.b16 %v5865
        %v6280 = vunpack.c.h.b16 %v5865
        %v6281 = vunpack.c.l.b16 %v5866
        %v6282 = vunpack.c.h.b16 %v5866
        %v6283 = vunpack.c.l.b16 %v5867
        %v6284 = vunpack.c.h.b16 %v5867
        %v6285 = vunpack.c.l.b16 %v5868
        %v6286 = vunpack.c.h.b16 %v5868
        %v6287 = vunpack.c.l.b16 %v5869
        %v6288 = vunpack.c.h.b16 %v5869
        %v6289 = vunpack.c.l.b16 %v5870
        %v6290 = vunpack.c.h.b16 %v5870
        %v6291 = vunpack.c.l.b16 %v5871
        %v6292 = vunpack.c.h.b16 %v5871
        %v6293 = vunpack.c.l.b16 %v5872
        %v6294 = vunpack.c.h.b16 %v5872
        %v6295 = vunpack.c.l.b16 %v5873
        %v6296 = vunpack.c.h.b16 %v5873
        %v6297 = vunpack.c.l.b16 %v5874
        %v6298 = vunpack.c.h.b16 %v5874
        %v6299 = vunpack.c.l.b16 %v5875
        %v6300 = vunpack.c.h.b16 %v5875
        %v6301 = vunpack.c.l.b16 %v5876
        %v6302 = vunpack.c.h.b16 %v5876
        %v6303 = vunpack.c.l.b16 %v5877
        %v6304 = vunpack.c.h.b16 %v5877
        %v6305 = vunpack.c.l.b16 %v5878
        %v6306 = vunpack.c.h.b16 %v5878
        %v6307 = vunpack.c.l.b16 %v5879
        %v6308 = vunpack.c.h.b16 %v5879
        %v6309 = vunpack.c.l.b16 %v5880
        %v6310 = vunpack.c.h.b16 %v5880
        %v6311 = vunpack.c.l.b16 %v5881
        %v6312 = vunpack.c.h.b16 %v5881
        %v6313 = vunpack.c.l.b16 %v5882
        %v6314 = vunpack.c.h.b16 %v5882
        %v6315 = vunpack.c.l.b16 %v5883
        %v6316 = vunpack.c.h.b16 %v5883
        %v6317 = vunpack.c.l.b16 %v5884
        %v6318 = vunpack.c.h.b16 %v5884
        %v6319 = vunpack.c.l.b16 %v5885
        %v6320 = vunpack.c.h.b16 %v5885
        %v6321 = vunpack.c.l.b16 %v5886
        %v6322 = vunpack.c.h.b16 %v5886
        %v6323 = vunpack.c.l.b16 %v5887
        %v6324 = vunpack.c.h.b16 %v5887
        %v6325 = vunpack.c.l.b16 %v5888
        %v6326 = vunpack.c.h.b16 %v5888
        %v6327 = vunpack.c.l.b16 %v5889
        %v6328 = vunpack.c.h.b16 %v5889
        %v6329 = vunpack.c.l.b16 %v5890
        %v6330 = vunpack.c.h.b16 %v5890
        %v6331 = vunpack.c.l.b16 %v5891
        %v6332 = vunpack.c.h.b16 %v5891
        %v6333 = vunpack.c.l.b16 %v5892
        %v6334 = vunpack.c.h.b16 %v5892
        %v6335 = vunpack.c.l.b16 %v5893
        %v6336 = vunpack.c.h.b16 %v5893
        %v6337 = vunpack.c.l.b16 %v5894
        %v6338 = vunpack.c.h.b16 %v5894
        %v6339 = vunpack.c.l.b16 %v5895
        %v6340 = vunpack.c.h.b16 %v5895
        %v6341 = vunpack.c.l.b16 %v5896
        %v6342 = vunpack.c.h.b16 %v5896
        %v6343 = vunpack.c.l.b16 %v5897
        %v6344 = vunpack.c.h.b16 %v5897
        %v6345 = vunpack.c.l.b16 %v5898
        %v6346 = vunpack.c.h.b16 %v5898
        %v6347 = vunpack.c.l.b16 %v5899
        %v6348 = vunpack.c.h.b16 %v5899
        %v6349 = vunpack.c.l.b16 %v5900
        %v6350 = vunpack.c.h.b16 %v5900
        %v6351 = vunpack.c.l.b16 %v5901
        %v6352 = vunpack.c.h.b16 %v5901
        %v6353 = vunpack.c.l.b16 %v5902
        %v6354 = vunpack.c.h.b16 %v5902
        %v6355 = vunpack.c.l.b16 %v5903
        %v6356 = vunpack.c.h.b16 %v5903
        %v6357 = vunpack.c.l.b16 %v5904
        %v6358 = vunpack.c.h.b16 %v5904
        %v6359 = vunpack.c.l.b16 %v5905
        %v6360 = vunpack.c.h.b16 %v5905
        %v6361 = vunpack.c.l.b16 %v5906
        %v6362 = vunpack.c.h.b16 %v5906
        %v6363 = vunpack.c.l.b16 %v5907
        %v6364 = vunpack.c.h.b16 %v5907
        %v6365 = vunpack.c.l.b16 %v5908
        %v6366 = vunpack.c.h.b16 %v5908
        %v6367 = vunpack.c.l.b16 %v5909
        %v6368 = vunpack.c.h.b16 %v5909
        %v6369 = vunpack.c.l.b16 %v5910
        %v6370 = vunpack.c.h.b16 %v5910
        %v6371 = vunpack.c.l.b16 %v5911
        %v6372 = vunpack.c.h.b16 %v5911
        %v6373 = vunpack.c.l.b16 %v5912
        %v6374 = vunpack.c.h.b16 %v5912
        %v6375 = vunpack.c.l.b16 %v5913
        %v6376 = vunpack.c.h.b16 %v5913
        %v6377 = vunpack.c.l.b16 %v5914
        %v6378 = vunpack.c.h.b16 %v5914
        %v6379 = vunpack.c.l.b16 %v5915
        %v6380 = vunpack.c.h.b16 %v5915
        %v6381 = vunpack.c.l.b16 %v5916
        %v6382 = vunpack.c.h.b16 %v5916
        %v6383 = vunpack.c.l.b16 %v5917
        %v6384 = vunpack.c.h.b16 %v5917
        %v6385 = vunpack.c.l.b16 %v5918
        %v6386 = vunpack.c.h.b16 %v5918
        %v6387 = vunpack.c.l.b16 %v5919
        %v6388 = vunpack.c.h.b16 %v5919
        %v6389 = vunpack.c.l.b16 %v5920
        %v6390 = vunpack.c.h.b16 %v5920
        %v6391 = vunpack.c.l.b16 %v5921
        %v6392 = vunpack.c.h.b16 %v5921
        %v6393 = vunpack.c.l.b16 %v5922
        %v6394 = vunpack.c.h.b16 %v5922
        %v6395 = vunpack.c.l.b16 %v5923
        %v6396 = vunpack.c.h.b16 %v5923
        %v6397 = vunpack.c.l.b16 %v5924
        %v6398 = vunpack.c.h.b16 %v5924
        %v6399 = vunpack.c.l.b16 %v5925
        %v6400 = vunpack.c.h.b16 %v5925
        %v6401 = vunpack.c.l.b16 %v5926
        %v6402 = vunpack.c.h.b16 %v5926
        %v6403 = vunpack.c.l.b16 %v5927
        %v6404 = vunpack.c.h.b16 %v5927
        %v6405 = vunpack.c.l.b16 %v5928
        %v6406 = vunpack.c.h.b16 %v5928
        %v6407 = vunpack.c.l.b16 %v5929
        %v6408 = vunpack.c.h.b16 %v5929
        %v6409 = vunpack.c.l.b16 %v5930
        %v6410 = vunpack.c.h.b16 %v5930
        %v6411 = vunpack.c.l.b16 %v5931
        %v6412 = vunpack.c.h.b16 %v5931
        %v6413 = vunpack.c.l.b16 %v5932
        %v6414 = vunpack.c.h.b16 %v5932
        %v6415 = vunpack.c.l.b16 %v5933
        %v6416 = vunpack.c.h.b16 %v5933
        %v6417 = vunpack.c.l.b16 %v5934
        %v6418 = vunpack.c.h.b16 %v5934
        %v6419 = vunpack.c.l.b16 %v5935
        %v6420 = vunpack.c.h.b16 %v5935
        %v6421 = vunpack.c.l.b16 %v5936
        %v6422 = vunpack.c.h.b16 %v5936
        %v6423 = vunpack.c.l.b16 %v5937
        %v6424 = vunpack.c.h.b16 %v5937
        %v6425 = vunpack.c.l.b16 %v5938
        %v6426 = vunpack.c.h.b16 %v5938
        %v6427 = vunpack.c.l.b16 %v5939
        %v6428 = vunpack.c.h.b16 %v5939
        %v6429 = vunpack.c.l.b16 %v5940
        %v6430 = vunpack.c.h.b16 %v5940
        %v6431 = vunpack.c.l.b16 %v5941
        %v6432 = vunpack.c.h.b16 %v5941
        %v6433 = vunpack.c.l.b16 %v5942
        %v6434 = vunpack.c.h.b16 %v5942
        %v6435 = vunpack.c.l.b16 %v5943
        %v6436 = vunpack.c.h.b16 %v5943
        %v6437 = vunpack.c.l.b16 %v5944
        %v6438 = vunpack.c.h.b16 %v5944
        %v6439 = vunpack.c.l.b16 %v5945
        %v6440 = vunpack.c.h.b16 %v5945
        %v6441 = vunpack.c.l.b16 %v5946
        %v6442 = vunpack.c.h.b16 %v5946
        %v6443 = vunpack.c.l.b16 %v5947
        %v6444 = vunpack.c.h.b16 %v5947
        %v6445 = vunpack.c.l.b16 %v5948
        %v6446 = vunpack.c.h.b16 %v5948
        %v6447 = vunpack.c.l.b16 %v5949
        %v6448 = vunpack.c.h.b16 %v5949
        %v6449 = vunpack.c.l.b16 %v5950
        %v6450 = vunpack.c.h.b16 %v5950
        %v6451 = vunpack.c.l.b16 %v5951
        %v6452 = vunpack.c.h.b16 %v5951
        %v6453 = vunpack.c.l.b16 %v5952
        %v6454 = vunpack.c.h.b16 %v5952
        %v6455 = vunpack.c.l.b16 %v5953
        %v6456 = vunpack.c.h.b16 %v5953
        %v6457 = vunpack.c.l.b16 %v5954
        %v6458 = vunpack.c.h.b16 %v5954
        %v6459 = vunpack.c.l.b16 %v5955
        %v6460 = vunpack.c.h.b16 %v5955
        %v6461 = vunpack.c.l.b16 %v5956
        %v6462 = vunpack.c.h.b16 %v5956
        %v6463 = vunpack.c.l.b16 %v5957
        %v6464 = vunpack.c.h.b16 %v5957
        %v6465 = vunpack.c.l.b16 %v5958
        %v6466 = vunpack.c.h.b16 %v5958
        %v6467 = vunpack.c.l.b16 %v5959
        %v6468 = vunpack.c.h.b16 %v5959
        %v6469 = vunpack.c.l.b16 %v5960
        %v6470 = vunpack.c.h.b16 %v5960
        %v6471 = vunpack.c.l.b16 %v5961
        %v6472 = vunpack.c.h.b16 %v5961
        %v6473 = vunpack.c.l.b16 %v5962
        %v6474 = vunpack.c.h.b16 %v5962
        %v6475 = vunpack.c.l.b16 %v5963
        %v6476 = vunpack.c.h.b16 %v5963
        %v6477 = vunpack.c.l.b16 %v5964
        %v6478 = vunpack.c.h.b16 %v5964
        %v6479 = vunpack.c.l.b16 %v5965
        %v6480 = vunpack.c.h.b16 %v5965
        %v6481 = vunpack.c.l.b16 %v5966
        %v6482 = vunpack.c.h.b16 %v5966
        %v6483 = vunpack.c.l.b16 %v5967
        %v6484 = vunpack.c.h.b16 %v5967
        %v6485 = vunpack.c.l.b16 %v5968
        %v6486 = vunpack.c.h.b16 %v5968
        %v6487 = vunpack.c.l.b16 %v5969
        %v6488 = vunpack.c.h.b16 %v5969
        %v6489 = vunpack.c.l.b16 %v5970
        %v6490 = vunpack.c.h.b16 %v5970
        %v6491 = vunpack.c.l.b16 %v5971
        %v6492 = vunpack.c.h.b16 %v5971
        %v6493 = vunpack.c.l.b16 %v5972
        %v6494 = vunpack.c.h.b16 %v5972
        %v6495 = vunpack.c.l.b16 %v5973
        %v6496 = vunpack.c.h.b16 %v5973
        %v6497 = vunpack.c.l.b16 %v5974
        %v6498 = vunpack.c.h.b16 %v5974
        %v6499 = vunpack.c.l.b16 %v5975
        %v6500 = vunpack.c.h.b16 %v5975
        %v6501 = vunpack.c.l.b16 %v5976
        %v6502 = vunpack.c.h.b16 %v5976
        %v6503 = vunpack.c.l.b16 %v5977
        %v6504 = vunpack.c.h.b16 %v5977
        %v6505 = vunpack.c.l.b16 %v5978
        %v6506 = vunpack.c.h.b16 %v5978
        %v6507 = vunpack.c.l.b16 %v5979
        %v6508 = vunpack.c.h.b16 %v5979
        %v6509 = vunpack.c.l.b16 %v5980
        %v6510 = vunpack.c.h.b16 %v5980
        %v6511 = vunpack.c.l.b16 %v5981
        %v6512 = vunpack.c.h.b16 %v5981
        %v6513 = vunpack.c.l.b16 %v5982
        %v6514 = vunpack.c.h.b16 %v5982
        %v6515 = vunpack.c.l.b16 %v5983
        %v6516 = vunpack.c.h.b16 %v5983
        %v6517 = vunpack.c.l.b16 %v5984
        %v6518 = vunpack.c.h.b16 %v5984
        %v6519 = vunpack.c.l.b16 %v5985
        %v6520 = vunpack.c.h.b16 %v5985
        %v6521 = vpack.c.b16 %v6205, %v6201
        %v6522 = vpack.c.b16 %v6206, %v6202
        %v6523 = vpack.c.b16 %v6207, %v6203
        %v6524 = vpack.c.b16 %v6208, %v6204
        %v6525 = vpack.c.b16 %v6213, %v6209
        %v6526 = vpack.c.b16 %v6214, %v6210
        %v6527 = vpack.c.b16 %v6215, %v6211
        %v6528 = vpack.c.b16 %v6216, %v6212
        %v6529 = vpack.c.b16 %v6221, %v6217
        %v6530 = vpack.c.b16 %v6222, %v6218
        %v6531 = vpack.c.b16 %v6223, %v6219
        %v6532 = vpack.c.b16 %v6224, %v6220
        %v6533 = vpack.c.b16 %v6229, %v6225
        %v6534 = vpack.c.b16 %v6230, %v6226
        %v6535 = vpack.c.b16 %v6231, %v6227
        %v6536 = vpack.c.b16 %v6232, %v6228
        %v6537 = vpack.c.b16 %v6237, %v6233
        %v6538 = vpack.c.b16 %v6238, %v6234
        %v6539 = vpack.c.b16 %v6239, %v6235
        %v6540 = vpack.c.b16 %v6240, %v6236
        %v6541 = vpack.c.b16 %v6245, %v6241
        %v6542 = vpack.c.b16 %v6246, %v6242
        %v6543 = vpack.c.b16 %v6247, %v6243
        %v6544 = vpack.c.b16 %v6248, %v6244
        %v6545 = vpack.c.b16 %v6253, %v6249
        %v6546 = vpack.c.b16 %v6254, %v6250
        %v6547 = vpack.c.b16 %v6255, %v6251
        %v6548 = vpack.c.b16 %v6256, %v6252
        %v6549 = vpack.c.b16 %v6261, %v6257
        %v6550 = vpack.c.b16 %v6262, %v6258
        %v6551 = vpack.c.b16 %v6263, %v6259
        %v6552 = vpack.c.b16 %v6264, %v6260
        %v6553 = vpack.c.b16 %v6269, %v6265
        %v6554 = vpack.c.b16 %v6270, %v6266
        %v6555 = vpack.c.b16 %v6271, %v6267
        %v6556 = vpack.c.b16 %v6272, %v6268
        %v6557 = vpack.c.b16 %v6277, %v6273
        %v6558 = vpack.c.b16 %v6278, %v6274
        %v6559 = vpack.c.b16 %v6279, %v6275
        %v6560 = vpack.c.b16 %v6280, %v6276
        %v6561 = vpack.c.b16 %v6285, %v6281
        %v6562 = vpack.c.b16 %v6286, %v6282
        %v6563 = vpack.c.b16 %v6287, %v6283
        %v6564 = vpack.c.b16 %v6288, %v6284
        %v6565 = vpack.c.b16 %v6293, %v6289
        %v6566 = vpack.c.b16 %v6294, %v6290
        %v6567 = vpack.c.b16 %v6295, %v6291
        %v6568 = vpack.c.b16 %v6296, %v6292
        %v6569 = vpack.c.b16 %v6301, %v6297
        %v6570 = vpack.c.b16 %v6302, %v6298
        %v6571 = vpack.c.b16 %v6303, %v6299
        %v6572 = vpack.c.b16 %v6304, %v6300
        %v6573 = vpack.c.b16 %v6309, %v6305
        %v6574 = vpack.c.b16 %v6310, %v6306
        %v6575 = vpack.c.b16 %v6311, %v6307
        %v6576 = vpack.c.b16 %v6312, %v6308
        %v6577 = vpack.c.b16 %v6317, %v6313
        %v6578 = vpack.c.b16 %v6318, %v6314
        %v6579 = vpack.c.b16 %v6319, %v6315
        %v6580 = vpack.c.b16 %v6320, %v6316
        %v6581 = vpack.c.b16 %v6325, %v6321
        %v6582 = vpack.c.b16 %v6326, %v6322
        %v6583 = vpack.c.b16 %v6327, %v6323
        %v6584 = vpack.c.b16 %v6328, %v6324
        %v6585 = vpack.c.b16 %v6333, %v6329
        %v6586 = vpack.c.b16 %v6334, %v6330
        %v6587 = vpack.c.b16 %v6335, %v6331
        %v6588 = vpack.c.b16 %v6336, %v6332
        %v6589 = vpack.c.b16 %v6341, %v6337
        %v6590 = vpack.c.b16 %v6342, %v6338
        %v6591 = vpack.c.b16 %v6343, %v6339
        %v6592 = vpack.c.b16 %v6344, %v6340
        %v6593 = vpack.c.b16 %v6349, %v6345
        %v6594 = vpack.c.b16 %v6350, %v6346
        %v6595 = vpack.c.b16 %v6351, %v6347
        %v6596 = vpack.c.b16 %v6352, %v6348
        %v6597 = vpack.c.b16 %v6357, %v6353
        %v6598 = vpack.c.b16 %v6358, %v6354
        %v6599 = vpack.c.b16 %v6359, %v6355
        %v6600 = vpack.c.b16 %v6360, %v6356
        %v6601 = vpack.c.b16 %v6365, %v6361
        %v6602 = vpack.c.b16 %v6366, %v6362
        %v6603 = vpack.c.b16 %v6367, %v6363
        %v6604 = vpack.c.b16 %v6368, %v6364
        %v6605 = vpack.c.b16 %v6373, %v6369
        %v6606 = vpack.c.b16 %v6374, %v6370
        %v6607 = vpack.c.b16 %v6375, %v6371
        %v6608 = vpack.c.b16 %v6376, %v6372
        %v6609 = vpack.c.b16 %v6381, %v6377
        %v6610 = vpack.c.b16 %v6382, %v6378
        %v6611 = vpack.c.b16 %v6383, %v6379
        %v6612 = vpack.c.b16 %v6384, %v6380
        %v6613 = vpack.c.b16 %v6389, %v6385
        %v6614 = vpack.c.b16 %v6390, %v6386
        %v6615 = vpack.c.b16 %v6391, %v6387
        %v6616 = vpack.c.b16 %v6392, %v6388
        %v6617 = vpack.c.b16 %v6397, %v6393
        %v6618 = vpack.c.b16 %v6398, %v6394
        %v6619 = vpack.c.b16 %v6399, %v6395
        %v6620 = vpack.c.b16 %v6400, %v6396
        %v6621 = vpack.c.b16 %v6405, %v6401
        %v6622 = vpack.c.b16 %v6406, %v6402
        %v6623 = vpack.c.b16 %v6407, %v6403
        %v6624 = vpack.c.b16 %v6408, %v6404
        %v6625 = vpack.c.b16 %v6413, %v6409
        %v6626 = vpack.c.b16 %v6414, %v6410
        %v6627 = vpack.c.b16 %v6415, %v6411
        %v6628 = vpack.c.b16 %v6416, %v6412
        %v6629 = vpack.c.b16 %v6421, %v6417
        %v6630 = vpack.c.b16 %v6422, %v6418
        %v6631 = vpack.c.b16 %v6423, %v6419
        %v6632 = vpack.c.b16 %v6424, %v6420
        %v6633 = vpack.c.b16 %v6429, %v6425
        %v6634 = vpack.c.b16 %v6430, %v6426
        %v6635 = vpack.c.b16 %v6431, %v6427
        %v6636 = vpack.c.b16 %v6432, %v6428
        %v6637 = vpack.c.b16 %v6437, %v6433
        %v6638 = vpack.c.b16 %v6438, %v6434
        %v6639 = vpack.c.b16 %v6439, %v6435
        %v6640 = vpack.c.b16 %v6440, %v6436
        %v6641 = vpack.c.b16 %v6445, %v6441
        %v6642 = vpack.c.b16 %v6446, %v6442
        %v6643 = vpack.c.b16 %v6447, %v6443
        %v6644 = vpack.c.b16 %v6448, %v6444
        %v6645 = vpack.c.b16 %v6453, %v6449
        %v6646 = vpack.c.b16 %v6454, %v6450
        %v6647 = vpack.c.b16 %v6455, %v6451
        %v6648 = vpack.c.b16 %v6456, %v6452
        %v6649 = vpack.c.b16 %v6461, %v6457
        %v6650 = vpack.c.b16 %v6462, %v6458
        %v6651 = vpack.c.b16 %v6463, %v6459
        %v6652 = vpack.c.b16 %v6464, %v6460
        %v6653 = vpack.c.b16 %v6469, %v6465
        %v6654 = vpack.c.b16 %v6470, %v6466
        %v6655 = vpack.c.b16 %v6471, %v6467
        %v6656 = vpack.c.b16 %v6472, %v6468
        %v6657 = vpack.c.b16 %v6477, %v6473
        %v6658 = vpack.c.b16 %v6478, %v6474
        %v6659 = vpack.c.b16 %v6479, %v6475
        %v6660 = vpack.c.b16 %v6480, %v6476
        %v6661 = vpack.c.b16 %v6485, %v6481
        %v6662 = vpack.c.b16 %v6486, %v6482
        %v6663 = vpack.c.b16 %v6487, %v6483
        %v6664 = vpack.c.b16 %v6488, %v6484
        %v6665 = vpack.c.b16 %v6493, %v6489
        %v6666 = vpack.c.b16 %v6494, %v6490
        %v6667 = vpack.c.b16 %v6495, %v6491
        %v6668 = vpack.c.b16 %v6496, %v6492
        %v6669 = vpack.c.b16 %v6501, %v6497
        %v6670 = vpack.c.b16 %v6502, %v6498
        %v6671 = vpack.c.b16 %v6503, %v6499
        %v6672 = vpack.c.b16 %v6504, %v6500
        %v6673 = vpack.c.b16 %v6509, %v6505
        %v6674 = vpack.c.b16 %v6510, %v6506
        %v6675 = vpack.c.b16 %v6511, %v6507
        %v6676 = vpack.c.b16 %v6512, %v6508
        %v6677 = vpack.c.b16 %v6517, %v6513
        %v6678 = vpack.c.b16 %v6518, %v6514
        %v6679 = vpack.c.b16 %v6519, %v6515
        %v6680 = vpack.c.b16 %v6520, %v6516
        %6841 = vmatprep.subr.bf16.mxu0 %v6522
        %6842 = vmatpush1.bf16.msra.mxu0 %v6521
        %6843 = vmatprep.subr.bf16.mxu0 %v6526
        %6844 = vmatpush1.bf16.msra.mxu0 %v6525
        %6845 = vmatprep.subr.bf16.mxu0 %v6530
        %6846 = vmatpush1.bf16.msra.mxu0 %v6529
        %6847 = vmatprep.subr.bf16.mxu0 %v6534
        %6848 = vmatpush1.bf16.msra.mxu0 %v6533
        %6849 = vmatprep.subr.bf16.mxu0 %v6538
        %6850 = vmatpush1.bf16.msra.mxu0 %v6537
        %6851 = vmatprep.subr.bf16.mxu0 %v6542
        %6852 = vmatpush1.bf16.msra.mxu0 %v6541
        %6853 = vmatprep.subr.bf16.mxu0 %v6546
        %6854 = vmatpush1.bf16.msra.mxu0 %v6545
        %6855 = vmatprep.subr.bf16.mxu0 %v6550
        %6856 = vmatpush1.bf16.msra.mxu0 %v6549
        %6857 = vmatprep.subr.bf16.mxu0 %v6554
        %6858 = vmatpush1.bf16.msra.mxu0 %v6553
        %6859 = vmatprep.subr.bf16.mxu0 %v6558
        %6860 = vmatpush1.bf16.msra.mxu0 %v6557
        %6861 = vmatprep.subr.bf16.mxu0 %v6562
        %6862 = vmatpush1.bf16.msra.mxu0 %v6561
        %6863 = vmatprep.subr.bf16.mxu0 %v6566
        %6864 = vmatpush1.bf16.msra.mxu0 %v6565
        %6865 = vmatprep.subr.bf16.mxu0 %v6570
        %6866 = vmatpush1.bf16.msra.mxu0 %v6569
        %6867 = vmatprep.subr.bf16.mxu0 %v6574
        %6868 = vmatpush1.bf16.msra.mxu0 %v6573
        %6869 = vmatprep.subr.bf16.mxu0 %v6578
        %6870 = vmatpush1.bf16.msra.mxu0 %v6577
        %6871 = vmatprep.subr.bf16.mxu0 %v6582
        %6872 = vmatpush1.bf16.msra.mxu0 %v6581
        %6873 = vmatprep.mubr.bf16.mxu0 %v6026
        %6874 = vmatmul.mubr.bf16.gmra.mrb[0].mxu0 %v6023
        %v6875 = vpop.f32.mrb[0].mxu0
        %v6876 = vadd.f32 0.0, %v6875
        %v6877 = vpop.f32.mrb[0].mxu0
        %v6878 = vadd.f32 0.0, %v6877
        %v6879 = vpop.f32.mrb[0].mxu0
        %v6880 = vadd.f32 0.0, %v6879
        %v6881 = vpop.f32.mrb[0].mxu0
        %v6882 = vadd.f32 0.0, %v6881
        %6883 = vdwg.mxu0
        %6884 = vmatprep.subr.bf16.mxu0 %v6586
        %6885 = vmatpush1.bf16.msra.mxu0 %v6585
        %6886 = vmatprep.subr.bf16.mxu0 %v6590
        %6887 = vmatpush1.bf16.msra.mxu0 %v6589
        %6888 = vmatprep.subr.bf16.mxu0 %v6594
        %6889 = vmatpush1.bf16.msra.mxu0 %v6593
        %6890 = vmatprep.subr.bf16.mxu0 %v6598
        %6891 = vmatpush1.bf16.msra.mxu0 %v6597
        %6892 = vmatprep.subr.bf16.mxu0 %v6602
        %6893 = vmatpush1.bf16.msra.mxu0 %v6601
        %6894 = vmatprep.subr.bf16.mxu0 %v6606
        %6895 = vmatpush1.bf16.msra.mxu0 %v6605
        %6896 = vmatprep.subr.bf16.mxu0 %v6610
        %6897 = vmatpush1.bf16.msra.mxu0 %v6609
        %6898 = vmatprep.subr.bf16.mxu0 %v6614
        %6899 = vmatpush1.bf16.msra.mxu0 %v6613
        %6900 = vmatprep.subr.bf16.mxu0 %v6618
        %6901 = vmatpush1.bf16.msra.mxu0 %v6617
        %6902 = vmatprep.subr.bf16.mxu0 %v6622
        %6903 = vmatpush1.bf16.msra.mxu0 %v6621
        %6904 = vmatprep.subr.bf16.mxu0 %v6626
        %6905 = vmatpush1.bf16.msra.mxu0 %v6625
        %6906 = vmatprep.subr.bf16.mxu0 %v6630
        %6907 = vmatpush1.bf16.msra.mxu0 %v6629
        %6908 = vmatprep.subr.bf16.mxu0 %v6634
        %6909 = vmatpush1.bf16.msra.mxu0 %v6633
        %6910 = vmatprep.subr.bf16.mxu0 %v6638
        %6911 = vmatpush1.bf16.msra.mxu0 %v6637
        %6912 = vmatprep.subr.bf16.mxu0 %v6642
        %6913 = vmatpush1.bf16.msra.mxu0 %v6641
        %6914 = vmatprep.subr.bf16.mxu0 %v6646
        %6915 = vmatpush1.bf16.msra.mxu0 %v6645
        %6916 = vmatprep.mubr.bf16.mxu0 %v6032
        %6917 = vmatmul.mubr.bf16.gmra.mrb[0].mxu0 %v6029
        %v6918 = vpop.f32.mrb[0].mxu0
        %v6919 = vadd.f32 %v6876, %v6918
        %v6920 = vpop.f32.mrb[0].mxu0
        %v6921 = vadd.f32 %v6878, %v6920
        %v6922 = vpop.f32.mrb[0].mxu0
        %v6923 = vadd.f32 %v6880, %v6922
        %v6924 = vpop.f32.mrb[0].mxu0
        %v6925 = vadd.f32 %v6882, %v6924
        %6926 = vdwg.mxu0
        %6927 = vmatprep.subr.bf16.mxu0 %v6650
        %6928 = vmatpush1.bf16.msra.mxu0 %v6649
        %6929 = vmatprep.subr.bf16.mxu0 %v6654
        %6930 = vmatpush1.bf16.msra.mxu0 %v6653
        %6931 = vmatprep.subr.bf16.mxu0 %v6658
        %6932 = vmatpush1.bf16.msra.mxu0 %v6657
        %6933 = vmatprep.subr.bf16.mxu0 %v6662
        %6934 = vmatpush1.bf16.msra.mxu0 %v6661
        %6935 = vmatprep.subr.bf16.mxu0 %v6666
        %6936 = vmatpush1.bf16.msra.mxu0 %v6665
        %6937 = vmatprep.subr.bf16.mxu0 %v6670
        %6938 = vmatpush1.bf16.msra.mxu0 %v6669
        %6939 = vmatprep.subr.bf16.mxu0 %v6674
        %6940 = vmatpush1.bf16.msra.mxu0 %v6673
        %6941 = vmatprep.subr.bf16.mxu0 %v6678
        %6942 = vmatpush1.bf16.msra.mxu0 %v6677
        %6943 = vmatprep.subr.bf16.mxu0 0
        %6944 = vmatpush1.bf16.msra.mxu0 0
        %6945 = vmatprep.subr.bf16.mxu0 0
        %6946 = vmatpush1.bf16.msra.mxu0 0
        %6947 = vmatprep.subr.bf16.mxu0 0
        %6948 = vmatpush1.bf16.msra.mxu0 0
        %6949 = vmatprep.subr.bf16.mxu0 0
        %6950 = vmatpush1.bf16.msra.mxu0 0
        %6951 = vmatprep.subr.bf16.mxu0 0
        %6952 = vmatpush1.bf16.msra.mxu0 0
        %6953 = vmatprep.subr.bf16.mxu0 0
        %6954 = vmatpush1.bf16.msra.mxu0 0
        %6955 = vmatprep.subr.bf16.mxu0 0
        %6956 = vmatpush1.bf16.msra.mxu0 0
        %6957 = vmatprep.subr.bf16.mxu0 0
        %6958 = vmatpush1.bf16.msra.mxu0 0
        %6959 = vmatprep.mubr.bf16.mxu0 0
        %6960 = vmatmul.mubr.bf16.gmra.mrb[0].mxu0 %v6035
        %v6961 = vpop.f32.mrb[0].mxu0
        %v6962 = vadd.f32 %v6919, %v6961
        %v6963 = vpop.f32.mrb[0].mxu0
        %v6964 = vadd.f32 %v6921, %v6963
        %v6965 = vpop.f32.mrb[0].mxu0
        %v6966 = vadd.f32 %v6923, %v6965
        %v6967 = vpop.f32.mrb[0].mxu0
        %v6968 = vadd.f32 %v6925, %v6967
        %6969 = vdwg.mxu0
        %6970 = vmatprep.subr.bf16.mxu0 %v6524
        %6971 = vmatpush1.bf16.msra.mxu0 %v6523
        %6972 = vmatprep.subr.bf16.mxu0 %v6528
        %6973 = vmatpush1.bf16.msra.mxu0 %v6527
        %6974 = vmatprep.subr.bf16.mxu0 %v6532
        %6975 = vmatpush1.bf16.msra.mxu0 %v6531
        %6976 = vmatprep.subr.bf16.mxu0 %v6536
        %6977 = vmatpush1.bf16.msra.mxu0 %v6535
        %6978 = vmatprep.subr.bf16.mxu0 %v6540
        %6979 = vmatpush1.bf16.msra.mxu0 %v6539
        %6980 = vmatprep.subr.bf16.mxu0 %v6544
        %6981 = vmatpush1.bf16.msra.mxu0 %v6543
        %6982 = vmatprep.subr.bf16.mxu0 %v6548
        %6983 = vmatpush1.bf16.msra.mxu0 %v6547
        %6984 = vmatprep.subr.bf16.mxu0 %v6552
        %6985 = vmatpush1.bf16.msra.mxu0 %v6551
        %6986 = vmatprep.subr.bf16.mxu0 %v6556
        %6987 = vmatpush1.bf16.msra.mxu0 %v6555
        %6988 = vmatprep.subr.bf16.mxu0 %v6560
        %6989 = vmatpush1.bf16.msra.mxu0 %v6559
        %6990 = vmatprep.subr.bf16.mxu0 %v6564
        %6991 = vmatpush1.bf16.msra.mxu0 %v6563
        %6992 = vmatprep.subr.bf16.mxu0 %v6568
        %6993 = vmatpush1.bf16.msra.mxu0 %v6567
        %6994 = vmatprep.subr.bf16.mxu0 %v6572
        %6995 = vmatpush1.bf16.msra.mxu0 %v6571
        %6996 = vmatprep.subr.bf16.mxu0 %v6576
        %6997 = vmatpush1.bf16.msra.mxu0 %v6575
        %6998 = vmatprep.subr.bf16.mxu0 %v6580
        %6999 = vmatpush1.bf16.msra.mxu0 %v6579
        %7000 = vmatprep.subr.bf16.mxu0 %v6584
        %7001 = vmatpush1.bf16.msra.mxu0 %v6583
        %7002 = vmatprep.mubr.bf16.mxu0 %v6026
        %7003 = vmatmul.mubr.bf16.gmra.mrb[0].mxu0 %v6023
        %v7004 = vpop.f32.mrb[0].mxu0
        %v7005 = vadd.f32 0.0, %v7004
        %v7006 = vpop.f32.mrb[0].mxu0
        %v7007 = vadd.f32 0.0, %v7006
        %v7008 = vpop.f32.mrb[0].mxu0
        %v7009 = vadd.f32 0.0, %v7008
        %v7010 = vpop.f32.mrb[0].mxu0
        %v7011 = vadd.f32 0.0, %v7010
        %7012 = vdwg.mxu0
        %7013 = vmatprep.subr.bf16.mxu0 %v6588
        %7014 = vmatpush1.bf16.msra.mxu0 %v6587
        %7015 = vmatprep.subr.bf16.mxu0 %v6592
        %7016 = vmatpush1.bf16.msra.mxu0 %v6591
        %7017 = vmatprep.subr.bf16.mxu0 %v6596
        %7018 = vmatpush1.bf16.msra.mxu0 %v6595
        %7019 = vmatprep.subr.bf16.mxu0 %v6600
        %7020 = vmatpush1.bf16.msra.mxu0 %v6599
        %7021 = vmatprep.subr.bf16.mxu0 %v6604
        %7022 = vmatpush1.bf16.msra.mxu0 %v6603
        %7023 = vmatprep.subr.bf16.mxu0 %v6608
        %7024 = vmatpush1.bf16.msra.mxu0 %v6607
        %7025 = vmatprep.subr.bf16.mxu0 %v6612
        %7026 = vmatpush1.bf16.msra.mxu0 %v6611
        %7027 = vmatprep.subr.bf16.mxu0 %v6616
        %7028 = vmatpush1.bf16.msra.mxu0 %v6615
        %7029 = vmatprep.subr.bf16.mxu0 %v6620
        %7030 = vmatpush1.bf16.msra.mxu0 %v6619
        %7031 = vmatprep.subr.bf16.mxu0 %v6624
        %7032 = vmatpush1.bf16.msra.mxu0 %v6623
        %7033 = vmatprep.subr.bf16.mxu0 %v6628
        %7034 = vmatpush1.bf16.msra.mxu0 %v6627
        %7035 = vmatprep.subr.bf16.mxu0 %v6632
        %7036 = vmatpush1.bf16.msra.mxu0 %v6631
        %7037 = vmatprep.subr.bf16.mxu0 %v6636
        %7038 = vmatpush1.bf16.msra.mxu0 %v6635
        %7039 = vmatprep.subr.bf16.mxu0 %v6640
        %7040 = vmatpush1.bf16.msra.mxu0 %v6639
        %7041 = vmatprep.subr.bf16.mxu0 %v6644
        %7042 = vmatpush1.bf16.msra.mxu0 %v6643
        %7043 = vmatprep.subr.bf16.mxu0 %v6648
        %7044 = vmatpush1.bf16.msra.mxu0 %v6647
        %7045 = vmatprep.mubr.bf16.mxu0 %v6032
        %7046 = vmatmul.mubr.bf16.gmra.mrb[0].mxu0 %v6029
        %v7047 = vpop.f32.mrb[0].mxu0
        %v7048 = vadd.f32 %v7005, %v7047
        %v7049 = vpop.f32.mrb[0].mxu0
        %v7050 = vadd.f32 %v7007, %v7049
        %v7051 = vpop.f32.mrb[0].mxu0
        %v7052 = vadd.f32 %v7009, %v7051
        %v7053 = vpop.f32.mrb[0].mxu0
        %v7054 = vadd.f32 %v7011, %v7053
        %7055 = vdwg.mxu0
        %7056 = vmatprep.subr.bf16.mxu0 %v6652
        %7057 = vmatpush1.bf16.msra.mxu0 %v6651
        %7058 = vmatprep.subr.bf16.mxu0 %v6656
        %7059 = vmatpush1.bf16.msra.mxu0 %v6655
        %7060 = vmatprep.subr.bf16.mxu0 %v6660
        %7061 = vmatpush1.bf16.msra.mxu0 %v6659
        %7062 = vmatprep.subr.bf16.mxu0 %v6664
        %7063 = vmatpush1.bf16.msra.mxu0 %v6663
        %7064 = vmatprep.subr.bf16.mxu0 %v6668
        %7065 = vmatpush1.bf16.msra.mxu0 %v6667
        %7066 = vmatprep.subr.bf16.mxu0 %v6672
        %7067 = vmatpush1.bf16.msra.mxu0 %v6671
        %7068 = vmatprep.subr.bf16.mxu0 %v6676
        %7069 = vmatpush1.bf16.msra.mxu0 %v6675
        %7070 = vmatprep.subr.bf16.mxu0 %v6680
        %7071 = vmatpush1.bf16.msra.mxu0 %v6679
        %7072 = vmatprep.subr.bf16.mxu0 0
        %7073 = vmatpush1.bf16.msra.mxu0 0
        %7074 = vmatprep.subr.bf16.mxu0 0
        %7075 = vmatpush1.bf16.msra.mxu0 0
        %7076 = vmatprep.subr.bf16.mxu0 0
        %7077 = vmatpush1.bf16.msra.mxu0 0
        %7078 = vmatprep.subr.bf16.mxu0 0
        %7079 = vmatpush1.bf16.msra.mxu0 0
        %7080 = vmatprep.subr.bf16.mxu0 0
        %7081 = vmatpush1.bf16.msra.mxu0 0
        %7082 = vmatprep.subr.bf16.mxu0 0
        %7083 = vmatpush1.bf16.msra.mxu0 0
        %7084 = vmatprep.subr.bf16.mxu0 0
        %7085 = vmatpush1.bf16.msra.mxu0 0
        %7086 = vmatprep.subr.bf16.mxu0 0
        %7087 = vmatpush1.bf16.msra.mxu0 0
        %7088 = vmatprep.mubr.bf16.mxu0 0
        %7089 = vmatmul.mubr.bf16.gmra.mrb[0].mxu0 %v6035
        %v7090 = vpop.f32.mrb[0].mxu0
        %v7091 = vadd.f32 %v7048, %v7090
        %v7092 = vpop.f32.mrb[0].mxu0
        %v7093 = vadd.f32 %v7050, %v7092
        %v7094 = vpop.f32.mrb[0].mxu0
        %v7095 = vadd.f32 %v7052, %v7094
        %v7096 = vpop.f32.mrb[0].mxu0
        %v7097 = vadd.f32 %v7054, %v7096
        %7098 = vdwg.mxu0
        %v7099 = vadd.f32 %v5817, %v6962
        %v7100 = vadd.f32 %v5818, %v6964
        %v7101 = vadd.f32 %v5819, %v7091
        %v7102 = vadd.f32 %v5820, %v7093
        %v7103 = vadd.f32 %v5821, %v6966
        %v7104 = vadd.f32 %v5822, %v6968
        %v7105 = vadd.f32 %v5823, %v7095
        %v7106 = vadd.f32 %v5824, %v7097
        %7107 = vst [vmem:[%s294] sm:$0xff] %v7099
        %7108 = vst [vmem:[%s294 + $0x8] sm:$0xff] %v7100
        %7109 = vst [vmem:[%s294 + $0x10] sm:$0xff] %v7101
        %7110 = vst [vmem:[%s294 + $0x18] sm:$0xff] %v7102
        %7111 = vst [vmem:[%s294 + $0x20] sm:$0xff] %v7103
        %7112 = vst [vmem:[%s294 + $0x28] sm:$0xff] %v7104
        %7113 = vst [vmem:[%s294 + $0x30] sm:$0xff] %v7105
        %7114 = vst [vmem:[%s294 + $0x38] sm:$0xff] %v7106
        %v7115 = vld [vmem:[%s294] sm:$0xff]
        %v7116 = vld [vmem:[%s294 + $0x8] sm:$0xff]
        %v7117 = vld [vmem:[%s294 + $0x10] sm:$0xff]
        %v7118 = vld [vmem:[%s294 + $0x18] sm:$0xff]
        %v7119 = vld [vmem:[%s294 + $0x20] sm:$0xff]
        %v7120 = vld [vmem:[%s294 + $0x28] sm:$0xff]
        %v7121 = vld [vmem:[%s294 + $0x30] sm:$0xff]
        %v7122 = vld [vmem:[%s294 + $0x38] sm:$0xff]
        %vm7123 = vcmp.gt.f32.partialorder %v7115, 0.0
        %vm7124 = vcmp.gt.f32.partialorder %v7116, 0.0
        %vm7125 = vcmp.gt.f32.partialorder %v7117, 0.0
        %vm7126 = vcmp.gt.f32.partialorder %v7118, 0.0
        %vm7127 = vcmp.gt.f32.partialorder %v7119, 0.0
        %vm7128 = vcmp.gt.f32.partialorder %v7120, 0.0
        %vm7129 = vcmp.gt.f32.partialorder %v7121, 0.0
        %vm7130 = vcmp.gt.f32.partialorder %v7122, 0.0
        %v7131 = vmin.f32 %v7115, 0.0
        %v7132 = vmin.f32 %v7116, 0.0
        %v7133 = vmin.f32 %v7117, 0.0
        %v7134 = vmin.f32 %v7118, 0.0
        %v7135 = vmin.f32 %v7119, 0.0
        %v7136 = vmin.f32 %v7120, 0.0
        %v7137 = vmin.f32 %v7121, 0.0
        %v7138 = vmin.f32 %v7122, 0.0
        %v7139 = vmul.f32 %v7131, 1.442695
        %v7140 = vpow.pop %v7139
        %v7141 = vmul.f32 %v7132, 1.442695
        %v7142 = vpow.pop %v7141
        %v7143 = vmul.f32 %v7133, 1.442695
        %v7144 = vpow.pop %v7143
        %v7145 = vmul.f32 %v7134, 1.442695
        %v7146 = vpow.pop %v7145
        %v7147 = vmul.f32 %v7135, 1.442695
        %v7148 = vpow.pop %v7147
        %v7149 = vmul.f32 %v7136, 1.442695
        %v7150 = vpow.pop %v7149
        %v7151 = vmul.f32 %v7137, 1.442695
        %v7152 = vpow.pop %v7151
        %v7153 = vmul.f32 %v7138, 1.442695
        %v7154 = vpow.pop %v7153
        %v7155 = vsub.f32 %v7140, 1.0
        %v7156 = vsub.f32 %v7142, 1.0
        %v7157 = vsub.f32 %v7144, 1.0
        %v7158 = vsub.f32 %v7146, 1.0
        %v7159 = vsub.f32 %v7148, 1.0
        %v7160 = vsub.f32 %v7150, 1.0
        %v7161 = vsub.f32 %v7152, 1.0
        %v7162 = vsub.f32 %v7154, 1.0
        %v7163 = vsel %vm7123, %v7115, %v7155
        %v7164 = vsel %vm7124, %v7116, %v7156
        %v7165 = vsel %vm7125, %v7117, %v7157
        %v7166 = vsel %vm7126, %v7118, %v7158
        %v7167 = vsel %vm7127, %v7119, %v7159
        %v7168 = vsel %vm7128, %v7120, %v7160
        %v7169 = vsel %vm7129, %v7121, %v7161
        %v7170 = vsel %vm7130, %v7122, %v7162
        %7171 = vst [vmem:[%s294] sm:$0xff] %v7163
        %7172 = vst [vmem:[%s294 + $0x8] sm:$0xff] %v7164
        %7173 = vst [vmem:[%s294 + $0x10] sm:$0xff] %v7165
        %7174 = vst [vmem:[%s294 + $0x18] sm:$0xff] %v7166
        %7175 = vst [vmem:[%s294 + $0x20] sm:$0xff] %v7167
        %7176 = vst [vmem:[%s294 + $0x28] sm:$0xff] %v7168
        %7177 = vst [vmem:[%s294 + $0x30] sm:$0xff] %v7169
        %7178 = vst [vmem:[%s294 + $0x38] sm:$0xff] %v7170
        %s7179 = sand.u32 %s142, 1
        %s7180 = scalar_lea.sflag [#allocation5], %s7179
        %s7181 = sand.u32 %s142, 1
        %s7182 = smul.addr %s7181, 64
        %s7183 = scalar_lea.vmem [#allocation12], %s7182
        // Predicated region
        $region61: #{tpu_custom_call.1} parent=39 // pred_check
          %p7184 = pneg %p152
        $region62: #{tpu_custom_call.1} parent=39 // pred_check_branch
          %7186 = sbr.rel (%p7184) target = $region64
        $region63: #{tpu_custom_call.1} parent=39 // pred_region
          %s7188 = ssub.s32 1024, 1024
          %7189 = vsyncadd %s7180, %s7188
          %s7190 = smul.addr %s24, 8
          %s7191 = smul.addr %s7190, 128
          %s7192 = scalar_lea.hbm %s5, %s7191
          %s7193 = sshll.u32 %s7183, 4
          %s7194 = int_to_ptr.vmem [resolvable:$true] %s7193
          %7199 = dma.vmem_to_hbm [thread:$0]  %s7194, 1024, %s7192, %s7180, 512, 512, 32
        $region64: #{tpu_custom_call.1} parent=39 // pred_fallthru
          _
      $region40: #{tpu_custom_call.1} parent=5 // pred_fallthru
        _
      %p7200 = scmp.le.s32.totalorder 2, %s19
      // Predicated region
      $region65: #{tpu_custom_call.1} parent=5 // pred_check
        %p7201 = pneg %p7200
      $region66: #{tpu_custom_call.1} parent=5 // pred_check_branch
        %7203 = sbr.rel (%p7201) target = $region68
      $region67: #{tpu_custom_call.1} parent=5 // pred_region
        %s7204 = ssub.s32 %s19, 2
        // Predicated region
        $region69: #{tpu_custom_call.1} parent=67 // pred_check
          %p7205 = pneg %p158
        $region70: #{tpu_custom_call.1} parent=67 // pred_check_branch
          %7207 = sbr.rel (%p7205) target = $region72
        $region71: #{tpu_custom_call.1} parent=67 // pred_region
          %s7208 = sand.u32 %s143, 1
          %s7209 = scalar_lea.sflag [#allocation5], %s7208
          %s7210 = sand.u32 %s143, 1
          %s7211 = smul.addr %s7210, 64
          %s7212 = scalar_lea.vmem [#allocation12], %s7211
          %7213 = dma.done %s7209, 1024
        $region72: #{tpu_custom_call.1} parent=67 // pred_fallthru
          _
      $region68: #{tpu_custom_call.1} parent=5 // pred_fallthru
        _
    $region6: #{tpu_custom_call.1} parent=1 // loop_footer
      %s23 = sadd.s32 1, %s19
    $region7: #{tpu_custom_call.1} parent=1 // loop_footer_branch
      %18 = sbr.rel target = $region3
    $region8: #{tpu_custom_call.1} parent=1 // loop_exit
      _
    %7214 = vsyncpa [#allocation4], 1
    %s7215 = scalar_lea.sflag [#allocation4], 1
    %7216 = vsyncpa %s7215, 1
    %7217 = vsyncpa [#allocation7], 1
    %7218 = vsyncpa [#allocation10], 1
    %7219 = vsyncpa [#allocation5], 1
    %s7220 = scalar_lea.sflag [#allocation5], 1
    %7221 = vsyncpa %s7220, 1

</llo_original>
